<compile_context>
chip_gen: v6e
topology: v6e:2x2x1
jax: 0.10.0
libtpu: 0.0.40
codegen_flags: <defaults>
</compile_context>

<pallas_src>
import functools
import math

import jax
import jax.numpy as jnp
from jax.experimental import pallas as pl
from jax.experimental.pallas import tpu as pltpu


def _sigmoid(x):
    # sigmoid via tanh identity: a single EUP op, exact identity.
    return 0.5 * jnp.tanh(0.5 * x) + 0.5


def attn_lstm_kernel(x_ref, *refs, n_layers, hidden_dim):
    """One batch block per grid step.

    refs = [w_ih0 (F,4H), w_hh0 (H,4H), b0 (1,4H)]
         + per layer l>=1: [w_cat_l (2H,4H) = [w_ih_l; w_hh_l], b_l (1,4H)]
         + [attn_conv (H,T), Wy (T,factors), Wo (H,factors), b_out (1,factors)]
         + [out_ref (Bb,factors)]
    Gate order is [i, f, o, g] (host-side permuted); biases are b_ih + b_hh pre-summed
    (required when importing real PyTorch LSTM weights).
    """
    H = hidden_dim
    f32 = jnp.float32

    w_ih0 = refs[0][...].astype(f32)             # (F, 4H)
    w_hh0 = refs[1][...].astype(f32)             # (H, 4H)
    b0 = refs[2][...].astype(f32)                # (1, 4H)
    idx = 3
    cat_layers = []
    for _ in range(n_layers - 1):
        cat_layers.append((refs[idx][...].astype(f32), refs[idx + 1][...].astype(f32)))
        idx += 2
    attn_conv = refs[idx][...].astype(f32)       # (H, T)
    w_y = refs[idx + 1][...].astype(f32)         # (T, factors)
    w_o = refs[idx + 2][...].astype(f32)         # (H, factors)
    b_out = refs[idx + 3][...].astype(f32)       # (1, factors)
    out_ref = refs[idx + 4]

    x = x_ref[...].astype(f32)                   # (Bb, T, F) single contiguous load
    Bb, T, F_in = x.shape

    # Hoisted layer-0 input projection: one (Bb*T, F) x (F, 4H) matmul + bias.
    xp0 = jnp.dot(x.reshape(Bb * T, F_in), w_ih0,
                  preferred_element_type=f32) + b0
    xp0 = xp0.reshape(Bb, T, 4 * H)

    def cell(gates, c_prev):
        ifo = _sigmoid(gates[:, :3 * H])         # contiguous [i, f, o]
        g = jnp.tanh(gates[:, 3 * H:])
        c_new = ifo[:, H:2 * H] * c_prev + ifo[:, :H] * g
        h_new = ifo[:, 2 * H:] * jnp.tanh(c_new)
        return h_new, c_new

    zeros = jnp.zeros((Bb, H), f32)
    h = [zeros] * n_layers
    c = [zeros] * n_layers
    last_hs = [None] * T

    # Wavefront over (layer, time): at step s, layer l processes t = s - l.  Only
    # data-flow (no refs) between layers, so layer l+1's step t-1 overlaps layer l's
    # step t -- serial chain of T + n_layers - 1 cell updates.
    # TODO(synk): for large T switch to lax.fori_loop(unroll=2..4) carrying (h, c).
    for s in range(T + n_layers - 1):
        h_prev = list(h)
        c_prev = list(c)
        for l in range(n_layers):
            t = s - l
            if t < 0 or t >= T:
                continue
            if l == 0:
                # Only h @ w_hh sits on the serial dependency chain.
                gates = xp0[:, t, :] + jnp.dot(h_prev[0], w_hh0,
                                               preferred_element_type=f32)
            else:
                w_cat, b_l = cat_layers[l - 1]
                inp = jnp.concatenate([h_prev[l - 1], h_prev[l]], axis=1)   # (Bb, 2H)
                gates = jnp.dot(inp, w_cat, preferred_element_type=f32) + b_l
            h[l], c[l] = cell(gates, c_prev[l])
            if l == n_layers - 1:
                last_hs[t] = h[l]

    out_seq = jnp.stack(last_hs, axis=1)         # (Bb, T, H) last-layer outputs (vregs)
    opt = last_hs[T - 1]                         # (Bb, H) == out[:, -1, :]

    # ----- attention (attn_weight ∘ conv fused host-side into attn_conv (H, T)) -----
    # score[b,h] = sigmoid( sum_t out[b,t,h] * (opt[b,:] @ attn_conv)[t] )
    z = jnp.dot(opt, attn_conv, preferred_element_type=f32)          # (Bb, T)
    score = _sigmoid(jnp.sum(out_seq * z[:, :, None], axis=1))       # (Bb, H)
    # y[b,t] = sum_h out[b,t,h] * score[b,h]; conv/fc_v/fc_h/fc are folded host-side.
    y = jnp.sum(out_seq * score[:, None, :], axis=2)                 # (Bb, T)

    out = (jnp.dot(y, w_y, preferred_element_type=f32)
           + jnp.dot(opt, w_o, preferred_element_type=f32)
           + b_out)                                                  # (Bb, factors)
    out_ref[...] = out.astype(out_ref.dtype)


def _replicated_spec(shape):
    n = len(shape)
    return pl.BlockSpec(shape, lambda b, n=n: (0,) * n)


def attn_lstm_forward(x, params, *, n_layers, hidden_dim, block_b=None):
    B, T, F = x.shape
    H = hidden_dim
    if block_b is None:
        # Whole batch per program.  The serial recurrence chain does not shrink when
        # the batch is split, so only shard across v7x's two TensorCores
        # (block_b = B // 2) when the per-core batch is sublane-full (>= 8 rows).
        block_b = B
    assert B % block_b == 0, (B, block_b)

    # Gate reorder [i, f, g, o] (PyTorch) -> [i, f, o, g]: one contiguous sigmoid slice.
    perm = jnp.concatenate([jnp.arange(0, 2 * H),
                            jnp.arange(3 * H, 4 * H),
                            jnp.arange(2 * H, 3 * H)])

    weight_args = []
    in_specs = [pl.BlockSpec((block_b, T, F), lambda b: (b, 0, 0))]

    def add(w):
        weight_args.append(w)
        in_specs.append(_replicated_spec(w.shape))

    # Layer 0: hoisted input-projection weight, recurrence weight, summed bias.
    add(params["w_ih_0"][perm].T)                # (F, 4H)
    add(params["w_hh_0"][perm].T)                # (H, 4H)
    add(params["b_0"][:, perm])                  # (1, 4H) = b_ih + b_hh pre-summed
    # Layers >= 1: stacked [w_ih; w_hh] so projection + recurrence is one dot per step.
    for l in range(1, n_layers):
        w_ih = params[f"w_ih_{l}"][perm].T       # (H, 4H)
        w_hh = params[f"w_hh_{l}"][perm].T       # (H, 4H)
        add(jnp.concatenate([w_ih, w_hh], axis=0))   # (2H, 4H)
        add(params[f"b_{l}"][:, perm])           # (1, 4H)

    # Fused attention matrix and folded output head.
    conv_wT = params["conv_w"].T                 # (T, K)
    fcv_wT = params["fcv_w"].T                   # (K, H)
    fch_wT = params["fch_w"].T                   # (H, H)
    fc_wT = params["fc_w"].T                     # (2H, factors)
    attn_conv = params["attn_w"] @ params["conv_w"]                      # (H, T)
    w_y = conv_wT @ fcv_wT @ fc_wT[:H]                                   # (T, factors)
    w_o = fch_wT @ fc_wT[H:]                                             # (H, factors)
    b_out = params["fcv_b"] @ fc_wT[:H] + params["fch_b"] @ fc_wT[H:]    # (1, factors)
    for w in (attn_conv, w_y, w_o, b_out):
        add(w)
    factors = params["fc_w"].shape[0]

    kernel = functools.partial(attn_lstm_kernel, n_layers=n_layers, hidden_dim=H)
    out = pl.pallas_call(
        kernel,
        out_shape=jax.ShapeDtypeStruct((B, factors), x.dtype),
        grid=(B // block_b,),
        in_specs=in_specs,
        out_specs=pl.BlockSpec((block_b, factors), lambda b: (b, 0)),
        compiler_params=pltpu.CompilerParams(dimension_semantics=("parallel",)),
    )(x, *weight_args)
    return out


def init_params(key, factors, lags, hidden_dim, n_layers, kernels):
    """Deterministic synthetic parameters (PyTorch-style uniform ranges)."""
    params = {}
    keys = list(jax.random.split(key, 3 * n_layers + 7))
    ki = iter(keys)
    s_h = 1.0 / math.sqrt(hidden_dim)
    s_k = 1.0 / math.sqrt(kernels)
    in_dim = factors
    for l in range(n_layers):
        params[f"w_ih_{l}"] = jax.random.uniform(next(ki), (4 * hidden_dim, in_dim),
                                                 jnp.float32, -s_h, s_h)
        params[f"w_hh_{l}"] = jax.random.uniform(next(ki), (4 * hidden_dim, hidden_dim),
                                                 jnp.float32, -s_h, s_h)
        params[f"b_{l}"] = jax.random.uniform(next(ki), (1, 4 * hidden_dim),
                                              jnp.float32, -s_h, s_h)
        in_dim = hidden_dim
    # Conv2d(1, kernels, (1, lags), bias=False) weight (K,1,1,lags) -> (K, lags)
    params["conv_w"] = jax.random.uniform(next(ki), (kernels, lags), jnp.float32, -0.5, 0.5)
    params["attn_w"] = jax.random.uniform(next(ki), (hidden_dim, kernels), jnp.float32, -s_k, s_k)
    params["fcv_w"] = jax.random.uniform(next(ki), (hidden_dim, kernels), jnp.float32, -s_k, s_k)
    params["fcv_b"] = jax.random.uniform(next(ki), (1, hidden_dim), jnp.float32, -s_k, s_k)
    params["fch_w"] = jax.random.uniform(next(ki), (hidden_dim, hidden_dim), jnp.float32, -s_h, s_h)
    params["fch_b"] = jax.random.uniform(next(ki), (1, hidden_dim), jnp.float32, -s_h, s_h)
    params["fc_w"] = jax.random.uniform(next(ki), (factors, 2 * hidden_dim),
                                        jnp.float32, -1.0 / math.sqrt(2 * hidden_dim),
                                        1.0 / math.sqrt(2 * hidden_dim))
    return params


def reference_forward(x, params, *, n_layers, hidden_dim):
    """Pure-JAX reference replicating the PyTorch forward (eval mode)."""
    H = hidden_dim
    B, T, _ = x.shape
    layer_in = x
    for l in range(n_layers):
        w_ih, w_hh, b = params[f"w_ih_{l}"], params[f"w_hh_{l}"], params[f"b_{l}"]
        h = jnp.zeros((B, H), jnp.float32)
        c = jnp.zeros((B, H), jnp.float32)
        outs = []
        for t in range(T):
            gates = layer_in[:, t, :] @ w_ih.T + h @ w_hh.T + b
            i = jax.nn.sigmoid(gates[:, :H])
            f = jax.nn.sigmoid(gates[:, H:2 * H])
            g = jnp.tanh(gates[:, 2 * H:3 * H])
            o = jax.nn.sigmoid(gates[:, 3 * H:])
            c = f * c + i * g
            h = o * jnp.tanh(c)
            outs.append(h)
        layer_in = jnp.stack(outs, axis=1)
    out = layer_in
    opt = out[:, -1, :]
    conv = jnp.einsum('bth,kt->bhk', out, params["conv_w"])
    aw = jnp.einsum('bhk,dk->bhd', conv, params["attn_w"])
    score = jax.nn.sigmoid(jnp.einsum('bhd,bd->bh', aw, opt))
    v = jnp.einsum('bhk,bh->bk', conv, score)
    v = v @ params["fcv_w"].T + params["fcv_b"]
    hh = opt @ params["fch_w"].T + params["fch_b"]
    return jnp.concatenate([v, hh], axis=1) @ params["fc_w"].T


if __name__ == "__main__":
    # AttnLSTM(factors=4, lag_set of 8 lags, hidden_dim=32, n_layers=2, kernels=16, ...)
    # forward's squeeze(3)/permute implies seq_len == len(lag_set).
    B, factors, hidden_dim, n_layers, kernels = 2, 4, 32, 2, 16
    lag_set = list(range(1, 9))
    lags = len(lag_set)  # == seq_len == 8

    key = jax.random.PRNGKey(0)
    kx, kp = jax.random.split(key)
    x = jax.random.normal(kx, (B, lags, factors), jnp.float32)
    params = init_params(kp, factors, lags, hidden_dim, n_layers, kernels)

    out = attn_lstm_forward(x, params, n_layers=n_layers, hidden_dim=hidden_dim)
    out = jax.block_until_ready(out)

    ref = reference_forward(x, params, n_layers=n_layers, hidden_dim=hidden_dim)
    assert out.shape == (B, factors), out.shape
    max_err = float(jnp.max(jnp.abs(out - ref)))
    if not bool(jnp.allclose(out, ref, atol=2e-3, rtol=2e-3)):
        raise AssertionError(f"Pallas kernel mismatch vs reference, max abs err={max_err}")
    print("KERNEL_OK")
</pallas_src>

<mosaic_0001>
module attributes {stable_mosaic.version = 11 : i64} {
  func.func @attn_lstm_kernel(%arg0: i32, %arg1: memref<2x8x4xf32, #tpu.memory_space<vmem>>, %arg2: memref<4x128xf32, #tpu.memory_space<vmem>>, %arg3: memref<32x128xf32, #tpu.memory_space<vmem>>, %arg4: memref<1x128xf32, #tpu.memory_space<vmem>>, %arg5: memref<64x128xf32, #tpu.memory_space<vmem>>, %arg6: memref<1x128xf32, #tpu.memory_space<vmem>>, %arg7: memref<32x8xf32, #tpu.memory_space<vmem>>, %arg8: memref<8x4xf32, #tpu.memory_space<vmem>>, %arg9: memref<32x4xf32, #tpu.memory_space<vmem>>, %arg10: memref<1x4xf32, #tpu.memory_space<vmem>>, %arg11: memref<2x4xf32, #tpu.memory_space<vmem>>) attributes {dimension_semantics = [#tpu.dimension_semantics<parallel>], iteration_bounds = array<i64: 1>, scalar_prefetch = 0 : i64, scratch_operands = 0 : i64, tpu.core_type = #tpu.core_type<tc>, window_params = [{transform_indices = @transform_0, window_bounds = array<i64: 2, 8, 4>}, {pipeline_mode = #tpu.pipeline_mode<synchronous>, transform_indices = @transform_1, window_bounds = array<i64: 4, 128>}, {pipeline_mode = #tpu.pipeline_mode<synchronous>, transform_indices = @transform_2, window_bounds = array<i64: 32, 128>}, {pipeline_mode = #tpu.pipeline_mode<synchronous>, transform_indices = @transform_3, window_bounds = array<i64: 1, 128>}, {pipeline_mode = #tpu.pipeline_mode<synchronous>, transform_indices = @transform_4, window_bounds = array<i64: 64, 128>}, {pipeline_mode = #tpu.pipeline_mode<synchronous>, transform_indices = @transform_5, window_bounds = array<i64: 1, 128>}, {pipeline_mode = #tpu.pipeline_mode<synchronous>, transform_indices = @transform_6, window_bounds = array<i64: 32, 8>}, {pipeline_mode = #tpu.pipeline_mode<synchronous>, transform_indices = @transform_7, window_bounds = array<i64: 8, 4>}, {pipeline_mode = #tpu.pipeline_mode<synchronous>, transform_indices = @transform_8, window_bounds = array<i64: 32, 4>}, {pipeline_mode = #tpu.pipeline_mode<synchronous>, transform_indices = @transform_9, window_bounds = array<i64: 1, 4>}, {transform_indices = @transform_10, window_bounds = array<i64: 2, 4>}]} {
    %c0 = arith.constant 0 : index
    %c0_0 = arith.constant 0 : index
    %0 = vector.load %arg2[%c0, %c0_0] : memref<4x128xf32, #tpu.memory_space<vmem>>, vector<4x128xf32>
    %c0_1 = arith.constant 0 : index
    %c0_2 = arith.constant 0 : index
    %1 = vector.load %arg3[%c0_1, %c0_2] : memref<32x128xf32, #tpu.memory_space<vmem>>, vector<32x128xf32>
    %c0_3 = arith.constant 0 : index
    %c0_4 = arith.constant 0 : index
    %2 = vector.load %arg4[%c0_3, %c0_4] : memref<1x128xf32, #tpu.memory_space<vmem>>, vector<1x128xf32>
    %c0_5 = arith.constant 0 : index
    %c0_6 = arith.constant 0 : index
    %3 = vector.load %arg5[%c0_5, %c0_6] : memref<64x128xf32, #tpu.memory_space<vmem>>, vector<64x128xf32>
    %c0_7 = arith.constant 0 : index
    %c0_8 = arith.constant 0 : index
    %4 = vector.load %arg6[%c0_7, %c0_8] : memref<1x128xf32, #tpu.memory_space<vmem>>, vector<1x128xf32>
    %c0_9 = arith.constant 0 : index
    %c0_10 = arith.constant 0 : index
    %5 = vector.load %arg7[%c0_9, %c0_10] : memref<32x8xf32, #tpu.memory_space<vmem>>, vector<32x8xf32>
    %c0_11 = arith.constant 0 : index
    %c0_12 = arith.constant 0 : index
    %6 = vector.load %arg8[%c0_11, %c0_12] : memref<8x4xf32, #tpu.memory_space<vmem>>, vector<8x4xf32>
    %c0_13 = arith.constant 0 : index
    %c0_14 = arith.constant 0 : index
    %7 = vector.load %arg9[%c0_13, %c0_14] : memref<32x4xf32, #tpu.memory_space<vmem>>, vector<32x4xf32>
    %c0_15 = arith.constant 0 : index
    %c0_16 = arith.constant 0 : index
    %8 = vector.load %arg10[%c0_15, %c0_16] : memref<1x4xf32, #tpu.memory_space<vmem>>, vector<1x4xf32>
    %c0_17 = arith.constant 0 : index
    %c0_18 = arith.constant 0 : index
    %c0_19 = arith.constant 0 : index
    %9 = vector.load %arg1[%c0_17, %c0_18, %c0_19] : memref<2x8x4xf32, #tpu.memory_space<vmem>>, vector<2x8x4xf32>
    %10 = vector.shape_cast %9 : vector<2x8x4xf32> to vector<16x4xf32>
    %cst = arith.constant dense<0.000000e+00> : vector<16x128xf32>
    %11 = tpu.matmul %10, %0, %cst {dimension_numbers = #tpu.dot_dimension_numbers<[1], [0], [0], [1], [0, 0, 1, 1], [], []>} : vector<16x4xf32>, vector<4x128xf32>, vector<16x128xf32> -> vector<16x128xf32>
    %12 = vector.broadcast %2 : vector<1x128xf32> to vector<16x128xf32>
    %13 = arith.addf %11, %12 : vector<16x128xf32>
    %14 = vector.shape_cast %13 : vector<16x128xf32> to vector<2x8x128xf32>
    %cst_20 = arith.constant 0.000000e+00 : f32
    %15 = vector.broadcast %cst_20 : f32 to vector<2x32xf32>
    %16 = vector.extract_strided_slice %14 {offsets = [0, 0, 0], sizes = [2, 1, 128], strides = [1, 1, 1]} : vector<2x8x128xf32> to vector<2x1x128xf32>
    %17 = vector.shape_cast %16 : vector<2x1x128xf32> to vector<2x128xf32>
    %cst_21 = arith.constant dense<0.000000e+00> : vector<2x128xf32>
    %18 = tpu.matmul %15, %1, %cst_21 {dimension_numbers = #tpu.dot_dimension_numbers<[1], [0], [0], [1], [0, 0, 1, 1], [], []>} : vector<2x32xf32>, vector<32x128xf32>, vector<2x128xf32> -> vector<2x128xf32>
    %19 = arith.addf %17, %18 : vector<2x128xf32>
    %20 = vector.extract_strided_slice %19 {offsets = [0, 0], sizes = [2, 96], strides = [1, 1]} : vector<2x128xf32> to vector<2x96xf32>
    %cst_22 = arith.constant 5.000000e-01 : f32
    %21 = vector.broadcast %cst_22 : f32 to vector<2x96xf32>
    %22 = arith.mulf %21, %20 : vector<2x96xf32>
    %23 = math.tanh %22 : vector<2x96xf32>
    %cst_23 = arith.constant 5.000000e-01 : f32
    %24 = vector.broadcast %cst_23 : f32 to vector<2x96xf32>
    %25 = arith.mulf %24, %23 : vector<2x96xf32>
    %cst_24 = arith.constant 5.000000e-01 : f32
    %26 = vector.broadcast %cst_24 : f32 to vector<2x96xf32>
    %27 = arith.addf %25, %26 : vector<2x96xf32>
    %28 = vector.extract_strided_slice %19 {offsets = [0, 96], sizes = [2, 32], strides = [1, 1]} : vector<2x128xf32> to vector<2x32xf32>
    %29 = math.tanh %28 : vector<2x32xf32>
    %30 = vector.extract_strided_slice %27 {offsets = [0, 32], sizes = [2, 32], strides = [1, 1]} : vector<2x96xf32> to vector<2x32xf32>
    %31 = arith.mulf %30, %15 : vector<2x32xf32>
    %32 = vector.extract_strided_slice %27 {offsets = [0, 0], sizes = [2, 32], strides = [1, 1]} : vector<2x96xf32> to vector<2x32xf32>
    %33 = arith.mulf %32, %29 : vector<2x32xf32>
    %34 = arith.addf %31, %33 : vector<2x32xf32>
    %35 = vector.extract_strided_slice %27 {offsets = [0, 64], sizes = [2, 32], strides = [1, 1]} : vector<2x96xf32> to vector<2x32xf32>
    %36 = math.tanh %34 : vector<2x32xf32>
    %37 = arith.mulf %35, %36 : vector<2x32xf32>
    %38 = vector.extract_strided_slice %14 {offsets = [0, 1, 0], sizes = [2, 1, 128], strides = [1, 1, 1]} : vector<2x8x128xf32> to vector<2x1x128xf32>
    %39 = vector.shape_cast %38 : vector<2x1x128xf32> to vector<2x128xf32>
    %cst_25 = arith.constant dense<0.000000e+00> : vector<2x128xf32>
    %40 = tpu.matmul %37, %1, %cst_25 {dimension_numbers = #tpu.dot_dimension_numbers<[1], [0], [0], [1], [0, 0, 1, 1], [], []>} : vector<2x32xf32>, vector<32x128xf32>, vector<2x128xf32> -> vector<2x128xf32>
    %41 = arith.addf %39, %40 : vector<2x128xf32>
    %42 = vector.extract_strided_slice %41 {offsets = [0, 0], sizes = [2, 96], strides = [1, 1]} : vector<2x128xf32> to vector<2x96xf32>
    %cst_26 = arith.constant 5.000000e-01 : f32
    %43 = vector.broadcast %cst_26 : f32 to vector<2x96xf32>
    %44 = arith.mulf %43, %42 : vector<2x96xf32>
    %45 = math.tanh %44 : vector<2x96xf32>
    %cst_27 = arith.constant 5.000000e-01 : f32
    %46 = vector.broadcast %cst_27 : f32 to vector<2x96xf32>
    %47 = arith.mulf %46, %45 : vector<2x96xf32>
    %cst_28 = arith.constant 5.000000e-01 : f32
    %48 = vector.broadcast %cst_28 : f32 to vector<2x96xf32>
    %49 = arith.addf %47, %48 : vector<2x96xf32>
    %50 = vector.extract_strided_slice %41 {offsets = [0, 96], sizes = [2, 32], strides = [1, 1]} : vector<2x128xf32> to vector<2x32xf32>
    %51 = math.tanh %50 : vector<2x32xf32>
    %52 = vector.extract_strided_slice %49 {offsets = [0, 32], sizes = [2, 32], strides = [1, 1]} : vector<2x96xf32> to vector<2x32xf32>
    %53 = arith.mulf %52, %34 : vector<2x32xf32>
    %54 = vector.extract_strided_slice %49 {offsets = [0, 0], sizes = [2, 32], strides = [1, 1]} : vector<2x96xf32> to vector<2x32xf32>
    %55 = arith.mulf %54, %51 : vector<2x32xf32>
    %56 = arith.addf %53, %55 : vector<2x32xf32>
    %57 = vector.extract_strided_slice %49 {offsets = [0, 64], sizes = [2, 32], strides = [1, 1]} : vector<2x96xf32> to vector<2x32xf32>
    %58 = math.tanh %56 : vector<2x32xf32>
    %59 = arith.mulf %57, %58 : vector<2x32xf32>
    %60 = tpu.concatenate %37, %15 in 1 : vector<2x32xf32>, vector<2x32xf32> -> vector<2x64xf32>
    %cst_29 = arith.constant dense<0.000000e+00> : vector<2x128xf32>
    %61 = tpu.matmul %60, %3, %cst_29 {dimension_numbers = #tpu.dot_dimension_numbers<[1], [0], [0], [1], [0, 0, 1, 1], [], []>} : vector<2x64xf32>, vector<64x128xf32>, vector<2x128xf32> -> vector<2x128xf32>
    %62 = vector.broadcast %4 : vector<1x128xf32> to vector<2x128xf32>
    %63 = arith.addf %61, %62 : vector<2x128xf32>
    %64 = vector.extract_strided_slice %63 {offsets = [0, 0], sizes = [2, 96], strides = [1, 1]} : vector<2x128xf32> to vector<2x96xf32>
    %cst_30 = arith.constant 5.000000e-01 : f32
    %65 = vector.broadcast %cst_30 : f32 to vector<2x96xf32>
    %66 = arith.mulf %65, %64 : vector<2x96xf32>
    %67 = math.tanh %66 : vector<2x96xf32>
    %cst_31 = arith.constant 5.000000e-01 : f32
    %68 = vector.broadcast %cst_31 : f32 to vector<2x96xf32>
    %69 = arith.mulf %68, %67 : vector<2x96xf32>
    %cst_32 = arith.constant 5.000000e-01 : f32
    %70 = vector.broadcast %cst_32 : f32 to vector<2x96xf32>
    %71 = arith.addf %69, %70 : vector<2x96xf32>
    %72 = vector.extract_strided_slice %63 {offsets = [0, 96], sizes = [2, 32], strides = [1, 1]} : vector<2x128xf32> to vector<2x32xf32>
    %73 = math.tanh %72 : vector<2x32xf32>
    %74 = vector.extract_strided_slice %71 {offsets = [0, 32], sizes = [2, 32], strides = [1, 1]} : vector<2x96xf32> to vector<2x32xf32>
    %75 = arith.mulf %74, %15 : vector<2x32xf32>
    %76 = vector.extract_strided_slice %71 {offsets = [0, 0], sizes = [2, 32], strides = [1, 1]} : vector<2x96xf32> to vector<2x32xf32>
    %77 = arith.mulf %76, %73 : vector<2x32xf32>
    %78 = arith.addf %75, %77 : vector<2x32xf32>
    %79 = vector.extract_strided_slice %71 {offsets = [0, 64], sizes = [2, 32], strides = [1, 1]} : vector<2x96xf32> to vector<2x32xf32>
    %80 = math.tanh %78 : vector<2x32xf32>
    %81 = arith.mulf %79, %80 : vector<2x32xf32>
    %82 = vector.extract_strided_slice %14 {offsets = [0, 2, 0], sizes = [2, 1, 128], strides = [1, 1, 1]} : vector<2x8x128xf32> to vector<2x1x128xf32>
    %83 = vector.shape_cast %82 : vector<2x1x128xf32> to vector<2x128xf32>
    %cst_33 = arith.constant dense<0.000000e+00> : vector<2x128xf32>
    %84 = tpu.matmul %59, %1, %cst_33 {dimension_numbers = #tpu.dot_dimension_numbers<[1], [0], [0], [1], [0, 0, 1, 1], [], []>} : vector<2x32xf32>, vector<32x128xf32>, vector<2x128xf32> -> vector<2x128xf32>
    %85 = arith.addf %83, %84 : vector<2x128xf32>
    %86 = vector.extract_strided_slice %85 {offsets = [0, 0], sizes = [2, 96], strides = [1, 1]} : vector<2x128xf32> to vector<2x96xf32>
    %cst_34 = arith.constant 5.000000e-01 : f32
    %87 = vector.broadcast %cst_34 : f32 to vector<2x96xf32>
    %88 = arith.mulf %87, %86 : vector<2x96xf32>
    %89 = math.tanh %88 : vector<2x96xf32>
    %cst_35 = arith.constant 5.000000e-01 : f32
    %90 = vector.broadcast %cst_35 : f32 to vector<2x96xf32>
    %91 = arith.mulf %90, %89 : vector<2x96xf32>
    %cst_36 = arith.constant 5.000000e-01 : f32
    %92 = vector.broadcast %cst_36 : f32 to vector<2x96xf32>
    %93 = arith.addf %91, %92 : vector<2x96xf32>
    %94 = vector.extract_strided_slice %85 {offsets = [0, 96], sizes = [2, 32], strides = [1, 1]} : vector<2x128xf32> to vector<2x32xf32>
    %95 = math.tanh %94 : vector<2x32xf32>
    %96 = vector.extract_strided_slice %93 {offsets = [0, 32], sizes = [2, 32], strides = [1, 1]} : vector<2x96xf32> to vector<2x32xf32>
    %97 = arith.mulf %96, %56 : vector<2x32xf32>
    %98 = vector.extract_strided_slice %93 {offsets = [0, 0], sizes = [2, 32], strides = [1, 1]} : vector<2x96xf32> to vector<2x32xf32>
    %99 = arith.mulf %98, %95 : vector<2x32xf32>
    %100 = arith.addf %97, %99 : vector<2x32xf32>
    %101 = vector.extract_strided_slice %93 {offsets = [0, 64], sizes = [2, 32], strides = [1, 1]} : vector<2x96xf32> to vector<2x32xf32>
    %102 = math.tanh %100 : vector<2x32xf32>
    %103 = arith.mulf %101, %102 : vector<2x32xf32>
    %104 = tpu.concatenate %59, %81 in 1 : vector<2x32xf32>, vector<2x32xf32> -> vector<2x64xf32>
    %cst_37 = arith.constant dense<0.000000e+00> : vector<2x128xf32>
    %105 = tpu.matmul %104, %3, %cst_37 {dimension_numbers = #tpu.dot_dimension_numbers<[1], [0], [0], [1], [0, 0, 1, 1], [], []>} : vector<2x64xf32>, vector<64x128xf32>, vector<2x128xf32> -> vector<2x128xf32>
    %106 = vector.broadcast %4 : vector<1x128xf32> to vector<2x128xf32>
    %107 = arith.addf %105, %106 : vector<2x128xf32>
    %108 = vector.extract_strided_slice %107 {offsets = [0, 0], sizes = [2, 96], strides = [1, 1]} : vector<2x128xf32> to vector<2x96xf32>
    %cst_38 = arith.constant 5.000000e-01 : f32
    %109 = vector.broadcast %cst_38 : f32 to vector<2x96xf32>
    %110 = arith.mulf %109, %108 : vector<2x96xf32>
    %111 = math.tanh %110 : vector<2x96xf32>
    %cst_39 = arith.constant 5.000000e-01 : f32
    %112 = vector.broadcast %cst_39 : f32 to vector<2x96xf32>
    %113 = arith.mulf %112, %111 : vector<2x96xf32>
    %cst_40 = arith.constant 5.000000e-01 : f32
    %114 = vector.broadcast %cst_40 : f32 to vector<2x96xf32>
    %115 = arith.addf %113, %114 : vector<2x96xf32>
    %116 = vector.extract_strided_slice %107 {offsets = [0, 96], sizes = [2, 32], strides = [1, 1]} : vector<2x128xf32> to vector<2x32xf32>
    %117 = math.tanh %116 : vector<2x32xf32>
    %118 = vector.extract_strided_slice %115 {offsets = [0, 32], sizes = [2, 32], strides = [1, 1]} : vector<2x96xf32> to vector<2x32xf32>
    %119 = arith.mulf %118, %78 : vector<2x32xf32>
    %120 = vector.extract_strided_slice %115 {offsets = [0, 0], sizes = [2, 32], strides = [1, 1]} : vector<2x96xf32> to vector<2x32xf32>
    %121 = arith.mulf %120, %117 : vector<2x32xf32>
    %122 = arith.addf %119, %121 : vector<2x32xf32>
    %123 = vector.extract_strided_slice %115 {offsets = [0, 64], sizes = [2, 32], strides = [1, 1]} : vector<2x96xf32> to vector<2x32xf32>
    %124 = math.tanh %122 : vector<2x32xf32>
    %125 = arith.mulf %123, %124 : vector<2x32xf32>
    %126 = vector.extract_strided_slice %14 {offsets = [0, 3, 0], sizes = [2, 1, 128], strides = [1, 1, 1]} : vector<2x8x128xf32> to vector<2x1x128xf32>
    %127 = vector.shape_cast %126 : vector<2x1x128xf32> to vector<2x128xf32>
    %cst_41 = arith.constant dense<0.000000e+00> : vector<2x128xf32>
    %128 = tpu.matmul %103, %1, %cst_41 {dimension_numbers = #tpu.dot_dimension_numbers<[1], [0], [0], [1], [0, 0, 1, 1], [], []>} : vector<2x32xf32>, vector<32x128xf32>, vector<2x128xf32> -> vector<2x128xf32>
    %129 = arith.addf %127, %128 : vector<2x128xf32>
    %130 = vector.extract_strided_slice %129 {offsets = [0, 0], sizes = [2, 96], strides = [1, 1]} : vector<2x128xf32> to vector<2x96xf32>
    %cst_42 = arith.constant 5.000000e-01 : f32
    %131 = vector.broadcast %cst_42 : f32 to vector<2x96xf32>
    %132 = arith.mulf %131, %130 : vector<2x96xf32>
    %133 = math.tanh %132 : vector<2x96xf32>
    %cst_43 = arith.constant 5.000000e-01 : f32
    %134 = vector.broadcast %cst_43 : f32 to vector<2x96xf32>
    %135 = arith.mulf %134, %133 : vector<2x96xf32>
    %cst_44 = arith.constant 5.000000e-01 : f32
    %136 = vector.broadcast %cst_44 : f32 to vector<2x96xf32>
    %137 = arith.addf %135, %136 : vector<2x96xf32>
    %138 = vector.extract_strided_slice %129 {offsets = [0, 96], sizes = [2, 32], strides = [1, 1]} : vector<2x128xf32> to vector<2x32xf32>
    %139 = math.tanh %138 : vector<2x32xf32>
    %140 = vector.extract_strided_slice %137 {offsets = [0, 32], sizes = [2, 32], strides = [1, 1]} : vector<2x96xf32> to vector<2x32xf32>
    %141 = arith.mulf %140, %100 : vector<2x32xf32>
    %142 = vector.extract_strided_slice %137 {offsets = [0, 0], sizes = [2, 32], strides = [1, 1]} : vector<2x96xf32> to vector<2x32xf32>
    %143 = arith.mulf %142, %139 : vector<2x32xf32>
    %144 = arith.addf %141, %143 : vector<2x32xf32>
    %145 = vector.extract_strided_slice %137 {offsets = [0, 64], sizes = [2, 32], strides = [1, 1]} : vector<2x96xf32> to vector<2x32xf32>
    %146 = math.tanh %144 : vector<2x32xf32>
    %147 = arith.mulf %145, %146 : vector<2x32xf32>
    %148 = tpu.concatenate %103, %125 in 1 : vector<2x32xf32>, vector<2x32xf32> -> vector<2x64xf32>
    %cst_45 = arith.constant dense<0.000000e+00> : vector<2x128xf32>
    %149 = tpu.matmul %148, %3, %cst_45 {dimension_numbers = #tpu.dot_dimension_numbers<[1], [0], [0], [1], [0, 0, 1, 1], [], []>} : vector<2x64xf32>, vector<64x128xf32>, vector<2x128xf32> -> vector<2x128xf32>
    %150 = vector.broadcast %4 : vector<1x128xf32> to vector<2x128xf32>
    %151 = arith.addf %149, %150 : vector<2x128xf32>
    %152 = vector.extract_strided_slice %151 {offsets = [0, 0], sizes = [2, 96], strides = [1, 1]} : vector<2x128xf32> to vector<2x96xf32>
    %cst_46 = arith.constant 5.000000e-01 : f32
    %153 = vector.broadcast %cst_46 : f32 to vector<2x96xf32>
    %154 = arith.mulf %153, %152 : vector<2x96xf32>
    %155 = math.tanh %154 : vector<2x96xf32>
    %cst_47 = arith.constant 5.000000e-01 : f32
    %156 = vector.broadcast %cst_47 : f32 to vector<2x96xf32>
    %157 = arith.mulf %156, %155 : vector<2x96xf32>
    %cst_48 = arith.constant 5.000000e-01 : f32
    %158 = vector.broadcast %cst_48 : f32 to vector<2x96xf32>
    %159 = arith.addf %157, %158 : vector<2x96xf32>
    %160 = vector.extract_strided_slice %151 {offsets = [0, 96], sizes = [2, 32], strides = [1, 1]} : vector<2x128xf32> to vector<2x32xf32>
    %161 = math.tanh %160 : vector<2x32xf32>
    %162 = vector.extract_strided_slice %159 {offsets = [0, 32], sizes = [2, 32], strides = [1, 1]} : vector<2x96xf32> to vector<2x32xf32>
    %163 = arith.mulf %162, %122 : vector<2x32xf32>
    %164 = vector.extract_strided_slice %159 {offsets = [0, 0], sizes = [2, 32], strides = [1, 1]} : vector<2x96xf32> to vector<2x32xf32>
    %165 = arith.mulf %164, %161 : vector<2x32xf32>
    %166 = arith.addf %163, %165 : vector<2x32xf32>
    %167 = vector.extract_strided_slice %159 {offsets = [0, 64], sizes = [2, 32], strides = [1, 1]} : vector<2x96xf32> to vector<2x32xf32>
    %168 = math.tanh %166 : vector<2x32xf32>
    %169 = arith.mulf %167, %168 : vector<2x32xf32>
    %170 = vector.extract_strided_slice %14 {offsets = [0, 4, 0], sizes = [2, 1, 128], strides = [1, 1, 1]} : vector<2x8x128xf32> to vector<2x1x128xf32>
    %171 = vector.shape_cast %170 : vector<2x1x128xf32> to vector<2x128xf32>
    %cst_49 = arith.constant dense<0.000000e+00> : vector<2x128xf32>
    %172 = tpu.matmul %147, %1, %cst_49 {dimension_numbers = #tpu.dot_dimension_numbers<[1], [0], [0], [1], [0, 0, 1, 1], [], []>} : vector<2x32xf32>, vector<32x128xf32>, vector<2x128xf32> -> vector<2x128xf32>
    %173 = arith.addf %171, %172 : vector<2x128xf32>
    %174 = vector.extract_strided_slice %173 {offsets = [0, 0], sizes = [2, 96], strides = [1, 1]} : vector<2x128xf32> to vector<2x96xf32>
    %cst_50 = arith.constant 5.000000e-01 : f32
    %175 = vector.broadcast %cst_50 : f32 to vector<2x96xf32>
    %176 = arith.mulf %175, %174 : vector<2x96xf32>
    %177 = math.tanh %176 : vector<2x96xf32>
    %cst_51 = arith.constant 5.000000e-01 : f32
    %178 = vector.broadcast %cst_51 : f32 to vector<2x96xf32>
    %179 = arith.mulf %178, %177 : vector<2x96xf32>
    %cst_52 = arith.constant 5.000000e-01 : f32
    %180 = vector.broadcast %cst_52 : f32 to vector<2x96xf32>
    %181 = arith.addf %179, %180 : vector<2x96xf32>
    %182 = vector.extract_strided_slice %173 {offsets = [0, 96], sizes = [2, 32], strides = [1, 1]} : vector<2x128xf32> to vector<2x32xf32>
    %183 = math.tanh %182 : vector<2x32xf32>
    %184 = vector.extract_strided_slice %181 {offsets = [0, 32], sizes = [2, 32], strides = [1, 1]} : vector<2x96xf32> to vector<2x32xf32>
    %185 = arith.mulf %184, %144 : vector<2x32xf32>
    %186 = vector.extract_strided_slice %181 {offsets = [0, 0], sizes = [2, 32], strides = [1, 1]} : vector<2x96xf32> to vector<2x32xf32>
    %187 = arith.mulf %186, %183 : vector<2x32xf32>
    %188 = arith.addf %185, %187 : vector<2x32xf32>
    %189 = vector.extract_strided_slice %181 {offsets = [0, 64], sizes = [2, 32], strides = [1, 1]} : vector<2x96xf32> to vector<2x32xf32>
    %190 = math.tanh %188 : vector<2x32xf32>
    %191 = arith.mulf %189, %190 : vector<2x32xf32>
    %192 = tpu.concatenate %147, %169 in 1 : vector<2x32xf32>, vector<2x32xf32> -> vector<2x64xf32>
    %cst_53 = arith.constant dense<0.000000e+00> : vector<2x128xf32>
    %193 = tpu.matmul %192, %3, %cst_53 {dimension_numbers = #tpu.dot_dimension_numbers<[1], [0], [0], [1], [0, 0, 1, 1], [], []>} : vector<2x64xf32>, vector<64x128xf32>, vector<2x128xf32> -> vector<2x128xf32>
    %194 = vector.broadcast %4 : vector<1x128xf32> to vector<2x128xf32>
    %195 = arith.addf %193, %194 : vector<2x128xf32>
    %196 = vector.extract_strided_slice %195 {offsets = [0, 0], sizes = [2, 96], strides = [1, 1]} : vector<2x128xf32> to vector<2x96xf32>
    %cst_54 = arith.constant 5.000000e-01 : f32
    %197 = vector.broadcast %cst_54 : f32 to vector<2x96xf32>
    %198 = arith.mulf %197, %196 : vector<2x96xf32>
    %199 = math.tanh %198 : vector<2x96xf32>
    %cst_55 = arith.constant 5.000000e-01 : f32
    %200 = vector.broadcast %cst_55 : f32 to vector<2x96xf32>
    %201 = arith.mulf %200, %199 : vector<2x96xf32>
    %cst_56 = arith.constant 5.000000e-01 : f32
    %202 = vector.broadcast %cst_56 : f32 to vector<2x96xf32>
    %203 = arith.addf %201, %202 : vector<2x96xf32>
    %204 = vector.extract_strided_slice %195 {offsets = [0, 96], sizes = [2, 32], strides = [1, 1]} : vector<2x128xf32> to vector<2x32xf32>
    %205 = math.tanh %204 : vector<2x32xf32>
    %206 = vector.extract_strided_slice %203 {offsets = [0, 32], sizes = [2, 32], strides = [1, 1]} : vector<2x96xf32> to vector<2x32xf32>
    %207 = arith.mulf %206, %166 : vector<2x32xf32>
    %208 = vector.extract_strided_slice %203 {offsets = [0, 0], sizes = [2, 32], strides = [1, 1]} : vector<2x96xf32> to vector<2x32xf32>
    %209 = arith.mulf %208, %205 : vector<2x32xf32>
    %210 = arith.addf %207, %209 : vector<2x32xf32>
    %211 = vector.extract_strided_slice %203 {offsets = [0, 64], sizes = [2, 32], strides = [1, 1]} : vector<2x96xf32> to vector<2x32xf32>
    %212 = math.tanh %210 : vector<2x32xf32>
    %213 = arith.mulf %211, %212 : vector<2x32xf32>
    %214 = vector.extract_strided_slice %14 {offsets = [0, 5, 0], sizes = [2, 1, 128], strides = [1, 1, 1]} : vector<2x8x128xf32> to vector<2x1x128xf32>
    %215 = vector.shape_cast %214 : vector<2x1x128xf32> to vector<2x128xf32>
    %cst_57 = arith.constant dense<0.000000e+00> : vector<2x128xf32>
    %216 = tpu.matmul %191, %1, %cst_57 {dimension_numbers = #tpu.dot_dimension_numbers<[1], [0], [0], [1], [0, 0, 1, 1], [], []>} : vector<2x32xf32>, vector<32x128xf32>, vector<2x128xf32> -> vector<2x128xf32>
    %217 = arith.addf %215, %216 : vector<2x128xf32>
    %218 = vector.extract_strided_slice %217 {offsets = [0, 0], sizes = [2, 96], strides = [1, 1]} : vector<2x128xf32> to vector<2x96xf32>
    %cst_58 = arith.constant 5.000000e-01 : f32
    %219 = vector.broadcast %cst_58 : f32 to vector<2x96xf32>
    %220 = arith.mulf %219, %218 : vector<2x96xf32>
    %221 = math.tanh %220 : vector<2x96xf32>
    %cst_59 = arith.constant 5.000000e-01 : f32
    %222 = vector.broadcast %cst_59 : f32 to vector<2x96xf32>
    %223 = arith.mulf %222, %221 : vector<2x96xf32>
    %cst_60 = arith.constant 5.000000e-01 : f32
    %224 = vector.broadcast %cst_60 : f32 to vector<2x96xf32>
    %225 = arith.addf %223, %224 : vector<2x96xf32>
    %226 = vector.extract_strided_slice %217 {offsets = [0, 96], sizes = [2, 32], strides = [1, 1]} : vector<2x128xf32> to vector<2x32xf32>
    %227 = math.tanh %226 : vector<2x32xf32>
    %228 = vector.extract_strided_slice %225 {offsets = [0, 32], sizes = [2, 32], strides = [1, 1]} : vector<2x96xf32> to vector<2x32xf32>
    %229 = arith.mulf %228, %188 : vector<2x32xf32>
    %230 = vector.extract_strided_slice %225 {offsets = [0, 0], sizes = [2, 32], strides = [1, 1]} : vector<2x96xf32> to vector<2x32xf32>
    %231 = arith.mulf %230, %227 : vector<2x32xf32>
    %232 = arith.addf %229, %231 : vector<2x32xf32>
    %233 = vector.extract_strided_slice %225 {offsets = [0, 64], sizes = [2, 32], strides = [1, 1]} : vector<2x96xf32> to vector<2x32xf32>
    %234 = math.tanh %232 : vector<2x32xf32>
    %235 = arith.mulf %233, %234 : vector<2x32xf32>
    %236 = tpu.concatenate %191, %213 in 1 : vector<2x32xf32>, vector<2x32xf32> -> vector<2x64xf32>
    %cst_61 = arith.constant dense<0.000000e+00> : vector<2x128xf32>
    %237 = tpu.matmul %236, %3, %cst_61 {dimension_numbers = #tpu.dot_dimension_numbers<[1], [0], [0], [1], [0, 0, 1, 1], [], []>} : vector<2x64xf32>, vector<64x128xf32>, vector<2x128xf32> -> vector<2x128xf32>
    %238 = vector.broadcast %4 : vector<1x128xf32> to vector<2x128xf32>
    %239 = arith.addf %237, %238 : vector<2x128xf32>
    %240 = vector.extract_strided_slice %239 {offsets = [0, 0], sizes = [2, 96], strides = [1, 1]} : vector<2x128xf32> to vector<2x96xf32>
    %cst_62 = arith.constant 5.000000e-01 : f32
    %241 = vector.broadcast %cst_62 : f32 to vector<2x96xf32>
    %242 = arith.mulf %241, %240 : vector<2x96xf32>
    %243 = math.tanh %242 : vector<2x96xf32>
    %cst_63 = arith.constant 5.000000e-01 : f32
    %244 = vector.broadcast %cst_63 : f32 to vector<2x96xf32>
    %245 = arith.mulf %244, %243 : vector<2x96xf32>
    %cst_64 = arith.constant 5.000000e-01 : f32
    %246 = vector.broadcast %cst_64 : f32 to vector<2x96xf32>
    %247 = arith.addf %245, %246 : vector<2x96xf32>
    %248 = vector.extract_strided_slice %239 {offsets = [0, 96], sizes = [2, 32], strides = [1, 1]} : vector<2x128xf32> to vector<2x32xf32>
    %249 = math.tanh %248 : vector<2x32xf32>
    %250 = vector.extract_strided_slice %247 {offsets = [0, 32], sizes = [2, 32], strides = [1, 1]} : vector<2x96xf32> to vector<2x32xf32>
    %251 = arith.mulf %250, %210 : vector<2x32xf32>
    %252 = vector.extract_strided_slice %247 {offsets = [0, 0], sizes = [2, 32], strides = [1, 1]} : vector<2x96xf32> to vector<2x32xf32>
    %253 = arith.mulf %252, %249 : vector<2x32xf32>
    %254 = arith.addf %251, %253 : vector<2x32xf32>
    %255 = vector.extract_strided_slice %247 {offsets = [0, 64], sizes = [2, 32], strides = [1, 1]} : vector<2x96xf32> to vector<2x32xf32>
    %256 = math.tanh %254 : vector<2x32xf32>
    %257 = arith.mulf %255, %256 : vector<2x32xf32>
    %258 = vector.extract_strided_slice %14 {offsets = [0, 6, 0], sizes = [2, 1, 128], strides = [1, 1, 1]} : vector<2x8x128xf32> to vector<2x1x128xf32>
    %259 = vector.shape_cast %258 : vector<2x1x128xf32> to vector<2x128xf32>
    %cst_65 = arith.constant dense<0.000000e+00> : vector<2x128xf32>
    %260 = tpu.matmul %235, %1, %cst_65 {dimension_numbers = #tpu.dot_dimension_numbers<[1], [0], [0], [1], [0, 0, 1, 1], [], []>} : vector<2x32xf32>, vector<32x128xf32>, vector<2x128xf32> -> vector<2x128xf32>
    %261 = arith.addf %259, %260 : vector<2x128xf32>
    %262 = vector.extract_strided_slice %261 {offsets = [0, 0], sizes = [2, 96], strides = [1, 1]} : vector<2x128xf32> to vector<2x96xf32>
    %cst_66 = arith.constant 5.000000e-01 : f32
    %263 = vector.broadcast %cst_66 : f32 to vector<2x96xf32>
    %264 = arith.mulf %263, %262 : vector<2x96xf32>
    %265 = math.tanh %264 : vector<2x96xf32>
    %cst_67 = arith.constant 5.000000e-01 : f32
    %266 = vector.broadcast %cst_67 : f32 to vector<2x96xf32>
    %267 = arith.mulf %266, %265 : vector<2x96xf32>
    %cst_68 = arith.constant 5.000000e-01 : f32
    %268 = vector.broadcast %cst_68 : f32 to vector<2x96xf32>
    %269 = arith.addf %267, %268 : vector<2x96xf32>
    %270 = vector.extract_strided_slice %261 {offsets = [0, 96], sizes = [2, 32], strides = [1, 1]} : vector<2x128xf32> to vector<2x32xf32>
    %271 = math.tanh %270 : vector<2x32xf32>
    %272 = vector.extract_strided_slice %269 {offsets = [0, 32], sizes = [2, 32], strides = [1, 1]} : vector<2x96xf32> to vector<2x32xf32>
    %273 = arith.mulf %272, %232 : vector<2x32xf32>
    %274 = vector.extract_strided_slice %269 {offsets = [0, 0], sizes = [2, 32], strides = [1, 1]} : vector<2x96xf32> to vector<2x32xf32>
    %275 = arith.mulf %274, %271 : vector<2x32xf32>
    %276 = arith.addf %273, %275 : vector<2x32xf32>
    %277 = vector.extract_strided_slice %269 {offsets = [0, 64], sizes = [2, 32], strides = [1, 1]} : vector<2x96xf32> to vector<2x32xf32>
    %278 = math.tanh %276 : vector<2x32xf32>
    %279 = arith.mulf %277, %278 : vector<2x32xf32>
    %280 = tpu.concatenate %235, %257 in 1 : vector<2x32xf32>, vector<2x32xf32> -> vector<2x64xf32>
    %cst_69 = arith.constant dense<0.000000e+00> : vector<2x128xf32>
    %281 = tpu.matmul %280, %3, %cst_69 {dimension_numbers = #tpu.dot_dimension_numbers<[1], [0], [0], [1], [0, 0, 1, 1], [], []>} : vector<2x64xf32>, vector<64x128xf32>, vector<2x128xf32> -> vector<2x128xf32>
    %282 = vector.broadcast %4 : vector<1x128xf32> to vector<2x128xf32>
    %283 = arith.addf %281, %282 : vector<2x128xf32>
    %284 = vector.extract_strided_slice %283 {offsets = [0, 0], sizes = [2, 96], strides = [1, 1]} : vector<2x128xf32> to vector<2x96xf32>
    %cst_70 = arith.constant 5.000000e-01 : f32
    %285 = vector.broadcast %cst_70 : f32 to vector<2x96xf32>
    %286 = arith.mulf %285, %284 : vector<2x96xf32>
    %287 = math.tanh %286 : vector<2x96xf32>
    %cst_71 = arith.constant 5.000000e-01 : f32
    %288 = vector.broadcast %cst_71 : f32 to vector<2x96xf32>
    %289 = arith.mulf %288, %287 : vector<2x96xf32>
    %cst_72 = arith.constant 5.000000e-01 : f32
    %290 = vector.broadcast %cst_72 : f32 to vector<2x96xf32>
    %291 = arith.addf %289, %290 : vector<2x96xf32>
    %292 = vector.extract_strided_slice %283 {offsets = [0, 96], sizes = [2, 32], strides = [1, 1]} : vector<2x128xf32> to vector<2x32xf32>
    %293 = math.tanh %292 : vector<2x32xf32>
    %294 = vector.extract_strided_slice %291 {offsets = [0, 32], sizes = [2, 32], strides = [1, 1]} : vector<2x96xf32> to vector<2x32xf32>
    %295 = arith.mulf %294, %254 : vector<2x32xf32>
    %296 = vector.extract_strided_slice %291 {offsets = [0, 0], sizes = [2, 32], strides = [1, 1]} : vector<2x96xf32> to vector<2x32xf32>
    %297 = arith.mulf %296, %293 : vector<2x32xf32>
    %298 = arith.addf %295, %297 : vector<2x32xf32>
    %299 = vector.extract_strided_slice %291 {offsets = [0, 64], sizes = [2, 32], strides = [1, 1]} : vector<2x96xf32> to vector<2x32xf32>
    %300 = math.tanh %298 : vector<2x32xf32>
    %301 = arith.mulf %299, %300 : vector<2x32xf32>
    %302 = vector.extract_strided_slice %14 {offsets = [0, 7, 0], sizes = [2, 1, 128], strides = [1, 1, 1]} : vector<2x8x128xf32> to vector<2x1x128xf32>
    %303 = vector.shape_cast %302 : vector<2x1x128xf32> to vector<2x128xf32>
    %cst_73 = arith.constant dense<0.000000e+00> : vector<2x128xf32>
    %304 = tpu.matmul %279, %1, %cst_73 {dimension_numbers = #tpu.dot_dimension_numbers<[1], [0], [0], [1], [0, 0, 1, 1], [], []>} : vector<2x32xf32>, vector<32x128xf32>, vector<2x128xf32> -> vector<2x128xf32>
    %305 = arith.addf %303, %304 : vector<2x128xf32>
    %306 = vector.extract_strided_slice %305 {offsets = [0, 0], sizes = [2, 96], strides = [1, 1]} : vector<2x128xf32> to vector<2x96xf32>
    %cst_74 = arith.constant 5.000000e-01 : f32
    %307 = vector.broadcast %cst_74 : f32 to vector<2x96xf32>
    %308 = arith.mulf %307, %306 : vector<2x96xf32>
    %309 = math.tanh %308 : vector<2x96xf32>
    %cst_75 = arith.constant 5.000000e-01 : f32
    %310 = vector.broadcast %cst_75 : f32 to vector<2x96xf32>
    %311 = arith.mulf %310, %309 : vector<2x96xf32>
    %cst_76 = arith.constant 5.000000e-01 : f32
    %312 = vector.broadcast %cst_76 : f32 to vector<2x96xf32>
    %313 = arith.addf %311, %312 : vector<2x96xf32>
    %314 = vector.extract_strided_slice %305 {offsets = [0, 96], sizes = [2, 32], strides = [1, 1]} : vector<2x128xf32> to vector<2x32xf32>
    %315 = math.tanh %314 : vector<2x32xf32>
    %316 = vector.extract_strided_slice %313 {offsets = [0, 32], sizes = [2, 32], strides = [1, 1]} : vector<2x96xf32> to vector<2x32xf32>
    %317 = arith.mulf %316, %276 : vector<2x32xf32>
    %318 = vector.extract_strided_slice %313 {offsets = [0, 0], sizes = [2, 32], strides = [1, 1]} : vector<2x96xf32> to vector<2x32xf32>
    %319 = arith.mulf %318, %315 : vector<2x32xf32>
    %320 = arith.addf %317, %319 : vector<2x32xf32>
    %321 = vector.extract_strided_slice %313 {offsets = [0, 64], sizes = [2, 32], strides = [1, 1]} : vector<2x96xf32> to vector<2x32xf32>
    %322 = math.tanh %320 : vector<2x32xf32>
    %323 = arith.mulf %321, %322 : vector<2x32xf32>
    %324 = tpu.concatenate %279, %301 in 1 : vector<2x32xf32>, vector<2x32xf32> -> vector<2x64xf32>
    %cst_77 = arith.constant dense<0.000000e+00> : vector<2x128xf32>
    %325 = tpu.matmul %324, %3, %cst_77 {dimension_numbers = #tpu.dot_dimension_numbers<[1], [0], [0], [1], [0, 0, 1, 1], [], []>} : vector<2x64xf32>, vector<64x128xf32>, vector<2x128xf32> -> vector<2x128xf32>
    %326 = vector.broadcast %4 : vector<1x128xf32> to vector<2x128xf32>
    %327 = arith.addf %325, %326 : vector<2x128xf32>
    %328 = vector.extract_strided_slice %327 {offsets = [0, 0], sizes = [2, 96], strides = [1, 1]} : vector<2x128xf32> to vector<2x96xf32>
    %cst_78 = arith.constant 5.000000e-01 : f32
    %329 = vector.broadcast %cst_78 : f32 to vector<2x96xf32>
    %330 = arith.mulf %329, %328 : vector<2x96xf32>
    %331 = math.tanh %330 : vector<2x96xf32>
    %cst_79 = arith.constant 5.000000e-01 : f32
    %332 = vector.broadcast %cst_79 : f32 to vector<2x96xf32>
    %333 = arith.mulf %332, %331 : vector<2x96xf32>
    %cst_80 = arith.constant 5.000000e-01 : f32
    %334 = vector.broadcast %cst_80 : f32 to vector<2x96xf32>
    %335 = arith.addf %333, %334 : vector<2x96xf32>
    %336 = vector.extract_strided_slice %327 {offsets = [0, 96], sizes = [2, 32], strides = [1, 1]} : vector<2x128xf32> to vector<2x32xf32>
    %337 = math.tanh %336 : vector<2x32xf32>
    %338 = vector.extract_strided_slice %335 {offsets = [0, 32], sizes = [2, 32], strides = [1, 1]} : vector<2x96xf32> to vector<2x32xf32>
    %339 = arith.mulf %338, %298 : vector<2x32xf32>
    %340 = vector.extract_strided_slice %335 {offsets = [0, 0], sizes = [2, 32], strides = [1, 1]} : vector<2x96xf32> to vector<2x32xf32>
    %341 = arith.mulf %340, %337 : vector<2x32xf32>
    %342 = arith.addf %339, %341 : vector<2x32xf32>
    %343 = vector.extract_strided_slice %335 {offsets = [0, 64], sizes = [2, 32], strides = [1, 1]} : vector<2x96xf32> to vector<2x32xf32>
    %344 = math.tanh %342 : vector<2x32xf32>
    %345 = arith.mulf %343, %344 : vector<2x32xf32>
    %346 = tpu.concatenate %323, %345 in 1 : vector<2x32xf32>, vector<2x32xf32> -> vector<2x64xf32>
    %cst_81 = arith.constant dense<0.000000e+00> : vector<2x128xf32>
    %347 = tpu.matmul %346, %3, %cst_81 {dimension_numbers = #tpu.dot_dimension_numbers<[1], [0], [0], [1], [0, 0, 1, 1], [], []>} : vector<2x64xf32>, vector<64x128xf32>, vector<2x128xf32> -> vector<2x128xf32>
    %348 = vector.broadcast %4 : vector<1x128xf32> to vector<2x128xf32>
    %349 = arith.addf %347, %348 : vector<2x128xf32>
    %350 = vector.extract_strided_slice %349 {offsets = [0, 0], sizes = [2, 96], strides = [1, 1]} : vector<2x128xf32> to vector<2x96xf32>
    %cst_82 = arith.constant 5.000000e-01 : f32
    %351 = vector.broadcast %cst_82 : f32 to vector<2x96xf32>
    %352 = arith.mulf %351, %350 : vector<2x96xf32>
    %353 = math.tanh %352 : vector<2x96xf32>
    %cst_83 = arith.constant 5.000000e-01 : f32
    %354 = vector.broadcast %cst_83 : f32 to vector<2x96xf32>
    %355 = arith.mulf %354, %353 : vector<2x96xf32>
    %cst_84 = arith.constant 5.000000e-01 : f32
    %356 = vector.broadcast %cst_84 : f32 to vector<2x96xf32>
    %357 = arith.addf %355, %356 : vector<2x96xf32>
    %358 = vector.extract_strided_slice %349 {offsets = [0, 96], sizes = [2, 32], strides = [1, 1]} : vector<2x128xf32> to vector<2x32xf32>
    %359 = math.tanh %358 : vector<2x32xf32>
    %360 = vector.extract_strided_slice %357 {offsets = [0, 32], sizes = [2, 32], strides = [1, 1]} : vector<2x96xf32> to vector<2x32xf32>
    %361 = arith.mulf %360, %342 : vector<2x32xf32>
    %362 = vector.extract_strided_slice %357 {offsets = [0, 0], sizes = [2, 32], strides = [1, 1]} : vector<2x96xf32> to vector<2x32xf32>
    %363 = arith.mulf %362, %359 : vector<2x32xf32>
    %364 = arith.addf %361, %363 : vector<2x32xf32>
    %365 = vector.extract_strided_slice %357 {offsets = [0, 64], sizes = [2, 32], strides = [1, 1]} : vector<2x96xf32> to vector<2x32xf32>
    %366 = math.tanh %364 : vector<2x32xf32>
    %367 = arith.mulf %365, %366 : vector<2x32xf32>
    %368 = vector.shape_cast %81 : vector<2x32xf32> to vector<2x1x32xf32>
    %369 = vector.shape_cast %125 : vector<2x32xf32> to vector<2x1x32xf32>
    %370 = vector.shape_cast %169 : vector<2x32xf32> to vector<2x1x32xf32>
    %371 = vector.shape_cast %213 : vector<2x32xf32> to vector<2x1x32xf32>
    %372 = vector.shape_cast %257 : vector<2x32xf32> to vector<2x1x32xf32>
    %373 = vector.shape_cast %301 : vector<2x32xf32> to vector<2x1x32xf32>
    %374 = vector.shape_cast %345 : vector<2x32xf32> to vector<2x1x32xf32>
    %375 = vector.shape_cast %367 : vector<2x32xf32> to vector<2x1x32xf32>
    %376 = tpu.concatenate %368, %369, %370, %371, %372, %373, %374, %375 in 1 : vector<2x1x32xf32>, vector<2x1x32xf32>, vector<2x1x32xf32>, vector<2x1x32xf32>, vector<2x1x32xf32>, vector<2x1x32xf32>, vector<2x1x32xf32>, vector<2x1x32xf32> -> vector<2x8x32xf32>
    %cst_85 = arith.constant dense<0.000000e+00> : vector<2x8xf32>
    %377 = tpu.matmul %367, %5, %cst_85 {dimension_numbers = #tpu.dot_dimension_numbers<[1], [0], [0], [1], [0, 0, 1, 1], [], []>} : vector<2x32xf32>, vector<32x8xf32>, vector<2x8xf32> -> vector<2x8xf32>
    %378 = vector.shape_cast %377 : vector<2x8xf32> to vector<2x8x1xf32>
    %379 = vector.broadcast %378 : vector<2x8x1xf32> to vector<2x8x32xf32>
    %380 = arith.mulf %376, %379 : vector<2x8x32xf32>
    %cst_86 = arith.constant dense<0.000000e+00> : vector<2x32xf32>
    %381 = vector.multi_reduction <add>, %380, %cst_86 [1] : vector<2x8x32xf32> to vector<2x32xf32>
    %cst_87 = arith.constant 5.000000e-01 : f32
    %382 = vector.broadcast %cst_87 : f32 to vector<2x32xf32>
    %383 = arith.mulf %382, %381 : vector<2x32xf32>
    %384 = math.tanh %383 : vector<2x32xf32>
    %cst_88 = arith.constant 5.000000e-01 : f32
    %385 = vector.broadcast %cst_88 : f32 to vector<2x32xf32>
    %386 = arith.mulf %385, %384 : vector<2x32xf32>
    %cst_89 = arith.constant 5.000000e-01 : f32
    %387 = vector.broadcast %cst_89 : f32 to vector<2x32xf32>
    %388 = arith.addf %386, %387 : vector<2x32xf32>
    %389 = vector.shape_cast %388 : vector<2x32xf32> to vector<2x1x32xf32>
    %390 = vector.broadcast %389 : vector<2x1x32xf32> to vector<2x8x32xf32>
    %391 = arith.mulf %376, %390 : vector<2x8x32xf32>
    %cst_90 = arith.constant dense<0.000000e+00> : vector<2x8xf32>
    %392 = vector.multi_reduction <add>, %391, %cst_90 [2] : vector<2x8x32xf32> to vector<2x8xf32>
    %cst_91 = arith.constant dense<0.000000e+00> : vector<2x4xf32>
    %393 = tpu.matmul %392, %6, %cst_91 {dimension_numbers = #tpu.dot_dimension_numbers<[1], [0], [0], [1], [0, 0, 1, 1], [], []>} : vector<2x8xf32>, vector<8x4xf32>, vector<2x4xf32> -> vector<2x4xf32>
    %cst_92 = arith.constant dense<0.000000e+00> : vector<2x4xf32>
    %394 = tpu.matmul %367, %7, %cst_92 {dimension_numbers = #tpu.dot_dimension_numbers<[1], [0], [0], [1], [0, 0, 1, 1], [], []>} : vector<2x32xf32>, vector<32x4xf32>, vector<2x4xf32> -> vector<2x4xf32>
    %395 = arith.addf %393, %394 : vector<2x4xf32>
    %396 = vector.broadcast %8 : vector<1x4xf32> to vector<2x4xf32>
    %397 = arith.addf %395, %396 : vector<2x4xf32>
    %c0_93 = arith.constant 0 : index
    %c0_94 = arith.constant 0 : index
    %398 = vector.load %arg11[%c0_93, %c0_94] : memref<2x4xf32, #tpu.memory_space<vmem>>, vector<2x4xf32>
    tpu.vector_store %arg11[%c0_93, %c0_94], %397 {strides = array<i32>} : memref<2x4xf32, #tpu.memory_space<vmem>>, vector<2x4xf32>,
    return
  }
  func.func @transform_0(%arg0: i32) -> (i32, i32, i32) {
    %c0_i32 = arith.constant 0 : i32
    %c0_i32_0 = arith.constant 0 : i32
    %c0_i32_1 = arith.constant 0 : i32
    return %arg0, %c0_i32, %c0_i32_0 : i32, i32, i32
  }
  func.func @transform_1(%arg0: i32) -> (i32, i32) {
    %c0_i32 = arith.constant 0 : i32
    %c0_i32_0 = arith.constant 0 : i32
    %c0_i32_1 = arith.constant 0 : i32
    return %c0_i32, %c0_i32_0 : i32, i32
  }
  func.func @transform_2(%arg0: i32) -> (i32, i32) {
    %c0_i32 = arith.constant 0 : i32
    %c0_i32_0 = arith.constant 0 : i32
    %c0_i32_1 = arith.constant 0 : i32
    return %c0_i32, %c0_i32_0 : i32, i32
  }
  func.func @transform_3(%arg0: i32) -> (i32, i32) {
    %c0_i32 = arith.constant 0 : i32
    %c0_i32_0 = arith.constant 0 : i32
    %c0_i32_1 = arith.constant 0 : i32
    return %c0_i32, %c0_i32_0 : i32, i32
  }
  func.func @transform_4(%arg0: i32) -> (i32, i32) {
    %c0_i32 = arith.constant 0 : i32
    %c0_i32_0 = arith.constant 0 : i32
    %c0_i32_1 = arith.constant 0 : i32
    return %c0_i32, %c0_i32_0 : i32, i32
  }
  func.func @transform_5(%arg0: i32) -> (i32, i32) {
    %c0_i32 = arith.constant 0 : i32
    %c0_i32_0 = arith.constant 0 : i32
    %c0_i32_1 = arith.constant 0 : i32
    return %c0_i32, %c0_i32_0 : i32, i32
  }
  func.func @transform_6(%arg0: i32) -> (i32, i32) {
    %c0_i32 = arith.constant 0 : i32
    %c0_i32_0 = arith.constant 0 : i32
    %c0_i32_1 = arith.constant 0 : i32
    return %c0_i32, %c0_i32_0 : i32, i32
  }
  func.func @transform_7(%arg0: i32) -> (i32, i32) {
    %c0_i32 = arith.constant 0 : i32
    %c0_i32_0 = arith.constant 0 : i32
    %c0_i32_1 = arith.constant 0 : i32
    return %c0_i32, %c0_i32_0 : i32, i32
  }
  func.func @transform_8(%arg0: i32) -> (i32, i32) {
    %c0_i32 = arith.constant 0 : i32
    %c0_i32_0 = arith.constant 0 : i32
    %c0_i32_1 = arith.constant 0 : i32
    return %c0_i32, %c0_i32_0 : i32, i32
  }
  func.func @transform_9(%arg0: i32) -> (i32, i32) {
    %c0_i32 = arith.constant 0 : i32
    %c0_i32_0 = arith.constant 0 : i32
    %c0_i32_1 = arith.constant 0 : i32
    return %c0_i32, %c0_i32_0 : i32, i32
  }
  func.func @transform_10(%arg0: i32) -> (i32, i32) {
    %c0_i32 = arith.constant 0 : i32
    %c0_i32_0 = arith.constant 0 : i32
    return %arg0, %c0_i32 : i32, i32
  }
}

</mosaic_0001>

<llo_original>
// kernel: tpu_custom_call.1
$region0: #{tpu_custom_call.1}
  #allocation0 [shape = 'u32[]', space=smem, size = 0x4, offset = 0x4, fixed_abs, tag = 'smem constant byte address 0x4 - core index']
  #allocation1 [shape = 'u32[144,128]{1,0:T(1,128)}', space=vmem, size = 0x12000, scoped, tag = 'internal scratch']
  %s0 = inlined_call_operand.vmem [shape: f32[2,8,4], index: 0, kind: input, shape index: {}]
  %s1 = inlined_call_operand.vmem [shape: f32[4,128], index: 1, kind: input, shape index: {}]
  %s2 = inlined_call_operand.vmem [shape: f32[32,128], index: 2, kind: input, shape index: {}]
  %s3 = inlined_call_operand.vmem [shape: f32[1,128], index: 3, kind: input, shape index: {}]
  %s4 = inlined_call_operand.vmem [shape: f32[64,128], index: 4, kind: input, shape index: {}]
  %s5 = inlined_call_operand.vmem [shape: f32[1,128], index: 5, kind: input, shape index: {}]
  %s6 = inlined_call_operand.vmem [shape: f32[32,8], index: 6, kind: input, shape index: {}]
  %s7 = inlined_call_operand.vmem [shape: f32[8,4], index: 7, kind: input, shape index: {}]
  %s8 = inlined_call_operand.vmem [shape: f32[32,4], index: 8, kind: input, shape index: {}]
  %s9 = inlined_call_operand.vmem [shape: f32[1,4], index: 9, kind: input, shape index: {}]
  %s10 = inlined_call_operand.hbm [shape: f32[2,4], index: 10, kind: output, shape index: {}]
  %s11 = sld [smem:[#allocation0]]
  $region50: #{tpu_custom_call.1} parent=0
    _
  %s13 = ssub.s32 1, %s11
  %s14 = scalar_select 0, %s13, %s11
  $region1: #{tpu_custom_call.1} parent=0
    #allocation2 [shape = 'u8[1024]{0}', space=vmem, size = 0x400, scoped, tag = 'output window, operand 0, single buffered']
    #allocation3 [shape = 's32[1]{0}', space=sflag, size = 0x4, scoped, tag = 'scoped memory for tpu_custom_call.1']
    %15 = vsyncpa [#allocation3], 0
    // Predicated region
    $region2: #{tpu_custom_call.1} parent=1 // pred_check
      _
    $region3: #{tpu_custom_call.1} parent=1 // pred_check_branch
      %17 = sbr.rel (0) target = $region5
    $region4: #{tpu_custom_call.1} parent=1 // pred_region
      _
    $region5: #{tpu_custom_call.1} parent=1 // pred_fallthru
      _
    // Predicated region
    $region6: #{tpu_custom_call.1} parent=1 // pred_check
      _
    $region7: #{tpu_custom_call.1} parent=1 // pred_check_branch
      %19 = sbr.rel (0) target = $region9
    $region8: #{tpu_custom_call.1} parent=1 // pred_region
      _
    $region9: #{tpu_custom_call.1} parent=1 // pred_fallthru
      _
    // Predicated region
    $region10: #{tpu_custom_call.1} parent=1 // pred_check
      _
    $region11: #{tpu_custom_call.1} parent=1 // pred_check_branch
      %21 = sbr.rel (0) target = $region13
    $region12: #{tpu_custom_call.1} parent=1 // pred_region
      _
    $region13: #{tpu_custom_call.1} parent=1 // pred_fallthru
      _
    // Predicated region
    $region14: #{tpu_custom_call.1} parent=1 // pred_check
      _
    $region15: #{tpu_custom_call.1} parent=1 // pred_check_branch
      %23 = sbr.rel (0) target = $region17
    $region16: #{tpu_custom_call.1} parent=1 // pred_region
      _
    $region17: #{tpu_custom_call.1} parent=1 // pred_fallthru
      _
    // Predicated region
    $region18: #{tpu_custom_call.1} parent=1 // pred_check
      _
    $region19: #{tpu_custom_call.1} parent=1 // pred_check_branch
      %25 = sbr.rel (0) target = $region21
    $region20: #{tpu_custom_call.1} parent=1 // pred_region
      _
    $region21: #{tpu_custom_call.1} parent=1 // pred_fallthru
      _
    // Predicated region
    $region22: #{tpu_custom_call.1} parent=1 // pred_check
      _
    $region23: #{tpu_custom_call.1} parent=1 // pred_check_branch
      %27 = sbr.rel (0) target = $region25
    $region24: #{tpu_custom_call.1} parent=1 // pred_region
      _
    $region25: #{tpu_custom_call.1} parent=1 // pred_fallthru
      _
    // Predicated region
    $region26: #{tpu_custom_call.1} parent=1 // pred_check
      _
    $region27: #{tpu_custom_call.1} parent=1 // pred_check_branch
      %29 = sbr.rel (0) target = $region29
    $region28: #{tpu_custom_call.1} parent=1 // pred_region
      _
    $region29: #{tpu_custom_call.1} parent=1 // pred_fallthru
      _
    // Predicated region
    $region30: #{tpu_custom_call.1} parent=1 // pred_check
      _
    $region31: #{tpu_custom_call.1} parent=1 // pred_check_branch
      %31 = sbr.rel (0) target = $region33
    $region32: #{tpu_custom_call.1} parent=1 // pred_region
      _
    $region33: #{tpu_custom_call.1} parent=1 // pred_fallthru
      _
    // Predicated region
    $region34: #{tpu_custom_call.1} parent=1 // pred_check
      _
    $region35: #{tpu_custom_call.1} parent=1 // pred_check_branch
      %33 = sbr.rel (0) target = $region37
    $region36: #{tpu_custom_call.1} parent=1 // pred_region
      _
    $region37: #{tpu_custom_call.1} parent=1 // pred_fallthru
      _
    // Predicated region
    $region38: #{tpu_custom_call.1} parent=1 // pred_check
      _
    $region39: #{tpu_custom_call.1} parent=1 // pred_check_branch
      %35 = sbr.rel (0) target = $region41
    $region40: #{tpu_custom_call.1} parent=1 // pred_region
      _
    $region41: #{tpu_custom_call.1} parent=1 // pred_fallthru
      _
    %v36 = vld [vmem:[%s1] sm:$0xf]
    %v37 = vld [vmem:[%s2] sm:$0xff]
    %v38 = vld [vmem:[%s2 + $0x8] sm:$0xff]
    %v39 = vld [vmem:[%s2 + $0x10] sm:$0xff]
    %v40 = vld [vmem:[%s2 + $0x18] sm:$0xff]
    %v41 = vld [vmem:[%s3] sm:$0x1]
    %v42 = vld [vmem:[%s4] sm:$0xff]
    %v43 = vld [vmem:[%s4 + $0x8] sm:$0xff]
    %v44 = vld [vmem:[%s4 + $0x10] sm:$0xff]
    %v45 = vld [vmem:[%s4 + $0x18] sm:$0xff]
    %v46 = vld [vmem:[%s4 + $0x20] sm:$0xff]
    %v47 = vld [vmem:[%s4 + $0x28] sm:$0xff]
    %v48 = vld [vmem:[%s4 + $0x30] sm:$0xff]
    %v49 = vld [vmem:[%s4 + $0x38] sm:$0xff]
    %v50 = vld [vmem:[%s5] sm:$0x1]
    %v51 = vld [vmem:[%s6] sm:$0xff]
    %v52 = vld [vmem:[%s6 + $0x8] sm:$0xff]
    %v53 = vld [vmem:[%s6 + $0x10] sm:$0xff]
    %v54 = vld [vmem:[%s6 + $0x18] sm:$0xff]
    %v55 = vld [vmem:[%s7] sm:$0xff]
    %v56 = vld [vmem:[%s8] sm:$0xff]
    %v57 = vld [vmem:[%s8 + $0x8] sm:$0xff]
    %v58 = vld [vmem:[%s8 + $0x10] sm:$0xff]
    %v59 = vld [vmem:[%s8 + $0x18] sm:$0xff]
    %v60 = vld [vmem:[%s9] sm:$0x1]
    %v61 = vld [vmem:[%s0] sm:$0xff]
    %v62 = vld [vmem:[%s0 + $0x8] sm:$0xff]
    %v64 = vlaneseq
    %v65 = vshrl.u32 %v64, 7
    %v66 = vsub.s32 0, %v65
    %v67 = vrot.slane %v41, %v66
    %vm69 = vcmask 31744
    %v71 = vsel %vm69, %v61, 0
    %v74 = vsel %vm69, %v62, 0
    %vm76 = vcmask 1043456
    %v78 = vsel %vm76, %v36, 0
    %80 = vmatprep.subr.mxu0 0.0
    %81 = vmatpush1.msra.mxu0 0.0
    %82 = vmatprep.subr.mxu0 0.0
    %83 = vmatpush1.msra.mxu0 0.0
    %84 = vmatprep.subr.mxu0 0.0
    %85 = vmatpush1.msra.mxu0 0.0
    %86 = vmatprep.subr.mxu0 0.0
    %87 = vmatpush1.msra.mxu0 0.0
    %88 = vmatprep.subr.mxu0 0.0
    %89 = vmatpush1.msra.mxu0 0.0
    %90 = vmatprep.subr.mxu0 0.0
    %91 = vmatpush1.msra.mxu0 0.0
    %92 = vmatprep.subr.mxu0 0.0
    %93 = vmatpush1.msra.mxu0 0.0
    %94 = vmatprep.subr.mxu0 0.0
    %95 = vmatpush1.msra.mxu0 0.0
    %96 = vmatprep.subr.mxu0 0.0
    %97 = vmatpush1.msra.mxu0 0.0
    %98 = vmatprep.subr.mxu0 0.0
    %99 = vmatpush1.msra.mxu0 0.0
    %100 = vmatprep.subr.mxu0 0.0
    %101 = vmatpush1.msra.mxu0 0.0
    %102 = vmatprep.subr.mxu0 0.0
    %103 = vmatpush1.msra.mxu0 0.0
    %104 = vmatprep.subr.mxu0 0.0
    %105 = vmatpush1.msra.mxu0 0.0
    %106 = vmatprep.subr.mxu0 0.0
    %107 = vmatpush1.msra.mxu0 0.0
    %108 = vmatprep.subr.mxu0 0.0
    %109 = vmatpush1.msra.mxu0 0.0
    %110 = vmatprep.subr.mxu0 0.0
    %111 = vmatpush1.msra.mxu0 %v78
    %112 = vmatprep.subr.mxu0 0.0
    %113 = vmatpush2.msra.mxu0 0.0
    %114 = vmatprep.subr.mxu0 0.0
    %115 = vmatpush2.msra.mxu0 0.0
    %116 = vmatprep.subr.mxu0 0.0
    %117 = vmatpush2.msra.mxu0 0.0
    %118 = vmatprep.subr.mxu0 0.0
    %119 = vmatpush2.msra.mxu0 0.0
    %120 = vmatprep.subr.mxu0 0.0
    %121 = vmatpush2.msra.mxu0 0.0
    %122 = vmatprep.subr.mxu0 0.0
    %123 = vmatpush2.msra.mxu0 0.0
    %124 = vmatprep.subr.mxu0 0.0
    %125 = vmatpush2.msra.mxu0 0.0
    %126 = vmatprep.subr.mxu0 0.0
    %127 = vmatpush2.msra.mxu0 0.0
    %128 = vmatprep.subr.mxu0 0.0
    %129 = vmatpush2.msra.mxu0 0.0
    %130 = vmatprep.subr.mxu0 0.0
    %131 = vmatpush2.msra.mxu0 0.0
    %132 = vmatprep.subr.mxu0 0.0
    %133 = vmatpush2.msra.mxu0 0.0
    %134 = vmatprep.subr.mxu0 0.0
    %135 = vmatpush2.msra.mxu0 0.0
    %136 = vmatprep.subr.mxu0 0.0
    %137 = vmatpush2.msra.mxu0 0.0
    %138 = vmatprep.subr.mxu0 0.0
    %139 = vmatpush2.msra.mxu0 0.0
    %140 = vmatprep.subr.mxu0 0.0
    %141 = vmatpush2.msra.mxu0 0.0
    %142 = vmatprep.subr.mxu0 0.0
    %143 = vmatpush2.msra.mxu0 0.0
    %144 = vmatprep.mubr.f32.mxu0 0.0
    %145 = vmatmul.mubr.f32.gmra.mxu0 %v71
    %v146 = vpop.f32.mrf.mxu0
    %v147 = vadd.f32 %v67, %v146
    %v148 = vpop.f32.mrf.mxu0
    %149 = vmatprep.mubr.f32.mxu0 0.0
    %150 = vmatmul.mubr.f32.gmra.mxu0 %v74
    %v151 = vpop.f32.mrf.mxu0
    %v152 = vadd.f32 %v67, %v151
    %v153 = vpop.f32.mrf.mxu0
    %154 = vdwg.mxu0
    %vm155 = vcmask 261120
    %v157 = vsel %vm155, 0.0, 0
    %159 = vmatprep.subr.mxu0 0.0
    %160 = vmatpush1.msra.mxu0 0.0
    %161 = vmatprep.subr.mxu0 0.0
    %162 = vmatpush1.msra.mxu0 0.0
    %163 = vmatprep.subr.mxu0 0.0
    %164 = vmatpush1.msra.mxu0 0.0
    %165 = vmatprep.subr.mxu0 0.0
    %166 = vmatpush1.msra.mxu0 0.0
    %167 = vmatprep.subr.mxu0 0.0
    %168 = vmatpush1.msra.mxu0 0.0
    %169 = vmatprep.subr.mxu0 0.0
    %170 = vmatpush1.msra.mxu0 0.0
    %171 = vmatprep.subr.mxu0 0.0
    %172 = vmatpush1.msra.mxu0 0.0
    %173 = vmatprep.subr.mxu0 0.0
    %174 = vmatpush1.msra.mxu0 0.0
    %175 = vmatprep.subr.mxu0 0.0
    %176 = vmatpush1.msra.mxu0 0.0
    %177 = vmatprep.subr.mxu0 0.0
    %178 = vmatpush1.msra.mxu0 0.0
    %179 = vmatprep.subr.mxu0 0.0
    %180 = vmatpush1.msra.mxu0 0.0
    %181 = vmatprep.subr.mxu0 0.0
    %182 = vmatpush1.msra.mxu0 0.0
    %183 = vmatprep.subr.mxu0 0.0
    %184 = vmatpush1.msra.mxu0 %v40
    %185 = vmatprep.subr.mxu0 0.0
    %186 = vmatpush1.msra.mxu0 %v39
    %187 = vmatprep.subr.mxu0 0.0
    %188 = vmatpush1.msra.mxu0 %v38
    %189 = vmatprep.subr.mxu0 0.0
    %190 = vmatpush1.msra.mxu0 %v37
    %191 = vmatprep.subr.mxu0 0.0
    %192 = vmatpush2.msra.mxu0 0.0
    %193 = vmatprep.subr.mxu0 0.0
    %194 = vmatpush2.msra.mxu0 0.0
    %195 = vmatprep.subr.mxu0 0.0
    %196 = vmatpush2.msra.mxu0 0.0
    %197 = vmatprep.subr.mxu0 0.0
    %198 = vmatpush2.msra.mxu0 0.0
    %199 = vmatprep.subr.mxu0 0.0
    %200 = vmatpush2.msra.mxu0 0.0
    %201 = vmatprep.subr.mxu0 0.0
    %202 = vmatpush2.msra.mxu0 0.0
    %203 = vmatprep.subr.mxu0 0.0
    %204 = vmatpush2.msra.mxu0 0.0
    %205 = vmatprep.subr.mxu0 0.0
    %206 = vmatpush2.msra.mxu0 0.0
    %207 = vmatprep.subr.mxu0 0.0
    %208 = vmatpush2.msra.mxu0 0.0
    %209 = vmatprep.subr.mxu0 0.0
    %210 = vmatpush2.msra.mxu0 0.0
    %211 = vmatprep.subr.mxu0 0.0
    %212 = vmatpush2.msra.mxu0 0.0
    %213 = vmatprep.subr.mxu0 0.0
    %214 = vmatpush2.msra.mxu0 0.0
    %215 = vmatprep.subr.mxu0 0.0
    %216 = vmatpush2.msra.mxu0 0.0
    %217 = vmatprep.subr.mxu0 0.0
    %218 = vmatpush2.msra.mxu0 0.0
    %219 = vmatprep.subr.mxu0 0.0
    %220 = vmatpush2.msra.mxu0 0.0
    %221 = vmatprep.subr.mxu0 0.0
    %222 = vmatpush2.msra.mxu0 0.0
    %223 = vmatprep.mubr.f32.mxu0 0.0
    %224 = vmatmul.mubr.f32.gmra.mxu0 %v157
    %v225 = vpop.f32.mrf.mxu0
    %v226 = vadd.f32 0.0, %v225
    %v227 = vpop.f32.mrf.mxu0
    %228 = vdwg.mxu0
    %v230 = vrot.slane %v226, 1
    %v233 = vadd.f32 %v147, %v226
    %v234 = vadd.f32 %v152, %v230
    %v235 = vmul.f32 %v233, 0.5
    %v236 = vmul.f32 %v234, 0.5
    %v237 = vtanh.pop %v235
    %v238 = vtanh.pop %v236
    %v239 = vmul.f32 %v237, 0.5
    %v240 = vmul.f32 %v238, 0.5
    %v241 = vadd.f32 %v239, 0.5
    %v242 = vadd.f32 %v240, 0.5
    %v243 = vtanh.pop %v233
    %v244 = vtanh.pop %v234
    %v245 = vmul.f32 %v241, 0.0
    %v246 = vmul.f32 %v242, 0.0
    %249 = vrot.lane.b32.xlu0 %v243, 32
    %v250 = vpop.permute.xlu0 %249
    %251 = vrot.lane.b32.xlu0 %v244, 32
    %v252 = vpop.permute.xlu0 %251
    %v255 = vmul.f32 %v241, %v250
    %v256 = vmul.f32 %v242, %v252
    %259 = vrot.lane.b32.xlu0 %v255, 32
    %v260 = vpop.permute.xlu0 %259
    %261 = vrot.lane.b32.xlu0 %v256, 32
    %v262 = vpop.permute.xlu0 %261
    %v265 = vadd.f32 %v245, %v260
    %v266 = vadd.f32 %v246, %v262
    %v267 = vtanh.pop %v265
    %v268 = vtanh.pop %v266
    %271 = vrot.lane.b32.xlu0 %v267, 32
    %v272 = vpop.permute.xlu0 %271
    %273 = vrot.lane.b32.xlu0 %v268, 32
    %v274 = vpop.permute.xlu0 %273
    %v277 = vmul.f32 %v241, %v272
    %v278 = vmul.f32 %v242, %v274
    %v281 = vrot.slane %v278, 7
    %vm282 = vcmask 1041409
    %v283 = vsel %vm282, %v281, %v277
    %284 = vrot.lane.b32.xlu0 %v283, 64
    %v285 = vpop.permute.xlu0 %284
    %v286 = vsel %vm155, %v285, 0
    %288 = vmatprep.subr.mxu0 0.0
    %289 = vmatpush1.msra.mxu0 0.0
    %290 = vmatprep.subr.mxu0 0.0
    %291 = vmatpush1.msra.mxu0 0.0
    %292 = vmatprep.subr.mxu0 0.0
    %293 = vmatpush1.msra.mxu0 0.0
    %294 = vmatprep.subr.mxu0 0.0
    %295 = vmatpush1.msra.mxu0 0.0
    %296 = vmatprep.subr.mxu0 0.0
    %297 = vmatpush1.msra.mxu0 0.0
    %298 = vmatprep.subr.mxu0 0.0
    %299 = vmatpush1.msra.mxu0 0.0
    %300 = vmatprep.subr.mxu0 0.0
    %301 = vmatpush1.msra.mxu0 0.0
    %302 = vmatprep.subr.mxu0 0.0
    %303 = vmatpush1.msra.mxu0 0.0
    %304 = vmatprep.subr.mxu0 0.0
    %305 = vmatpush1.msra.mxu0 0.0
    %306 = vmatprep.subr.mxu0 0.0
    %307 = vmatpush1.msra.mxu0 0.0
    %308 = vmatprep.subr.mxu0 0.0
    %309 = vmatpush1.msra.mxu0 0.0
    %310 = vmatprep.subr.mxu0 0.0
    %311 = vmatpush1.msra.mxu0 0.0
    %312 = vmatprep.subr.mxu0 0.0
    %313 = vmatpush1.msra.mxu0 %v40
    %314 = vmatprep.subr.mxu0 0.0
    %315 = vmatpush1.msra.mxu0 %v39
    %316 = vmatprep.subr.mxu0 0.0
    %317 = vmatpush1.msra.mxu0 %v38
    %318 = vmatprep.subr.mxu0 0.0
    %319 = vmatpush1.msra.mxu0 %v37
    %320 = vmatprep.subr.mxu0 0.0
    %321 = vmatpush2.msra.mxu0 0.0
    %322 = vmatprep.subr.mxu0 0.0
    %323 = vmatpush2.msra.mxu0 0.0
    %324 = vmatprep.subr.mxu0 0.0
    %325 = vmatpush2.msra.mxu0 0.0
    %326 = vmatprep.subr.mxu0 0.0
    %327 = vmatpush2.msra.mxu0 0.0
    %328 = vmatprep.subr.mxu0 0.0
    %329 = vmatpush2.msra.mxu0 0.0
    %330 = vmatprep.subr.mxu0 0.0
    %331 = vmatpush2.msra.mxu0 0.0
    %332 = vmatprep.subr.mxu0 0.0
    %333 = vmatpush2.msra.mxu0 0.0
    %334 = vmatprep.subr.mxu0 0.0
    %335 = vmatpush2.msra.mxu0 0.0
    %336 = vmatprep.subr.mxu0 0.0
    %337 = vmatpush2.msra.mxu0 0.0
    %338 = vmatprep.subr.mxu0 0.0
    %339 = vmatpush2.msra.mxu0 0.0
    %340 = vmatprep.subr.mxu0 0.0
    %341 = vmatpush2.msra.mxu0 0.0
    %342 = vmatprep.subr.mxu0 0.0
    %343 = vmatpush2.msra.mxu0 0.0
    %344 = vmatprep.subr.mxu0 0.0
    %345 = vmatpush2.msra.mxu0 0.0
    %346 = vmatprep.subr.mxu0 0.0
    %347 = vmatpush2.msra.mxu0 0.0
    %348 = vmatprep.subr.mxu0 0.0
    %349 = vmatpush2.msra.mxu0 0.0
    %350 = vmatprep.subr.mxu0 0.0
    %351 = vmatpush2.msra.mxu0 0.0
    %352 = vmatprep.mubr.f32.mxu0 0.0
    %353 = vmatmul.mubr.f32.gmra.mxu0 %v286
    %v354 = vpop.f32.mrf.mxu0
    %v355 = vadd.f32 0.0, %v354
    %v356 = vpop.f32.mrf.mxu0
    %357 = vdwg.mxu0
    %v359 = vrot.slane %v355, 7
    %v362 = vadd.f32 %v147, %v359
    %v363 = vadd.f32 %v152, %v355
    %v364 = vmul.f32 %v362, 0.5
    %v365 = vmul.f32 %v363, 0.5
    %v366 = vtanh.pop %v364
    %v367 = vtanh.pop %v365
    %v368 = vmul.f32 %v366, 0.5
    %v369 = vmul.f32 %v367, 0.5
    %v370 = vadd.f32 %v368, 0.5
    %v371 = vadd.f32 %v369, 0.5
    %v372 = vtanh.pop %v362
    %v373 = vtanh.pop %v363
    %v376 = vrot.slane %v265, 7
    %v377 = vrot.slane %v266, 7
    %v380 = vmul.f32 %v370, %v376
    %v381 = vmul.f32 %v371, %v377
    %384 = vrot.lane.b32.xlu0 %v372, 32
    %v385 = vpop.permute.xlu0 %384
    %386 = vrot.lane.b32.xlu0 %v373, 32
    %v387 = vpop.permute.xlu0 %386
    %v390 = vmul.f32 %v370, %v385
    %v391 = vmul.f32 %v371, %v387
    %394 = vrot.lane.b32.xlu0 %v390, 32
    %v395 = vpop.permute.xlu0 %394
    %396 = vrot.lane.b32.xlu0 %v391, 32
    %v397 = vpop.permute.xlu0 %396
    %v400 = vadd.f32 %v380, %v395
    %v401 = vadd.f32 %v381, %v397
    %v402 = vtanh.pop %v400
    %v403 = vtanh.pop %v401
    %406 = vrot.lane.b32.xlu0 %v402, 32
    %v407 = vpop.permute.xlu0 %406
    %408 = vrot.lane.b32.xlu0 %v403, 32
    %v409 = vpop.permute.xlu0 %408
    %v412 = vmul.f32 %v370, %v407
    %v413 = vmul.f32 %v371, %v409
    %v415 = vsel %vm155, %v285, 0.0
    %v417 = vlaneseq
    %v418 = vshrl.u32 %v417, 7
    %v419 = vsub.s32 0, %v418
    %v420 = vrot.slane %v50, %v419
    %vm422 = vcmask 523264
    %v424 = vsel %vm422, %v415, 0
    %426 = vmatprep.subr.mxu0 0.0
    %427 = vmatpush1.msra.mxu0 0.0
    %428 = vmatprep.subr.mxu0 0.0
    %429 = vmatpush1.msra.mxu0 0.0
    %430 = vmatprep.subr.mxu0 0.0
    %431 = vmatpush1.msra.mxu0 0.0
    %432 = vmatprep.subr.mxu0 0.0
    %433 = vmatpush1.msra.mxu0 0.0
    %434 = vmatprep.subr.mxu0 0.0
    %435 = vmatpush1.msra.mxu0 0.0
    %436 = vmatprep.subr.mxu0 0.0
    %437 = vmatpush1.msra.mxu0 0.0
    %438 = vmatprep.subr.mxu0 0.0
    %439 = vmatpush1.msra.mxu0 0.0
    %440 = vmatprep.subr.mxu0 0.0
    %441 = vmatpush1.msra.mxu0 0.0
    %442 = vmatprep.subr.mxu0 0.0
    %443 = vmatpush1.msra.mxu0 %v49
    %444 = vmatprep.subr.mxu0 0.0
    %445 = vmatpush1.msra.mxu0 %v48
    %446 = vmatprep.subr.mxu0 0.0
    %447 = vmatpush1.msra.mxu0 %v47
    %448 = vmatprep.subr.mxu0 0.0
    %449 = vmatpush1.msra.mxu0 %v46
    %450 = vmatprep.subr.mxu0 0.0
    %451 = vmatpush1.msra.mxu0 %v45
    %452 = vmatprep.subr.mxu0 0.0
    %453 = vmatpush1.msra.mxu0 %v44
    %454 = vmatprep.subr.mxu0 0.0
    %455 = vmatpush1.msra.mxu0 %v43
    %456 = vmatprep.subr.mxu0 0.0
    %457 = vmatpush1.msra.mxu0 %v42
    %458 = vmatprep.subr.mxu0 0.0
    %459 = vmatpush2.msra.mxu0 0.0
    %460 = vmatprep.subr.mxu0 0.0
    %461 = vmatpush2.msra.mxu0 0.0
    %462 = vmatprep.subr.mxu0 0.0
    %463 = vmatpush2.msra.mxu0 0.0
    %464 = vmatprep.subr.mxu0 0.0
    %465 = vmatpush2.msra.mxu0 0.0
    %466 = vmatprep.subr.mxu0 0.0
    %467 = vmatpush2.msra.mxu0 0.0
    %468 = vmatprep.subr.mxu0 0.0
    %469 = vmatpush2.msra.mxu0 0.0
    %470 = vmatprep.subr.mxu0 0.0
    %471 = vmatpush2.msra.mxu0 0.0
    %472 = vmatprep.subr.mxu0 0.0
    %473 = vmatpush2.msra.mxu0 0.0
    %474 = vmatprep.subr.mxu0 0.0
    %475 = vmatpush2.msra.mxu0 0.0
    %476 = vmatprep.subr.mxu0 0.0
    %477 = vmatpush2.msra.mxu0 0.0
    %478 = vmatprep.subr.mxu0 0.0
    %479 = vmatpush2.msra.mxu0 0.0
    %480 = vmatprep.subr.mxu0 0.0
    %481 = vmatpush2.msra.mxu0 0.0
    %482 = vmatprep.subr.mxu0 0.0
    %483 = vmatpush2.msra.mxu0 0.0
    %484 = vmatprep.subr.mxu0 0.0
    %485 = vmatpush2.msra.mxu0 0.0
    %486 = vmatprep.subr.mxu0 0.0
    %487 = vmatpush2.msra.mxu0 0.0
    %488 = vmatprep.subr.mxu0 0.0
    %489 = vmatpush2.msra.mxu0 0.0
    %490 = vmatprep.mubr.f32.mxu0 0.0
    %491 = vmatmul.mubr.f32.gmra.mxu0 %v424
    %v492 = vpop.f32.mrf.mxu0
    %v493 = vadd.f32 %v420, %v492
    %v494 = vpop.f32.mrf.mxu0
    %495 = vdwg.mxu0
    %v496 = vmul.f32 %v493, 0.5
    %v497 = vtanh.pop %v496
    %v498 = vmul.f32 %v497, 0.5
    %v499 = vadd.f32 %v498, 0.5
    %v500 = vtanh.pop %v493
    %v501 = vmul.f32 %v499, 0.0
    %503 = vrot.lane.b32.xlu0 %v500, 32
    %v504 = vpop.permute.xlu0 %503
    %v506 = vmul.f32 %v499, %v504
    %508 = vrot.lane.b32.xlu0 %v506, 32
    %v509 = vpop.permute.xlu0 %508
    %v511 = vadd.f32 %v501, %v509
    %v512 = vtanh.pop %v511
    %514 = vrot.lane.b32.xlu0 %v512, 32
    %v515 = vpop.permute.xlu0 %514
    %v517 = vmul.f32 %v499, %v515
    %v520 = vrot.slane %v412, 1
    %v521 = vsel %vm282, %v413, %v520
    %522 = vrot.lane.b32.xlu0 %v521, 64
    %v523 = vpop.permute.xlu0 %522
    %v524 = vsel %vm155, %v523, 0
    %526 = vmatprep.subr.mxu0 0.0
    %527 = vmatpush1.msra.mxu0 0.0
    %528 = vmatprep.subr.mxu0 0.0
    %529 = vmatpush1.msra.mxu0 0.0
    %530 = vmatprep.subr.mxu0 0.0
    %531 = vmatpush1.msra.mxu0 0.0
    %532 = vmatprep.subr.mxu0 0.0
    %533 = vmatpush1.msra.mxu0 0.0
    %534 = vmatprep.subr.mxu0 0.0
    %535 = vmatpush1.msra.mxu0 0.0
    %536 = vmatprep.subr.mxu0 0.0
    %537 = vmatpush1.msra.mxu0 0.0
    %538 = vmatprep.subr.mxu0 0.0
    %539 = vmatpush1.msra.mxu0 0.0
    %540 = vmatprep.subr.mxu0 0.0
    %541 = vmatpush1.msra.mxu0 0.0
    %542 = vmatprep.subr.mxu0 0.0
    %543 = vmatpush1.msra.mxu0 0.0
    %544 = vmatprep.subr.mxu0 0.0
    %545 = vmatpush1.msra.mxu0 0.0
    %546 = vmatprep.subr.mxu0 0.0
    %547 = vmatpush1.msra.mxu0 0.0
    %548 = vmatprep.subr.mxu0 0.0
    %549 = vmatpush1.msra.mxu0 0.0
    %550 = vmatprep.subr.mxu0 0.0
    %551 = vmatpush1.msra.mxu0 %v40
    %552 = vmatprep.subr.mxu0 0.0
    %553 = vmatpush1.msra.mxu0 %v39
    %554 = vmatprep.subr.mxu0 0.0
    %555 = vmatpush1.msra.mxu0 %v38
    %556 = vmatprep.subr.mxu0 0.0
    %557 = vmatpush1.msra.mxu0 %v37
    %558 = vmatprep.subr.mxu0 0.0
    %559 = vmatpush2.msra.mxu0 0.0
    %560 = vmatprep.subr.mxu0 0.0
    %561 = vmatpush2.msra.mxu0 0.0
    %562 = vmatprep.subr.mxu0 0.0
    %563 = vmatpush2.msra.mxu0 0.0
    %564 = vmatprep.subr.mxu0 0.0
    %565 = vmatpush2.msra.mxu0 0.0
    %566 = vmatprep.subr.mxu0 0.0
    %567 = vmatpush2.msra.mxu0 0.0
    %568 = vmatprep.subr.mxu0 0.0
    %569 = vmatpush2.msra.mxu0 0.0
    %570 = vmatprep.subr.mxu0 0.0
    %571 = vmatpush2.msra.mxu0 0.0
    %572 = vmatprep.subr.mxu0 0.0
    %573 = vmatpush2.msra.mxu0 0.0
    %574 = vmatprep.subr.mxu0 0.0
    %575 = vmatpush2.msra.mxu0 0.0
    %576 = vmatprep.subr.mxu0 0.0
    %577 = vmatpush2.msra.mxu0 0.0
    %578 = vmatprep.subr.mxu0 0.0
    %579 = vmatpush2.msra.mxu0 0.0
    %580 = vmatprep.subr.mxu0 0.0
    %581 = vmatpush2.msra.mxu0 0.0
    %582 = vmatprep.subr.mxu0 0.0
    %583 = vmatpush2.msra.mxu0 0.0
    %584 = vmatprep.subr.mxu0 0.0
    %585 = vmatpush2.msra.mxu0 0.0
    %586 = vmatprep.subr.mxu0 0.0
    %587 = vmatpush2.msra.mxu0 0.0
    %588 = vmatprep.subr.mxu0 0.0
    %589 = vmatpush2.msra.mxu0 0.0
    %590 = vmatprep.mubr.f32.mxu0 0.0
    %591 = vmatmul.mubr.f32.gmra.mxu0 %v524
    %v592 = vpop.f32.mrf.mxu0
    %v593 = vadd.f32 0.0, %v592
    %v594 = vpop.f32.mrf.mxu0
    %595 = vdwg.mxu0
    %v597 = vrot.slane %v593, 6
    %v598 = vrot.slane %v593, 7
    %v601 = vadd.f32 %v147, %v597
    %v602 = vadd.f32 %v152, %v598
    %v603 = vmul.f32 %v601, 0.5
    %v604 = vmul.f32 %v602, 0.5
    %v605 = vtanh.pop %v603
    %v606 = vtanh.pop %v604
    %v607 = vmul.f32 %v605, 0.5
    %v608 = vmul.f32 %v606, 0.5
    %v609 = vadd.f32 %v607, 0.5
    %v610 = vadd.f32 %v608, 0.5
    %v611 = vtanh.pop %v601
    %v612 = vtanh.pop %v602
    %v615 = vrot.slane %v400, 7
    %v616 = vrot.slane %v401, 7
    %v619 = vmul.f32 %v609, %v615
    %v620 = vmul.f32 %v610, %v616
    %623 = vrot.lane.b32.xlu0 %v611, 32
    %v624 = vpop.permute.xlu0 %623
    %625 = vrot.lane.b32.xlu0 %v612, 32
    %v626 = vpop.permute.xlu0 %625
    %v629 = vmul.f32 %v609, %v624
    %v630 = vmul.f32 %v610, %v626
    %633 = vrot.lane.b32.xlu0 %v629, 32
    %v634 = vpop.permute.xlu0 %633
    %635 = vrot.lane.b32.xlu0 %v630, 32
    %v636 = vpop.permute.xlu0 %635
    %v639 = vadd.f32 %v619, %v634
    %v640 = vadd.f32 %v620, %v636
    %v641 = vtanh.pop %v639
    %v642 = vtanh.pop %v640
    %645 = vrot.lane.b32.xlu0 %v641, 32
    %v646 = vpop.permute.xlu0 %645
    %647 = vrot.lane.b32.xlu0 %v642, 32
    %v648 = vpop.permute.xlu0 %647
    %v651 = vmul.f32 %v609, %v646
    %v652 = vmul.f32 %v610, %v648
    %v653 = vrot.slane %v413, 7
    %vm654 = vcmask 1042434
    %v655 = vsel %vm654, %v653, %v412
    %656 = vrot.lane.b32.xlu0 %v655, 64
    %v657 = vpop.permute.xlu0 %656
    %v660 = vrot.slane %v517, 7
    %661 = vrot.lane.b32.xlu0 %v660, 96
    %v662 = vpop.permute.xlu0 %661
    %v664 = vsel %vm155, %v657, %v662
    %v666 = vrot.slane %v664, 1
    %v667 = vsel %vm422, %v666, 0
    %669 = vmatprep.subr.mxu0 0.0
    %670 = vmatpush1.msra.mxu0 0.0
    %671 = vmatprep.subr.mxu0 0.0
    %672 = vmatpush1.msra.mxu0 0.0
    %673 = vmatprep.subr.mxu0 0.0
    %674 = vmatpush1.msra.mxu0 0.0
    %675 = vmatprep.subr.mxu0 0.0
    %676 = vmatpush1.msra.mxu0 0.0
    %677 = vmatprep.subr.mxu0 0.0
    %678 = vmatpush1.msra.mxu0 0.0
    %679 = vmatprep.subr.mxu0 0.0
    %680 = vmatpush1.msra.mxu0 0.0
    %681 = vmatprep.subr.mxu0 0.0
    %682 = vmatpush1.msra.mxu0 0.0
    %683 = vmatprep.subr.mxu0 0.0
    %684 = vmatpush1.msra.mxu0 0.0
    %685 = vmatprep.subr.mxu0 0.0
    %686 = vmatpush1.msra.mxu0 %v49
    %687 = vmatprep.subr.mxu0 0.0
    %688 = vmatpush1.msra.mxu0 %v48
    %689 = vmatprep.subr.mxu0 0.0
    %690 = vmatpush1.msra.mxu0 %v47
    %691 = vmatprep.subr.mxu0 0.0
    %692 = vmatpush1.msra.mxu0 %v46
    %693 = vmatprep.subr.mxu0 0.0
    %694 = vmatpush1.msra.mxu0 %v45
    %695 = vmatprep.subr.mxu0 0.0
    %696 = vmatpush1.msra.mxu0 %v44
    %697 = vmatprep.subr.mxu0 0.0
    %698 = vmatpush1.msra.mxu0 %v43
    %699 = vmatprep.subr.mxu0 0.0
    %700 = vmatpush1.msra.mxu0 %v42
    %701 = vmatprep.subr.mxu0 0.0
    %702 = vmatpush2.msra.mxu0 0.0
    %703 = vmatprep.subr.mxu0 0.0
    %704 = vmatpush2.msra.mxu0 0.0
    %705 = vmatprep.subr.mxu0 0.0
    %706 = vmatpush2.msra.mxu0 0.0
    %707 = vmatprep.subr.mxu0 0.0
    %708 = vmatpush2.msra.mxu0 0.0
    %709 = vmatprep.subr.mxu0 0.0
    %710 = vmatpush2.msra.mxu0 0.0
    %711 = vmatprep.subr.mxu0 0.0
    %712 = vmatpush2.msra.mxu0 0.0
    %713 = vmatprep.subr.mxu0 0.0
    %714 = vmatpush2.msra.mxu0 0.0
    %715 = vmatprep.subr.mxu0 0.0
    %716 = vmatpush2.msra.mxu0 0.0
    %717 = vmatprep.subr.mxu0 0.0
    %718 = vmatpush2.msra.mxu0 0.0
    %719 = vmatprep.subr.mxu0 0.0
    %720 = vmatpush2.msra.mxu0 0.0
    %721 = vmatprep.subr.mxu0 0.0
    %722 = vmatpush2.msra.mxu0 0.0
    %723 = vmatprep.subr.mxu0 0.0
    %724 = vmatpush2.msra.mxu0 0.0
    %725 = vmatprep.subr.mxu0 0.0
    %726 = vmatpush2.msra.mxu0 0.0
    %727 = vmatprep.subr.mxu0 0.0
    %728 = vmatpush2.msra.mxu0 0.0
    %729 = vmatprep.subr.mxu0 0.0
    %730 = vmatpush2.msra.mxu0 0.0
    %731 = vmatprep.subr.mxu0 0.0
    %732 = vmatpush2.msra.mxu0 0.0
    %733 = vmatprep.mubr.f32.mxu0 0.0
    %734 = vmatmul.mubr.f32.gmra.mxu0 %v667
    %v735 = vpop.f32.mrf.mxu0
    %v736 = vadd.f32 %v420, %v735
    %v737 = vpop.f32.mrf.mxu0
    %738 = vdwg.mxu0
    %v739 = vmul.f32 %v736, 0.5
    %v740 = vtanh.pop %v739
    %v741 = vmul.f32 %v740, 0.5
    %v742 = vadd.f32 %v741, 0.5
    %v743 = vtanh.pop %v736
    %v744 = vmul.f32 %v742, %v511
    %746 = vrot.lane.b32.xlu0 %v743, 32
    %v747 = vpop.permute.xlu0 %746
    %v749 = vmul.f32 %v742, %v747
    %751 = vrot.lane.b32.xlu0 %v749, 32
    %v752 = vpop.permute.xlu0 %751
    %v754 = vadd.f32 %v744, %v752
    %v755 = vtanh.pop %v754
    %757 = vrot.lane.b32.xlu0 %v755, 32
    %v758 = vpop.permute.xlu0 %757
    %v760 = vmul.f32 %v742, %v758
    %v763 = vrot.slane %v651, 2
    %v764 = vrot.slane %v652, 1
    %v765 = vsel %vm282, %v764, %v763
    %766 = vrot.lane.b32.xlu0 %v765, 64
    %v767 = vpop.permute.xlu0 %766
    %v768 = vsel %vm155, %v767, 0
    %770 = vmatprep.subr.mxu0 0.0
    %771 = vmatpush1.msra.mxu0 0.0
    %772 = vmatprep.subr.mxu0 0.0
    %773 = vmatpush1.msra.mxu0 0.0
    %774 = vmatprep.subr.mxu0 0.0
    %775 = vmatpush1.msra.mxu0 0.0
    %776 = vmatprep.subr.mxu0 0.0
    %777 = vmatpush1.msra.mxu0 0.0
    %778 = vmatprep.subr.mxu0 0.0
    %779 = vmatpush1.msra.mxu0 0.0
    %780 = vmatprep.subr.mxu0 0.0
    %781 = vmatpush1.msra.mxu0 0.0
    %782 = vmatprep.subr.mxu0 0.0
    %783 = vmatpush1.msra.mxu0 0.0
    %784 = vmatprep.subr.mxu0 0.0
    %785 = vmatpush1.msra.mxu0 0.0
    %786 = vmatprep.subr.mxu0 0.0
    %787 = vmatpush1.msra.mxu0 0.0
    %788 = vmatprep.subr.mxu0 0.0
    %789 = vmatpush1.msra.mxu0 0.0
    %790 = vmatprep.subr.mxu0 0.0
    %791 = vmatpush1.msra.mxu0 0.0
    %792 = vmatprep.subr.mxu0 0.0
    %793 = vmatpush1.msra.mxu0 0.0
    %794 = vmatprep.subr.mxu0 0.0
    %795 = vmatpush1.msra.mxu0 %v40
    %796 = vmatprep.subr.mxu0 0.0
    %797 = vmatpush1.msra.mxu0 %v39
    %798 = vmatprep.subr.mxu0 0.0
    %799 = vmatpush1.msra.mxu0 %v38
    %800 = vmatprep.subr.mxu0 0.0
    %801 = vmatpush1.msra.mxu0 %v37
    %802 = vmatprep.subr.mxu0 0.0
    %803 = vmatpush2.msra.mxu0 0.0
    %804 = vmatprep.subr.mxu0 0.0
    %805 = vmatpush2.msra.mxu0 0.0
    %806 = vmatprep.subr.mxu0 0.0
    %807 = vmatpush2.msra.mxu0 0.0
    %808 = vmatprep.subr.mxu0 0.0
    %809 = vmatpush2.msra.mxu0 0.0
    %810 = vmatprep.subr.mxu0 0.0
    %811 = vmatpush2.msra.mxu0 0.0
    %812 = vmatprep.subr.mxu0 0.0
    %813 = vmatpush2.msra.mxu0 0.0
    %814 = vmatprep.subr.mxu0 0.0
    %815 = vmatpush2.msra.mxu0 0.0
    %816 = vmatprep.subr.mxu0 0.0
    %817 = vmatpush2.msra.mxu0 0.0
    %818 = vmatprep.subr.mxu0 0.0
    %819 = vmatpush2.msra.mxu0 0.0
    %820 = vmatprep.subr.mxu0 0.0
    %821 = vmatpush2.msra.mxu0 0.0
    %822 = vmatprep.subr.mxu0 0.0
    %823 = vmatpush2.msra.mxu0 0.0
    %824 = vmatprep.subr.mxu0 0.0
    %825 = vmatpush2.msra.mxu0 0.0
    %826 = vmatprep.subr.mxu0 0.0
    %827 = vmatpush2.msra.mxu0 0.0
    %828 = vmatprep.subr.mxu0 0.0
    %829 = vmatpush2.msra.mxu0 0.0
    %830 = vmatprep.subr.mxu0 0.0
    %831 = vmatpush2.msra.mxu0 0.0
    %832 = vmatprep.subr.mxu0 0.0
    %833 = vmatpush2.msra.mxu0 0.0
    %834 = vmatprep.mubr.f32.mxu0 0.0
    %835 = vmatmul.mubr.f32.gmra.mxu0 %v768
    %v836 = vpop.f32.mrf.mxu0
    %v837 = vadd.f32 0.0, %v836
    %v838 = vpop.f32.mrf.mxu0
    %839 = vdwg.mxu0
    %v841 = vrot.slane %v837, 5
    %v842 = vrot.slane %v837, 6
    %v845 = vadd.f32 %v147, %v841
    %v846 = vadd.f32 %v152, %v842
    %v847 = vmul.f32 %v845, 0.5
    %v848 = vmul.f32 %v846, 0.5
    %v849 = vtanh.pop %v847
    %v850 = vtanh.pop %v848
    %v851 = vmul.f32 %v849, 0.5
    %v852 = vmul.f32 %v850, 0.5
    %v853 = vadd.f32 %v851, 0.5
    %v854 = vadd.f32 %v852, 0.5
    %v855 = vtanh.pop %v845
    %v856 = vtanh.pop %v846
    %v859 = vrot.slane %v639, 7
    %v860 = vrot.slane %v640, 7
    %v863 = vmul.f32 %v853, %v859
    %v864 = vmul.f32 %v854, %v860
    %867 = vrot.lane.b32.xlu0 %v855, 32
    %v868 = vpop.permute.xlu0 %867
    %869 = vrot.lane.b32.xlu0 %v856, 32
    %v870 = vpop.permute.xlu0 %869
    %v873 = vmul.f32 %v853, %v868
    %v874 = vmul.f32 %v854, %v870
    %877 = vrot.lane.b32.xlu0 %v873, 32
    %v878 = vpop.permute.xlu0 %877
    %879 = vrot.lane.b32.xlu0 %v874, 32
    %v880 = vpop.permute.xlu0 %879
    %v883 = vadd.f32 %v863, %v878
    %v884 = vadd.f32 %v864, %v880
    %v885 = vtanh.pop %v883
    %v886 = vtanh.pop %v884
    %889 = vrot.lane.b32.xlu0 %v885, 32
    %v890 = vpop.permute.xlu0 %889
    %891 = vrot.lane.b32.xlu0 %v886, 32
    %v892 = vpop.permute.xlu0 %891
    %v895 = vmul.f32 %v853, %v890
    %v896 = vmul.f32 %v854, %v892
    %v897 = vrot.slane %v652, 7
    %vm898 = vcmask 1043459
    %v899 = vsel %vm898, %v897, %v651
    %900 = vrot.lane.b32.xlu0 %v899, 64
    %v901 = vpop.permute.xlu0 %900
    %v904 = vrot.slane %v760, 6
    %905 = vrot.lane.b32.xlu0 %v904, 96
    %v906 = vpop.permute.xlu0 %905
    %v908 = vsel %vm155, %v901, %v906
    %v910 = vrot.slane %v908, 2
    %v911 = vsel %vm422, %v910, 0
    %913 = vmatprep.subr.mxu0 0.0
    %914 = vmatpush1.msra.mxu0 0.0
    %915 = vmatprep.subr.mxu0 0.0
    %916 = vmatpush1.msra.mxu0 0.0
    %917 = vmatprep.subr.mxu0 0.0
    %918 = vmatpush1.msra.mxu0 0.0
    %919 = vmatprep.subr.mxu0 0.0
    %920 = vmatpush1.msra.mxu0 0.0
    %921 = vmatprep.subr.mxu0 0.0
    %922 = vmatpush1.msra.mxu0 0.0
    %923 = vmatprep.subr.mxu0 0.0
    %924 = vmatpush1.msra.mxu0 0.0
    %925 = vmatprep.subr.mxu0 0.0
    %926 = vmatpush1.msra.mxu0 0.0
    %927 = vmatprep.subr.mxu0 0.0
    %928 = vmatpush1.msra.mxu0 0.0
    %929 = vmatprep.subr.mxu0 0.0
    %930 = vmatpush1.msra.mxu0 %v49
    %931 = vmatprep.subr.mxu0 0.0
    %932 = vmatpush1.msra.mxu0 %v48
    %933 = vmatprep.subr.mxu0 0.0
    %934 = vmatpush1.msra.mxu0 %v47
    %935 = vmatprep.subr.mxu0 0.0
    %936 = vmatpush1.msra.mxu0 %v46
    %937 = vmatprep.subr.mxu0 0.0
    %938 = vmatpush1.msra.mxu0 %v45
    %939 = vmatprep.subr.mxu0 0.0
    %940 = vmatpush1.msra.mxu0 %v44
    %941 = vmatprep.subr.mxu0 0.0
    %942 = vmatpush1.msra.mxu0 %v43
    %943 = vmatprep.subr.mxu0 0.0
    %944 = vmatpush1.msra.mxu0 %v42
    %945 = vmatprep.subr.mxu0 0.0
    %946 = vmatpush2.msra.mxu0 0.0
    %947 = vmatprep.subr.mxu0 0.0
    %948 = vmatpush2.msra.mxu0 0.0
    %949 = vmatprep.subr.mxu0 0.0
    %950 = vmatpush2.msra.mxu0 0.0
    %951 = vmatprep.subr.mxu0 0.0
    %952 = vmatpush2.msra.mxu0 0.0
    %953 = vmatprep.subr.mxu0 0.0
    %954 = vmatpush2.msra.mxu0 0.0
    %955 = vmatprep.subr.mxu0 0.0
    %956 = vmatpush2.msra.mxu0 0.0
    %957 = vmatprep.subr.mxu0 0.0
    %958 = vmatpush2.msra.mxu0 0.0
    %959 = vmatprep.subr.mxu0 0.0
    %960 = vmatpush2.msra.mxu0 0.0
    %961 = vmatprep.subr.mxu0 0.0
    %962 = vmatpush2.msra.mxu0 0.0
    %963 = vmatprep.subr.mxu0 0.0
    %964 = vmatpush2.msra.mxu0 0.0
    %965 = vmatprep.subr.mxu0 0.0
    %966 = vmatpush2.msra.mxu0 0.0
    %967 = vmatprep.subr.mxu0 0.0
    %968 = vmatpush2.msra.mxu0 0.0
    %969 = vmatprep.subr.mxu0 0.0
    %970 = vmatpush2.msra.mxu0 0.0
    %971 = vmatprep.subr.mxu0 0.0
    %972 = vmatpush2.msra.mxu0 0.0
    %973 = vmatprep.subr.mxu0 0.0
    %974 = vmatpush2.msra.mxu0 0.0
    %975 = vmatprep.subr.mxu0 0.0
    %976 = vmatpush2.msra.mxu0 0.0
    %977 = vmatprep.mubr.f32.mxu0 0.0
    %978 = vmatmul.mubr.f32.gmra.mxu0 %v911
    %v979 = vpop.f32.mrf.mxu0
    %v980 = vadd.f32 %v420, %v979
    %v981 = vpop.f32.mrf.mxu0
    %982 = vdwg.mxu0
    %v983 = vmul.f32 %v980, 0.5
    %v984 = vtanh.pop %v983
    %v985 = vmul.f32 %v984, 0.5
    %v986 = vadd.f32 %v985, 0.5
    %v987 = vtanh.pop %v980
    %v988 = vmul.f32 %v986, %v754
    %990 = vrot.lane.b32.xlu0 %v987, 32
    %v991 = vpop.permute.xlu0 %990
    %v993 = vmul.f32 %v986, %v991
    %995 = vrot.lane.b32.xlu0 %v993, 32
    %v996 = vpop.permute.xlu0 %995
    %v998 = vadd.f32 %v988, %v996
    %v999 = vtanh.pop %v998
    %1001 = vrot.lane.b32.xlu0 %v999, 32
    %v1002 = vpop.permute.xlu0 %1001
    %v1004 = vmul.f32 %v986, %v1002
    %v1007 = vrot.slane %v895, 3
    %v1008 = vrot.slane %v896, 2
    %v1009 = vsel %vm282, %v1008, %v1007
    %1010 = vrot.lane.b32.xlu0 %v1009, 64
    %v1011 = vpop.permute.xlu0 %1010
    %v1012 = vsel %vm155, %v1011, 0
    %1014 = vmatprep.subr.mxu0 0.0
    %1015 = vmatpush1.msra.mxu0 0.0
    %1016 = vmatprep.subr.mxu0 0.0
    %1017 = vmatpush1.msra.mxu0 0.0
    %1018 = vmatprep.subr.mxu0 0.0
    %1019 = vmatpush1.msra.mxu0 0.0
    %1020 = vmatprep.subr.mxu0 0.0
    %1021 = vmatpush1.msra.mxu0 0.0
    %1022 = vmatprep.subr.mxu0 0.0
    %1023 = vmatpush1.msra.mxu0 0.0
    %1024 = vmatprep.subr.mxu0 0.0
    %1025 = vmatpush1.msra.mxu0 0.0
    %1026 = vmatprep.subr.mxu0 0.0
    %1027 = vmatpush1.msra.mxu0 0.0
    %1028 = vmatprep.subr.mxu0 0.0
    %1029 = vmatpush1.msra.mxu0 0.0
    %1030 = vmatprep.subr.mxu0 0.0
    %1031 = vmatpush1.msra.mxu0 0.0
    %1032 = vmatprep.subr.mxu0 0.0
    %1033 = vmatpush1.msra.mxu0 0.0
    %1034 = vmatprep.subr.mxu0 0.0
    %1035 = vmatpush1.msra.mxu0 0.0
    %1036 = vmatprep.subr.mxu0 0.0
    %1037 = vmatpush1.msra.mxu0 0.0
    %1038 = vmatprep.subr.mxu0 0.0
    %1039 = vmatpush1.msra.mxu0 %v40
    %1040 = vmatprep.subr.mxu0 0.0
    %1041 = vmatpush1.msra.mxu0 %v39
    %1042 = vmatprep.subr.mxu0 0.0
    %1043 = vmatpush1.msra.mxu0 %v38
    %1044 = vmatprep.subr.mxu0 0.0
    %1045 = vmatpush1.msra.mxu0 %v37
    %1046 = vmatprep.subr.mxu0 0.0
    %1047 = vmatpush2.msra.mxu0 0.0
    %1048 = vmatprep.subr.mxu0 0.0
    %1049 = vmatpush2.msra.mxu0 0.0
    %1050 = vmatprep.subr.mxu0 0.0
    %1051 = vmatpush2.msra.mxu0 0.0
    %1052 = vmatprep.subr.mxu0 0.0
    %1053 = vmatpush2.msra.mxu0 0.0
    %1054 = vmatprep.subr.mxu0 0.0
    %1055 = vmatpush2.msra.mxu0 0.0
    %1056 = vmatprep.subr.mxu0 0.0
    %1057 = vmatpush2.msra.mxu0 0.0
    %1058 = vmatprep.subr.mxu0 0.0
    %1059 = vmatpush2.msra.mxu0 0.0
    %1060 = vmatprep.subr.mxu0 0.0
    %1061 = vmatpush2.msra.mxu0 0.0
    %1062 = vmatprep.subr.mxu0 0.0
    %1063 = vmatpush2.msra.mxu0 0.0
    %1064 = vmatprep.subr.mxu0 0.0
    %1065 = vmatpush2.msra.mxu0 0.0
    %1066 = vmatprep.subr.mxu0 0.0
    %1067 = vmatpush2.msra.mxu0 0.0
    %1068 = vmatprep.subr.mxu0 0.0
    %1069 = vmatpush2.msra.mxu0 0.0
    %1070 = vmatprep.subr.mxu0 0.0
    %1071 = vmatpush2.msra.mxu0 0.0
    %1072 = vmatprep.subr.mxu0 0.0
    %1073 = vmatpush2.msra.mxu0 0.0
    %1074 = vmatprep.subr.mxu0 0.0
    %1075 = vmatpush2.msra.mxu0 0.0
    %1076 = vmatprep.subr.mxu0 0.0
    %1077 = vmatpush2.msra.mxu0 0.0
    %1078 = vmatprep.mubr.f32.mxu0 0.0
    %1079 = vmatmul.mubr.f32.gmra.mxu0 %v1012
    %v1080 = vpop.f32.mrf.mxu0
    %v1081 = vadd.f32 0.0, %v1080
    %v1082 = vpop.f32.mrf.mxu0
    %1083 = vdwg.mxu0
    %v1085 = vrot.slane %v1081, 4
    %v1086 = vrot.slane %v1081, 5
    %v1089 = vadd.f32 %v147, %v1085
    %v1090 = vadd.f32 %v152, %v1086
    %v1091 = vmul.f32 %v1089, 0.5
    %v1092 = vmul.f32 %v1090, 0.5
    %v1093 = vtanh.pop %v1091
    %v1094 = vtanh.pop %v1092
    %v1095 = vmul.f32 %v1093, 0.5
    %v1096 = vmul.f32 %v1094, 0.5
    %v1097 = vadd.f32 %v1095, 0.5
    %v1098 = vadd.f32 %v1096, 0.5
    %v1099 = vtanh.pop %v1089
    %v1100 = vtanh.pop %v1090
    %v1103 = vrot.slane %v883, 7
    %v1104 = vrot.slane %v884, 7
    %v1107 = vmul.f32 %v1097, %v1103
    %v1108 = vmul.f32 %v1098, %v1104
    %1111 = vrot.lane.b32.xlu0 %v1099, 32
    %v1112 = vpop.permute.xlu0 %1111
    %1113 = vrot.lane.b32.xlu0 %v1100, 32
    %v1114 = vpop.permute.xlu0 %1113
    %v1117 = vmul.f32 %v1097, %v1112
    %v1118 = vmul.f32 %v1098, %v1114
    %1121 = vrot.lane.b32.xlu0 %v1117, 32
    %v1122 = vpop.permute.xlu0 %1121
    %1123 = vrot.lane.b32.xlu0 %v1118, 32
    %v1124 = vpop.permute.xlu0 %1123
    %v1127 = vadd.f32 %v1107, %v1122
    %v1128 = vadd.f32 %v1108, %v1124
    %v1129 = vtanh.pop %v1127
    %v1130 = vtanh.pop %v1128
    %1133 = vrot.lane.b32.xlu0 %v1129, 32
    %v1134 = vpop.permute.xlu0 %1133
    %1135 = vrot.lane.b32.xlu0 %v1130, 32
    %v1136 = vpop.permute.xlu0 %1135
    %v1139 = vmul.f32 %v1097, %v1134
    %v1140 = vmul.f32 %v1098, %v1136
    %v1141 = vrot.slane %v896, 7
    %vm1142 = vcmask 1044484
    %v1143 = vsel %vm1142, %v1141, %v895
    %1144 = vrot.lane.b32.xlu0 %v1143, 64
    %v1145 = vpop.permute.xlu0 %1144
    %v1148 = vrot.slane %v1004, 5
    %1149 = vrot.lane.b32.xlu0 %v1148, 96
    %v1150 = vpop.permute.xlu0 %1149
    %v1152 = vsel %vm155, %v1145, %v1150
    %v1154 = vrot.slane %v1152, 3
    %v1155 = vsel %vm422, %v1154, 0
    %1157 = vmatprep.subr.mxu0 0.0
    %1158 = vmatpush1.msra.mxu0 0.0
    %1159 = vmatprep.subr.mxu0 0.0
    %1160 = vmatpush1.msra.mxu0 0.0
    %1161 = vmatprep.subr.mxu0 0.0
    %1162 = vmatpush1.msra.mxu0 0.0
    %1163 = vmatprep.subr.mxu0 0.0
    %1164 = vmatpush1.msra.mxu0 0.0
    %1165 = vmatprep.subr.mxu0 0.0
    %1166 = vmatpush1.msra.mxu0 0.0
    %1167 = vmatprep.subr.mxu0 0.0
    %1168 = vmatpush1.msra.mxu0 0.0
    %1169 = vmatprep.subr.mxu0 0.0
    %1170 = vmatpush1.msra.mxu0 0.0
    %1171 = vmatprep.subr.mxu0 0.0
    %1172 = vmatpush1.msra.mxu0 0.0
    %1173 = vmatprep.subr.mxu0 0.0
    %1174 = vmatpush1.msra.mxu0 %v49
    %1175 = vmatprep.subr.mxu0 0.0
    %1176 = vmatpush1.msra.mxu0 %v48
    %1177 = vmatprep.subr.mxu0 0.0
    %1178 = vmatpush1.msra.mxu0 %v47
    %1179 = vmatprep.subr.mxu0 0.0
    %1180 = vmatpush1.msra.mxu0 %v46
    %1181 = vmatprep.subr.mxu0 0.0
    %1182 = vmatpush1.msra.mxu0 %v45
    %1183 = vmatprep.subr.mxu0 0.0
    %1184 = vmatpush1.msra.mxu0 %v44
    %1185 = vmatprep.subr.mxu0 0.0
    %1186 = vmatpush1.msra.mxu0 %v43
    %1187 = vmatprep.subr.mxu0 0.0
    %1188 = vmatpush1.msra.mxu0 %v42
    %1189 = vmatprep.subr.mxu0 0.0
    %1190 = vmatpush2.msra.mxu0 0.0
    %1191 = vmatprep.subr.mxu0 0.0
    %1192 = vmatpush2.msra.mxu0 0.0
    %1193 = vmatprep.subr.mxu0 0.0
    %1194 = vmatpush2.msra.mxu0 0.0
    %1195 = vmatprep.subr.mxu0 0.0
    %1196 = vmatpush2.msra.mxu0 0.0
    %1197 = vmatprep.subr.mxu0 0.0
    %1198 = vmatpush2.msra.mxu0 0.0
    %1199 = vmatprep.subr.mxu0 0.0
    %1200 = vmatpush2.msra.mxu0 0.0
    %1201 = vmatprep.subr.mxu0 0.0
    %1202 = vmatpush2.msra.mxu0 0.0
    %1203 = vmatprep.subr.mxu0 0.0
    %1204 = vmatpush2.msra.mxu0 0.0
    %1205 = vmatprep.subr.mxu0 0.0
    %1206 = vmatpush2.msra.mxu0 0.0
    %1207 = vmatprep.subr.mxu0 0.0
    %1208 = vmatpush2.msra.mxu0 0.0
    %1209 = vmatprep.subr.mxu0 0.0
    %1210 = vmatpush2.msra.mxu0 0.0
    %1211 = vmatprep.subr.mxu0 0.0
    %1212 = vmatpush2.msra.mxu0 0.0
    %1213 = vmatprep.subr.mxu0 0.0
    %1214 = vmatpush2.msra.mxu0 0.0
    %1215 = vmatprep.subr.mxu0 0.0
    %1216 = vmatpush2.msra.mxu0 0.0
    %1217 = vmatprep.subr.mxu0 0.0
    %1218 = vmatpush2.msra.mxu0 0.0
    %1219 = vmatprep.subr.mxu0 0.0
    %1220 = vmatpush2.msra.mxu0 0.0
    %1221 = vmatprep.mubr.f32.mxu0 0.0
    %1222 = vmatmul.mubr.f32.gmra.mxu0 %v1155
    %v1223 = vpop.f32.mrf.mxu0
    %v1224 = vadd.f32 %v420, %v1223
    %v1225 = vpop.f32.mrf.mxu0
    %1226 = vdwg.mxu0
    %v1227 = vmul.f32 %v1224, 0.5
    %v1228 = vtanh.pop %v1227
    %v1229 = vmul.f32 %v1228, 0.5
    %v1230 = vadd.f32 %v1229, 0.5
    %v1231 = vtanh.pop %v1224
    %v1232 = vmul.f32 %v1230, %v998
    %1234 = vrot.lane.b32.xlu0 %v1231, 32
    %v1235 = vpop.permute.xlu0 %1234
    %v1237 = vmul.f32 %v1230, %v1235
    %1239 = vrot.lane.b32.xlu0 %v1237, 32
    %v1240 = vpop.permute.xlu0 %1239
    %v1242 = vadd.f32 %v1232, %v1240
    %v1243 = vtanh.pop %v1242
    %1245 = vrot.lane.b32.xlu0 %v1243, 32
    %v1246 = vpop.permute.xlu0 %1245
    %v1248 = vmul.f32 %v1230, %v1246
    %v1251 = vrot.slane %v1139, 4
    %v1252 = vrot.slane %v1140, 3
    %v1253 = vsel %vm282, %v1252, %v1251
    %1254 = vrot.lane.b32.xlu0 %v1253, 64
    %v1255 = vpop.permute.xlu0 %1254
    %v1256 = vsel %vm155, %v1255, 0
    %1258 = vmatprep.subr.mxu0 0.0
    %1259 = vmatpush1.msra.mxu0 0.0
    %1260 = vmatprep.subr.mxu0 0.0
    %1261 = vmatpush1.msra.mxu0 0.0
    %1262 = vmatprep.subr.mxu0 0.0
    %1263 = vmatpush1.msra.mxu0 0.0
    %1264 = vmatprep.subr.mxu0 0.0
    %1265 = vmatpush1.msra.mxu0 0.0
    %1266 = vmatprep.subr.mxu0 0.0
    %1267 = vmatpush1.msra.mxu0 0.0
    %1268 = vmatprep.subr.mxu0 0.0
    %1269 = vmatpush1.msra.mxu0 0.0
    %1270 = vmatprep.subr.mxu0 0.0
    %1271 = vmatpush1.msra.mxu0 0.0
    %1272 = vmatprep.subr.mxu0 0.0
    %1273 = vmatpush1.msra.mxu0 0.0
    %1274 = vmatprep.subr.mxu0 0.0
    %1275 = vmatpush1.msra.mxu0 0.0
    %1276 = vmatprep.subr.mxu0 0.0
    %1277 = vmatpush1.msra.mxu0 0.0
    %1278 = vmatprep.subr.mxu0 0.0
    %1279 = vmatpush1.msra.mxu0 0.0
    %1280 = vmatprep.subr.mxu0 0.0
    %1281 = vmatpush1.msra.mxu0 0.0
    %1282 = vmatprep.subr.mxu0 0.0
    %1283 = vmatpush1.msra.mxu0 %v40
    %1284 = vmatprep.subr.mxu0 0.0
    %1285 = vmatpush1.msra.mxu0 %v39
    %1286 = vmatprep.subr.mxu0 0.0
    %1287 = vmatpush1.msra.mxu0 %v38
    %1288 = vmatprep.subr.mxu0 0.0
    %1289 = vmatpush1.msra.mxu0 %v37
    %1290 = vmatprep.subr.mxu0 0.0
    %1291 = vmatpush2.msra.mxu0 0.0
    %1292 = vmatprep.subr.mxu0 0.0
    %1293 = vmatpush2.msra.mxu0 0.0
    %1294 = vmatprep.subr.mxu0 0.0
    %1295 = vmatpush2.msra.mxu0 0.0
    %1296 = vmatprep.subr.mxu0 0.0
    %1297 = vmatpush2.msra.mxu0 0.0
    %1298 = vmatprep.subr.mxu0 0.0
    %1299 = vmatpush2.msra.mxu0 0.0
    %1300 = vmatprep.subr.mxu0 0.0
    %1301 = vmatpush2.msra.mxu0 0.0
    %1302 = vmatprep.subr.mxu0 0.0
    %1303 = vmatpush2.msra.mxu0 0.0
    %1304 = vmatprep.subr.mxu0 0.0
    %1305 = vmatpush2.msra.mxu0 0.0
    %1306 = vmatprep.subr.mxu0 0.0
    %1307 = vmatpush2.msra.mxu0 0.0
    %1308 = vmatprep.subr.mxu0 0.0
    %1309 = vmatpush2.msra.mxu0 0.0
    %1310 = vmatprep.subr.mxu0 0.0
    %1311 = vmatpush2.msra.mxu0 0.0
    %1312 = vmatprep.subr.mxu0 0.0
    %1313 = vmatpush2.msra.mxu0 0.0
    %1314 = vmatprep.subr.mxu0 0.0
    %1315 = vmatpush2.msra.mxu0 0.0
    %1316 = vmatprep.subr.mxu0 0.0
    %1317 = vmatpush2.msra.mxu0 0.0
    %1318 = vmatprep.subr.mxu0 0.0
    %1319 = vmatpush2.msra.mxu0 0.0
    %1320 = vmatprep.subr.mxu0 0.0
    %1321 = vmatpush2.msra.mxu0 0.0
    %1322 = vmatprep.mubr.f32.mxu0 0.0
    %1323 = vmatmul.mubr.f32.gmra.mxu0 %v1256
    %v1324 = vpop.f32.mrf.mxu0
    %v1325 = vadd.f32 0.0, %v1324
    %v1326 = vpop.f32.mrf.mxu0
    %1327 = vdwg.mxu0
    %v1329 = vrot.slane %v1325, 3
    %v1330 = vrot.slane %v1325, 4
    %v1333 = vadd.f32 %v147, %v1329
    %v1334 = vadd.f32 %v152, %v1330
    %v1335 = vmul.f32 %v1333, 0.5
    %v1336 = vmul.f32 %v1334, 0.5
    %v1337 = vtanh.pop %v1335
    %v1338 = vtanh.pop %v1336
    %v1339 = vmul.f32 %v1337, 0.5
    %v1340 = vmul.f32 %v1338, 0.5
    %v1341 = vadd.f32 %v1339, 0.5
    %v1342 = vadd.f32 %v1340, 0.5
    %v1343 = vtanh.pop %v1333
    %v1344 = vtanh.pop %v1334
    %v1347 = vrot.slane %v1127, 7
    %v1348 = vrot.slane %v1128, 7
    %v1351 = vmul.f32 %v1341, %v1347
    %v1352 = vmul.f32 %v1342, %v1348
    %1355 = vrot.lane.b32.xlu0 %v1343, 32
    %v1356 = vpop.permute.xlu0 %1355
    %1357 = vrot.lane.b32.xlu0 %v1344, 32
    %v1358 = vpop.permute.xlu0 %1357
    %v1361 = vmul.f32 %v1341, %v1356
    %v1362 = vmul.f32 %v1342, %v1358
    %1365 = vrot.lane.b32.xlu0 %v1361, 32
    %v1366 = vpop.permute.xlu0 %1365
    %1367 = vrot.lane.b32.xlu0 %v1362, 32
    %v1368 = vpop.permute.xlu0 %1367
    %v1371 = vadd.f32 %v1351, %v1366
    %v1372 = vadd.f32 %v1352, %v1368
    %v1373 = vtanh.pop %v1371
    %v1374 = vtanh.pop %v1372
    %1377 = vrot.lane.b32.xlu0 %v1373, 32
    %v1378 = vpop.permute.xlu0 %1377
    %1379 = vrot.lane.b32.xlu0 %v1374, 32
    %v1380 = vpop.permute.xlu0 %1379
    %v1383 = vmul.f32 %v1341, %v1378
    %v1384 = vmul.f32 %v1342, %v1380
    %v1385 = vrot.slane %v1140, 7
    %vm1386 = vcmask 1045509
    %v1387 = vsel %vm1386, %v1385, %v1139
    %1388 = vrot.lane.b32.xlu0 %v1387, 64
    %v1389 = vpop.permute.xlu0 %1388
    %v1392 = vrot.slane %v1248, 4
    %1393 = vrot.lane.b32.xlu0 %v1392, 96
    %v1394 = vpop.permute.xlu0 %1393
    %v1396 = vsel %vm155, %v1389, %v1394
    %v1398 = vrot.slane %v1396, 4
    %v1399 = vsel %vm422, %v1398, 0
    %1401 = vmatprep.subr.mxu0 0.0
    %1402 = vmatpush1.msra.mxu0 0.0
    %1403 = vmatprep.subr.mxu0 0.0
    %1404 = vmatpush1.msra.mxu0 0.0
    %1405 = vmatprep.subr.mxu0 0.0
    %1406 = vmatpush1.msra.mxu0 0.0
    %1407 = vmatprep.subr.mxu0 0.0
    %1408 = vmatpush1.msra.mxu0 0.0
    %1409 = vmatprep.subr.mxu0 0.0
    %1410 = vmatpush1.msra.mxu0 0.0
    %1411 = vmatprep.subr.mxu0 0.0
    %1412 = vmatpush1.msra.mxu0 0.0
    %1413 = vmatprep.subr.mxu0 0.0
    %1414 = vmatpush1.msra.mxu0 0.0
    %1415 = vmatprep.subr.mxu0 0.0
    %1416 = vmatpush1.msra.mxu0 0.0
    %1417 = vmatprep.subr.mxu0 0.0
    %1418 = vmatpush1.msra.mxu0 %v49
    %1419 = vmatprep.subr.mxu0 0.0
    %1420 = vmatpush1.msra.mxu0 %v48
    %1421 = vmatprep.subr.mxu0 0.0
    %1422 = vmatpush1.msra.mxu0 %v47
    %1423 = vmatprep.subr.mxu0 0.0
    %1424 = vmatpush1.msra.mxu0 %v46
    %1425 = vmatprep.subr.mxu0 0.0
    %1426 = vmatpush1.msra.mxu0 %v45
    %1427 = vmatprep.subr.mxu0 0.0
    %1428 = vmatpush1.msra.mxu0 %v44
    %1429 = vmatprep.subr.mxu0 0.0
    %1430 = vmatpush1.msra.mxu0 %v43
    %1431 = vmatprep.subr.mxu0 0.0
    %1432 = vmatpush1.msra.mxu0 %v42
    %1433 = vmatprep.subr.mxu0 0.0
    %1434 = vmatpush2.msra.mxu0 0.0
    %1435 = vmatprep.subr.mxu0 0.0
    %1436 = vmatpush2.msra.mxu0 0.0
    %1437 = vmatprep.subr.mxu0 0.0
    %1438 = vmatpush2.msra.mxu0 0.0
    %1439 = vmatprep.subr.mxu0 0.0
    %1440 = vmatpush2.msra.mxu0 0.0
    %1441 = vmatprep.subr.mxu0 0.0
    %1442 = vmatpush2.msra.mxu0 0.0
    %1443 = vmatprep.subr.mxu0 0.0
    %1444 = vmatpush2.msra.mxu0 0.0
    %1445 = vmatprep.subr.mxu0 0.0
    %1446 = vmatpush2.msra.mxu0 0.0
    %1447 = vmatprep.subr.mxu0 0.0
    %1448 = vmatpush2.msra.mxu0 0.0
    %1449 = vmatprep.subr.mxu0 0.0
    %1450 = vmatpush2.msra.mxu0 0.0
    %1451 = vmatprep.subr.mxu0 0.0
    %1452 = vmatpush2.msra.mxu0 0.0
    %1453 = vmatprep.subr.mxu0 0.0
    %1454 = vmatpush2.msra.mxu0 0.0
    %1455 = vmatprep.subr.mxu0 0.0
    %1456 = vmatpush2.msra.mxu0 0.0
    %1457 = vmatprep.subr.mxu0 0.0
    %1458 = vmatpush2.msra.mxu0 0.0
    %1459 = vmatprep.subr.mxu0 0.0
    %1460 = vmatpush2.msra.mxu0 0.0
    %1461 = vmatprep.subr.mxu0 0.0
    %1462 = vmatpush2.msra.mxu0 0.0
    %1463 = vmatprep.subr.mxu0 0.0
    %1464 = vmatpush2.msra.mxu0 0.0
    %1465 = vmatprep.mubr.f32.mxu0 0.0
    %1466 = vmatmul.mubr.f32.gmra.mxu0 %v1399
    %v1467 = vpop.f32.mrf.mxu0
    %v1468 = vadd.f32 %v420, %v1467
    %v1469 = vpop.f32.mrf.mxu0
    %1470 = vdwg.mxu0
    %v1471 = vmul.f32 %v1468, 0.5
    %v1472 = vtanh.pop %v1471
    %v1473 = vmul.f32 %v1472, 0.5
    %v1474 = vadd.f32 %v1473, 0.5
    %v1475 = vtanh.pop %v1468
    %v1476 = vmul.f32 %v1474, %v1242
    %1478 = vrot.lane.b32.xlu0 %v1475, 32
    %v1479 = vpop.permute.xlu0 %1478
    %v1481 = vmul.f32 %v1474, %v1479
    %1483 = vrot.lane.b32.xlu0 %v1481, 32
    %v1484 = vpop.permute.xlu0 %1483
    %v1486 = vadd.f32 %v1476, %v1484
    %v1487 = vtanh.pop %v1486
    %1489 = vrot.lane.b32.xlu0 %v1487, 32
    %v1490 = vpop.permute.xlu0 %1489
    %v1492 = vmul.f32 %v1474, %v1490
    %v1495 = vrot.slane %v1383, 5
    %v1496 = vrot.slane %v1384, 4
    %v1497 = vsel %vm282, %v1496, %v1495
    %1498 = vrot.lane.b32.xlu0 %v1497, 64
    %v1499 = vpop.permute.xlu0 %1498
    %v1500 = vsel %vm155, %v1499, 0
    %1502 = vmatprep.subr.mxu0 0.0
    %1503 = vmatpush1.msra.mxu0 0.0
    %1504 = vmatprep.subr.mxu0 0.0
    %1505 = vmatpush1.msra.mxu0 0.0
    %1506 = vmatprep.subr.mxu0 0.0
    %1507 = vmatpush1.msra.mxu0 0.0
    %1508 = vmatprep.subr.mxu0 0.0
    %1509 = vmatpush1.msra.mxu0 0.0
    %1510 = vmatprep.subr.mxu0 0.0
    %1511 = vmatpush1.msra.mxu0 0.0
    %1512 = vmatprep.subr.mxu0 0.0
    %1513 = vmatpush1.msra.mxu0 0.0
    %1514 = vmatprep.subr.mxu0 0.0
    %1515 = vmatpush1.msra.mxu0 0.0
    %1516 = vmatprep.subr.mxu0 0.0
    %1517 = vmatpush1.msra.mxu0 0.0
    %1518 = vmatprep.subr.mxu0 0.0
    %1519 = vmatpush1.msra.mxu0 0.0
    %1520 = vmatprep.subr.mxu0 0.0
    %1521 = vmatpush1.msra.mxu0 0.0
    %1522 = vmatprep.subr.mxu0 0.0
    %1523 = vmatpush1.msra.mxu0 0.0
    %1524 = vmatprep.subr.mxu0 0.0
    %1525 = vmatpush1.msra.mxu0 0.0
    %1526 = vmatprep.subr.mxu0 0.0
    %1527 = vmatpush1.msra.mxu0 %v40
    %1528 = vmatprep.subr.mxu0 0.0
    %1529 = vmatpush1.msra.mxu0 %v39
    %1530 = vmatprep.subr.mxu0 0.0
    %1531 = vmatpush1.msra.mxu0 %v38
    %1532 = vmatprep.subr.mxu0 0.0
    %1533 = vmatpush1.msra.mxu0 %v37
    %1534 = vmatprep.subr.mxu0 0.0
    %1535 = vmatpush2.msra.mxu0 0.0
    %1536 = vmatprep.subr.mxu0 0.0
    %1537 = vmatpush2.msra.mxu0 0.0
    %1538 = vmatprep.subr.mxu0 0.0
    %1539 = vmatpush2.msra.mxu0 0.0
    %1540 = vmatprep.subr.mxu0 0.0
    %1541 = vmatpush2.msra.mxu0 0.0
    %1542 = vmatprep.subr.mxu0 0.0
    %1543 = vmatpush2.msra.mxu0 0.0
    %1544 = vmatprep.subr.mxu0 0.0
    %1545 = vmatpush2.msra.mxu0 0.0
    %1546 = vmatprep.subr.mxu0 0.0
    %1547 = vmatpush2.msra.mxu0 0.0
    %1548 = vmatprep.subr.mxu0 0.0
    %1549 = vmatpush2.msra.mxu0 0.0
    %1550 = vmatprep.subr.mxu0 0.0
    %1551 = vmatpush2.msra.mxu0 0.0
    %1552 = vmatprep.subr.mxu0 0.0
    %1553 = vmatpush2.msra.mxu0 0.0
    %1554 = vmatprep.subr.mxu0 0.0
    %1555 = vmatpush2.msra.mxu0 0.0
    %1556 = vmatprep.subr.mxu0 0.0
    %1557 = vmatpush2.msra.mxu0 0.0
    %1558 = vmatprep.subr.mxu0 0.0
    %1559 = vmatpush2.msra.mxu0 0.0
    %1560 = vmatprep.subr.mxu0 0.0
    %1561 = vmatpush2.msra.mxu0 0.0
    %1562 = vmatprep.subr.mxu0 0.0
    %1563 = vmatpush2.msra.mxu0 0.0
    %1564 = vmatprep.subr.mxu0 0.0
    %1565 = vmatpush2.msra.mxu0 0.0
    %1566 = vmatprep.mubr.f32.mxu0 0.0
    %1567 = vmatmul.mubr.f32.gmra.mxu0 %v1500
    %v1568 = vpop.f32.mrf.mxu0
    %v1569 = vadd.f32 0.0, %v1568
    %v1570 = vpop.f32.mrf.mxu0
    %1571 = vdwg.mxu0
    %v1573 = vrot.slane %v1569, 2
    %v1574 = vrot.slane %v1569, 3
    %v1577 = vadd.f32 %v147, %v1573
    %v1578 = vadd.f32 %v152, %v1574
    %v1579 = vmul.f32 %v1577, 0.5
    %v1580 = vmul.f32 %v1578, 0.5
    %v1581 = vtanh.pop %v1579
    %v1582 = vtanh.pop %v1580
    %v1583 = vmul.f32 %v1581, 0.5
    %v1584 = vmul.f32 %v1582, 0.5
    %v1585 = vadd.f32 %v1583, 0.5
    %v1586 = vadd.f32 %v1584, 0.5
    %v1587 = vtanh.pop %v1577
    %v1588 = vtanh.pop %v1578
    %v1591 = vrot.slane %v1371, 7
    %v1592 = vrot.slane %v1372, 7
    %v1595 = vmul.f32 %v1585, %v1591
    %v1596 = vmul.f32 %v1586, %v1592
    %1599 = vrot.lane.b32.xlu0 %v1587, 32
    %v1600 = vpop.permute.xlu0 %1599
    %1601 = vrot.lane.b32.xlu0 %v1588, 32
    %v1602 = vpop.permute.xlu0 %1601
    %v1605 = vmul.f32 %v1585, %v1600
    %v1606 = vmul.f32 %v1586, %v1602
    %1609 = vrot.lane.b32.xlu0 %v1605, 32
    %v1610 = vpop.permute.xlu0 %1609
    %1611 = vrot.lane.b32.xlu0 %v1606, 32
    %v1612 = vpop.permute.xlu0 %1611
    %v1615 = vadd.f32 %v1595, %v1610
    %v1616 = vadd.f32 %v1596, %v1612
    %v1617 = vtanh.pop %v1615
    %v1618 = vtanh.pop %v1616
    %1621 = vrot.lane.b32.xlu0 %v1617, 32
    %v1622 = vpop.permute.xlu0 %1621
    %1623 = vrot.lane.b32.xlu0 %v1618, 32
    %v1624 = vpop.permute.xlu0 %1623
    %v1627 = vmul.f32 %v1585, %v1622
    %v1628 = vmul.f32 %v1586, %v1624
    %v1629 = vrot.slane %v1384, 7
    %vm1630 = vcmask 1046534
    %v1631 = vsel %vm1630, %v1629, %v1383
    %1632 = vrot.lane.b32.xlu0 %v1631, 64
    %v1633 = vpop.permute.xlu0 %1632
    %v1636 = vrot.slane %v1492, 3
    %1637 = vrot.lane.b32.xlu0 %v1636, 96
    %v1638 = vpop.permute.xlu0 %1637
    %v1640 = vsel %vm155, %v1633, %v1638
    %v1642 = vrot.slane %v1640, 5
    %v1643 = vsel %vm422, %v1642, 0
    %1645 = vmatprep.subr.mxu0 0.0
    %1646 = vmatpush1.msra.mxu0 0.0
    %1647 = vmatprep.subr.mxu0 0.0
    %1648 = vmatpush1.msra.mxu0 0.0
    %1649 = vmatprep.subr.mxu0 0.0
    %1650 = vmatpush1.msra.mxu0 0.0
    %1651 = vmatprep.subr.mxu0 0.0
    %1652 = vmatpush1.msra.mxu0 0.0
    %1653 = vmatprep.subr.mxu0 0.0
    %1654 = vmatpush1.msra.mxu0 0.0
    %1655 = vmatprep.subr.mxu0 0.0
    %1656 = vmatpush1.msra.mxu0 0.0
    %1657 = vmatprep.subr.mxu0 0.0
    %1658 = vmatpush1.msra.mxu0 0.0
    %1659 = vmatprep.subr.mxu0 0.0
    %1660 = vmatpush1.msra.mxu0 0.0
    %1661 = vmatprep.subr.mxu0 0.0
    %1662 = vmatpush1.msra.mxu0 %v49
    %1663 = vmatprep.subr.mxu0 0.0
    %1664 = vmatpush1.msra.mxu0 %v48
    %1665 = vmatprep.subr.mxu0 0.0
    %1666 = vmatpush1.msra.mxu0 %v47
    %1667 = vmatprep.subr.mxu0 0.0
    %1668 = vmatpush1.msra.mxu0 %v46
    %1669 = vmatprep.subr.mxu0 0.0
    %1670 = vmatpush1.msra.mxu0 %v45
    %1671 = vmatprep.subr.mxu0 0.0
    %1672 = vmatpush1.msra.mxu0 %v44
    %1673 = vmatprep.subr.mxu0 0.0
    %1674 = vmatpush1.msra.mxu0 %v43
    %1675 = vmatprep.subr.mxu0 0.0
    %1676 = vmatpush1.msra.mxu0 %v42
    %1677 = vmatprep.subr.mxu0 0.0
    %1678 = vmatpush2.msra.mxu0 0.0
    %1679 = vmatprep.subr.mxu0 0.0
    %1680 = vmatpush2.msra.mxu0 0.0
    %1681 = vmatprep.subr.mxu0 0.0
    %1682 = vmatpush2.msra.mxu0 0.0
    %1683 = vmatprep.subr.mxu0 0.0
    %1684 = vmatpush2.msra.mxu0 0.0
    %1685 = vmatprep.subr.mxu0 0.0
    %1686 = vmatpush2.msra.mxu0 0.0
    %1687 = vmatprep.subr.mxu0 0.0
    %1688 = vmatpush2.msra.mxu0 0.0
    %1689 = vmatprep.subr.mxu0 0.0
    %1690 = vmatpush2.msra.mxu0 0.0
    %1691 = vmatprep.subr.mxu0 0.0
    %1692 = vmatpush2.msra.mxu0 0.0
    %1693 = vmatprep.subr.mxu0 0.0
    %1694 = vmatpush2.msra.mxu0 0.0
    %1695 = vmatprep.subr.mxu0 0.0
    %1696 = vmatpush2.msra.mxu0 0.0
    %1697 = vmatprep.subr.mxu0 0.0
    %1698 = vmatpush2.msra.mxu0 0.0
    %1699 = vmatprep.subr.mxu0 0.0
    %1700 = vmatpush2.msra.mxu0 0.0
    %1701 = vmatprep.subr.mxu0 0.0
    %1702 = vmatpush2.msra.mxu0 0.0
    %1703 = vmatprep.subr.mxu0 0.0
    %1704 = vmatpush2.msra.mxu0 0.0
    %1705 = vmatprep.subr.mxu0 0.0
    %1706 = vmatpush2.msra.mxu0 0.0
    %1707 = vmatprep.subr.mxu0 0.0
    %1708 = vmatpush2.msra.mxu0 0.0
    %1709 = vmatprep.mubr.f32.mxu0 0.0
    %1710 = vmatmul.mubr.f32.gmra.mxu0 %v1643
    %v1711 = vpop.f32.mrf.mxu0
    %v1712 = vadd.f32 %v420, %v1711
    %v1713 = vpop.f32.mrf.mxu0
    %1714 = vdwg.mxu0
    %v1715 = vmul.f32 %v1712, 0.5
    %v1716 = vtanh.pop %v1715
    %v1717 = vmul.f32 %v1716, 0.5
    %v1718 = vadd.f32 %v1717, 0.5
    %v1719 = vtanh.pop %v1712
    %v1720 = vmul.f32 %v1718, %v1486
    %1722 = vrot.lane.b32.xlu0 %v1719, 32
    %v1723 = vpop.permute.xlu0 %1722
    %v1725 = vmul.f32 %v1718, %v1723
    %1727 = vrot.lane.b32.xlu0 %v1725, 32
    %v1728 = vpop.permute.xlu0 %1727
    %v1730 = vadd.f32 %v1720, %v1728
    %v1731 = vtanh.pop %v1730
    %1733 = vrot.lane.b32.xlu0 %v1731, 32
    %v1734 = vpop.permute.xlu0 %1733
    %v1736 = vmul.f32 %v1718, %v1734
    %v1739 = vrot.slane %v1627, 6
    %v1740 = vrot.slane %v1628, 5
    %v1741 = vsel %vm282, %v1740, %v1739
    %1742 = vrot.lane.b32.xlu0 %v1741, 64
    %v1743 = vpop.permute.xlu0 %1742
    %v1744 = vsel %vm155, %v1743, 0
    %1746 = vmatprep.subr.mxu0 0.0
    %1747 = vmatpush1.msra.mxu0 0.0
    %1748 = vmatprep.subr.mxu0 0.0
    %1749 = vmatpush1.msra.mxu0 0.0
    %1750 = vmatprep.subr.mxu0 0.0
    %1751 = vmatpush1.msra.mxu0 0.0
    %1752 = vmatprep.subr.mxu0 0.0
    %1753 = vmatpush1.msra.mxu0 0.0
    %1754 = vmatprep.subr.mxu0 0.0
    %1755 = vmatpush1.msra.mxu0 0.0
    %1756 = vmatprep.subr.mxu0 0.0
    %1757 = vmatpush1.msra.mxu0 0.0
    %1758 = vmatprep.subr.mxu0 0.0
    %1759 = vmatpush1.msra.mxu0 0.0
    %1760 = vmatprep.subr.mxu0 0.0
    %1761 = vmatpush1.msra.mxu0 0.0
    %1762 = vmatprep.subr.mxu0 0.0
    %1763 = vmatpush1.msra.mxu0 0.0
    %1764 = vmatprep.subr.mxu0 0.0
    %1765 = vmatpush1.msra.mxu0 0.0
    %1766 = vmatprep.subr.mxu0 0.0
    %1767 = vmatpush1.msra.mxu0 0.0
    %1768 = vmatprep.subr.mxu0 0.0
    %1769 = vmatpush1.msra.mxu0 0.0
    %1770 = vmatprep.subr.mxu0 0.0
    %1771 = vmatpush1.msra.mxu0 %v40
    %1772 = vmatprep.subr.mxu0 0.0
    %1773 = vmatpush1.msra.mxu0 %v39
    %1774 = vmatprep.subr.mxu0 0.0
    %1775 = vmatpush1.msra.mxu0 %v38
    %1776 = vmatprep.subr.mxu0 0.0
    %1777 = vmatpush1.msra.mxu0 %v37
    %1778 = vmatprep.subr.mxu0 0.0
    %1779 = vmatpush2.msra.mxu0 0.0
    %1780 = vmatprep.subr.mxu0 0.0
    %1781 = vmatpush2.msra.mxu0 0.0
    %1782 = vmatprep.subr.mxu0 0.0
    %1783 = vmatpush2.msra.mxu0 0.0
    %1784 = vmatprep.subr.mxu0 0.0
    %1785 = vmatpush2.msra.mxu0 0.0
    %1786 = vmatprep.subr.mxu0 0.0
    %1787 = vmatpush2.msra.mxu0 0.0
    %1788 = vmatprep.subr.mxu0 0.0
    %1789 = vmatpush2.msra.mxu0 0.0
    %1790 = vmatprep.subr.mxu0 0.0
    %1791 = vmatpush2.msra.mxu0 0.0
    %1792 = vmatprep.subr.mxu0 0.0
    %1793 = vmatpush2.msra.mxu0 0.0
    %1794 = vmatprep.subr.mxu0 0.0
    %1795 = vmatpush2.msra.mxu0 0.0
    %1796 = vmatprep.subr.mxu0 0.0
    %1797 = vmatpush2.msra.mxu0 0.0
    %1798 = vmatprep.subr.mxu0 0.0
    %1799 = vmatpush2.msra.mxu0 0.0
    %1800 = vmatprep.subr.mxu0 0.0
    %1801 = vmatpush2.msra.mxu0 0.0
    %1802 = vmatprep.subr.mxu0 0.0
    %1803 = vmatpush2.msra.mxu0 0.0
    %1804 = vmatprep.subr.mxu0 0.0
    %1805 = vmatpush2.msra.mxu0 0.0
    %1806 = vmatprep.subr.mxu0 0.0
    %1807 = vmatpush2.msra.mxu0 0.0
    %1808 = vmatprep.subr.mxu0 0.0
    %1809 = vmatpush2.msra.mxu0 0.0
    %1810 = vmatprep.mubr.f32.mxu0 0.0
    %1811 = vmatmul.mubr.f32.gmra.mxu0 %v1744
    %v1812 = vpop.f32.mrf.mxu0
    %v1813 = vadd.f32 0.0, %v1812
    %v1814 = vpop.f32.mrf.mxu0
    %1815 = vdwg.mxu0
    %v1817 = vrot.slane %v1813, 1
    %v1818 = vrot.slane %v1813, 2
    %v1821 = vadd.f32 %v147, %v1817
    %v1822 = vadd.f32 %v152, %v1818
    %v1823 = vmul.f32 %v1821, 0.5
    %v1824 = vmul.f32 %v1822, 0.5
    %v1825 = vtanh.pop %v1823
    %v1826 = vtanh.pop %v1824
    %v1827 = vmul.f32 %v1825, 0.5
    %v1828 = vmul.f32 %v1826, 0.5
    %v1829 = vadd.f32 %v1827, 0.5
    %v1830 = vadd.f32 %v1828, 0.5
    %v1831 = vtanh.pop %v1821
    %v1832 = vtanh.pop %v1822
    %v1835 = vrot.slane %v1615, 7
    %v1836 = vrot.slane %v1616, 7
    %v1839 = vmul.f32 %v1829, %v1835
    %v1840 = vmul.f32 %v1830, %v1836
    %1843 = vrot.lane.b32.xlu0 %v1831, 32
    %v1844 = vpop.permute.xlu0 %1843
    %1845 = vrot.lane.b32.xlu0 %v1832, 32
    %v1846 = vpop.permute.xlu0 %1845
    %v1849 = vmul.f32 %v1829, %v1844
    %v1850 = vmul.f32 %v1830, %v1846
    %1853 = vrot.lane.b32.xlu0 %v1849, 32
    %v1854 = vpop.permute.xlu0 %1853
    %1855 = vrot.lane.b32.xlu0 %v1850, 32
    %v1856 = vpop.permute.xlu0 %1855
    %v1859 = vadd.f32 %v1839, %v1854
    %v1860 = vadd.f32 %v1840, %v1856
    %v1861 = vtanh.pop %v1859
    %v1862 = vtanh.pop %v1860
    %1865 = vrot.lane.b32.xlu0 %v1861, 32
    %v1866 = vpop.permute.xlu0 %1865
    %1867 = vrot.lane.b32.xlu0 %v1862, 32
    %v1868 = vpop.permute.xlu0 %1867
    %v1871 = vmul.f32 %v1829, %v1866
    %v1872 = vmul.f32 %v1830, %v1868
    %v1873 = vrot.slane %v1628, 7
    %vm1874 = vcmask 1047559
    %v1875 = vsel %vm1874, %v1873, %v1627
    %1876 = vrot.lane.b32.xlu0 %v1875, 64
    %v1877 = vpop.permute.xlu0 %1876
    %v1880 = vrot.slane %v1736, 2
    %1881 = vrot.lane.b32.xlu0 %v1880, 96
    %v1882 = vpop.permute.xlu0 %1881
    %v1884 = vsel %vm155, %v1877, %v1882
    %v1886 = vrot.slane %v1884, 6
    %v1887 = vsel %vm422, %v1886, 0
    %1889 = vmatprep.subr.mxu0 0.0
    %1890 = vmatpush1.msra.mxu0 0.0
    %1891 = vmatprep.subr.mxu0 0.0
    %1892 = vmatpush1.msra.mxu0 0.0
    %1893 = vmatprep.subr.mxu0 0.0
    %1894 = vmatpush1.msra.mxu0 0.0
    %1895 = vmatprep.subr.mxu0 0.0
    %1896 = vmatpush1.msra.mxu0 0.0
    %1897 = vmatprep.subr.mxu0 0.0
    %1898 = vmatpush1.msra.mxu0 0.0
    %1899 = vmatprep.subr.mxu0 0.0
    %1900 = vmatpush1.msra.mxu0 0.0
    %1901 = vmatprep.subr.mxu0 0.0
    %1902 = vmatpush1.msra.mxu0 0.0
    %1903 = vmatprep.subr.mxu0 0.0
    %1904 = vmatpush1.msra.mxu0 0.0
    %1905 = vmatprep.subr.mxu0 0.0
    %1906 = vmatpush1.msra.mxu0 %v49
    %1907 = vmatprep.subr.mxu0 0.0
    %1908 = vmatpush1.msra.mxu0 %v48
    %1909 = vmatprep.subr.mxu0 0.0
    %1910 = vmatpush1.msra.mxu0 %v47
    %1911 = vmatprep.subr.mxu0 0.0
    %1912 = vmatpush1.msra.mxu0 %v46
    %1913 = vmatprep.subr.mxu0 0.0
    %1914 = vmatpush1.msra.mxu0 %v45
    %1915 = vmatprep.subr.mxu0 0.0
    %1916 = vmatpush1.msra.mxu0 %v44
    %1917 = vmatprep.subr.mxu0 0.0
    %1918 = vmatpush1.msra.mxu0 %v43
    %1919 = vmatprep.subr.mxu0 0.0
    %1920 = vmatpush1.msra.mxu0 %v42
    %1921 = vmatprep.subr.mxu0 0.0
    %1922 = vmatpush2.msra.mxu0 0.0
    %1923 = vmatprep.subr.mxu0 0.0
    %1924 = vmatpush2.msra.mxu0 0.0
    %1925 = vmatprep.subr.mxu0 0.0
    %1926 = vmatpush2.msra.mxu0 0.0
    %1927 = vmatprep.subr.mxu0 0.0
    %1928 = vmatpush2.msra.mxu0 0.0
    %1929 = vmatprep.subr.mxu0 0.0
    %1930 = vmatpush2.msra.mxu0 0.0
    %1931 = vmatprep.subr.mxu0 0.0
    %1932 = vmatpush2.msra.mxu0 0.0
    %1933 = vmatprep.subr.mxu0 0.0
    %1934 = vmatpush2.msra.mxu0 0.0
    %1935 = vmatprep.subr.mxu0 0.0
    %1936 = vmatpush2.msra.mxu0 0.0
    %1937 = vmatprep.subr.mxu0 0.0
    %1938 = vmatpush2.msra.mxu0 0.0
    %1939 = vmatprep.subr.mxu0 0.0
    %1940 = vmatpush2.msra.mxu0 0.0
    %1941 = vmatprep.subr.mxu0 0.0
    %1942 = vmatpush2.msra.mxu0 0.0
    %1943 = vmatprep.subr.mxu0 0.0
    %1944 = vmatpush2.msra.mxu0 0.0
    %1945 = vmatprep.subr.mxu0 0.0
    %1946 = vmatpush2.msra.mxu0 0.0
    %1947 = vmatprep.subr.mxu0 0.0
    %1948 = vmatpush2.msra.mxu0 0.0
    %1949 = vmatprep.subr.mxu0 0.0
    %1950 = vmatpush2.msra.mxu0 0.0
    %1951 = vmatprep.subr.mxu0 0.0
    %1952 = vmatpush2.msra.mxu0 0.0
    %1953 = vmatprep.mubr.f32.mxu0 0.0
    %1954 = vmatmul.mubr.f32.gmra.mxu0 %v1887
    %v1955 = vpop.f32.mrf.mxu0
    %v1956 = vadd.f32 %v420, %v1955
    %v1957 = vpop.f32.mrf.mxu0
    %1958 = vdwg.mxu0
    %v1959 = vmul.f32 %v1956, 0.5
    %v1960 = vtanh.pop %v1959
    %v1961 = vmul.f32 %v1960, 0.5
    %v1962 = vadd.f32 %v1961, 0.5
    %v1963 = vtanh.pop %v1956
    %v1964 = vmul.f32 %v1962, %v1730
    %1966 = vrot.lane.b32.xlu0 %v1963, 32
    %v1967 = vpop.permute.xlu0 %1966
    %v1969 = vmul.f32 %v1962, %v1967
    %1971 = vrot.lane.b32.xlu0 %v1969, 32
    %v1972 = vpop.permute.xlu0 %1971
    %v1974 = vadd.f32 %v1964, %v1972
    %v1975 = vtanh.pop %v1974
    %1977 = vrot.lane.b32.xlu0 %v1975, 32
    %v1978 = vpop.permute.xlu0 %1977
    %v1980 = vmul.f32 %v1962, %v1978
    %v1983 = vrot.slane %v1872, 7
    %1984 = vrot.lane.b32.xlu0 %v1871, 64
    %v1985 = vpop.permute.xlu0 %1984
    %1986 = vrot.lane.b32.xlu0 %v1983, 64
    %v1987 = vpop.permute.xlu0 %1986
    %v1991 = vrot.slane %v1980, 1
    %1992 = vrot.lane.b32.xlu0 %v1991, 96
    %v1993 = vpop.permute.xlu0 %1992
    %v1995 = vsel %vm155, %v1985, %v1993
    %v1996 = vsel %vm155, %v1987, %v1993
    %vm1999 = vcmask 1040384
    %v2000 = vrot.slane %v1995, 7
    %v2001 = vrot.slane %v1996, 7
    %v2002 = vsel %vm1999, %v2000, %v2001
    %v2003 = vsel %vm422, %v2002, 0
    %2005 = vmatprep.subr.mxu0 0.0
    %2006 = vmatpush1.msra.mxu0 0.0
    %2007 = vmatprep.subr.mxu0 0.0
    %2008 = vmatpush1.msra.mxu0 0.0
    %2009 = vmatprep.subr.mxu0 0.0
    %2010 = vmatpush1.msra.mxu0 0.0
    %2011 = vmatprep.subr.mxu0 0.0
    %2012 = vmatpush1.msra.mxu0 0.0
    %2013 = vmatprep.subr.mxu0 0.0
    %2014 = vmatpush1.msra.mxu0 0.0
    %2015 = vmatprep.subr.mxu0 0.0
    %2016 = vmatpush1.msra.mxu0 0.0
    %2017 = vmatprep.subr.mxu0 0.0
    %2018 = vmatpush1.msra.mxu0 0.0
    %2019 = vmatprep.subr.mxu0 0.0
    %2020 = vmatpush1.msra.mxu0 0.0
    %2021 = vmatprep.subr.mxu0 0.0
    %2022 = vmatpush1.msra.mxu0 %v49
    %2023 = vmatprep.subr.mxu0 0.0
    %2024 = vmatpush1.msra.mxu0 %v48
    %2025 = vmatprep.subr.mxu0 0.0
    %2026 = vmatpush1.msra.mxu0 %v47
    %2027 = vmatprep.subr.mxu0 0.0
    %2028 = vmatpush1.msra.mxu0 %v46
    %2029 = vmatprep.subr.mxu0 0.0
    %2030 = vmatpush1.msra.mxu0 %v45
    %2031 = vmatprep.subr.mxu0 0.0
    %2032 = vmatpush1.msra.mxu0 %v44
    %2033 = vmatprep.subr.mxu0 0.0
    %2034 = vmatpush1.msra.mxu0 %v43
    %2035 = vmatprep.subr.mxu0 0.0
    %2036 = vmatpush1.msra.mxu0 %v42
    %2037 = vmatprep.subr.mxu0 0.0
    %2038 = vmatpush2.msra.mxu0 0.0
    %2039 = vmatprep.subr.mxu0 0.0
    %2040 = vmatpush2.msra.mxu0 0.0
    %2041 = vmatprep.subr.mxu0 0.0
    %2042 = vmatpush2.msra.mxu0 0.0
    %2043 = vmatprep.subr.mxu0 0.0
    %2044 = vmatpush2.msra.mxu0 0.0
    %2045 = vmatprep.subr.mxu0 0.0
    %2046 = vmatpush2.msra.mxu0 0.0
    %2047 = vmatprep.subr.mxu0 0.0
    %2048 = vmatpush2.msra.mxu0 0.0
    %2049 = vmatprep.subr.mxu0 0.0
    %2050 = vmatpush2.msra.mxu0 0.0
    %2051 = vmatprep.subr.mxu0 0.0
    %2052 = vmatpush2.msra.mxu0 0.0
    %2053 = vmatprep.subr.mxu0 0.0
    %2054 = vmatpush2.msra.mxu0 0.0
    %2055 = vmatprep.subr.mxu0 0.0
    %2056 = vmatpush2.msra.mxu0 0.0
    %2057 = vmatprep.subr.mxu0 0.0
    %2058 = vmatpush2.msra.mxu0 0.0
    %2059 = vmatprep.subr.mxu0 0.0
    %2060 = vmatpush2.msra.mxu0 0.0
    %2061 = vmatprep.subr.mxu0 0.0
    %2062 = vmatpush2.msra.mxu0 0.0
    %2063 = vmatprep.subr.mxu0 0.0
    %2064 = vmatpush2.msra.mxu0 0.0
    %2065 = vmatprep.subr.mxu0 0.0
    %2066 = vmatpush2.msra.mxu0 0.0
    %2067 = vmatprep.subr.mxu0 0.0
    %2068 = vmatpush2.msra.mxu0 0.0
    %2069 = vmatprep.mubr.f32.mxu0 0.0
    %2070 = vmatmul.mubr.f32.gmra.mxu0 %v2003
    %v2071 = vpop.f32.mrf.mxu0
    %v2072 = vadd.f32 %v420, %v2071
    %v2073 = vpop.f32.mrf.mxu0
    %2074 = vdwg.mxu0
    %v2075 = vmul.f32 %v2072, 0.5
    %v2076 = vtanh.pop %v2075
    %v2077 = vmul.f32 %v2076, 0.5
    %v2078 = vadd.f32 %v2077, 0.5
    %v2079 = vtanh.pop %v2072
    %v2080 = vmul.f32 %v2078, %v1974
    %2082 = vrot.lane.b32.xlu0 %v2079, 32
    %v2083 = vpop.permute.xlu0 %2082
    %v2085 = vmul.f32 %v2078, %v2083
    %2087 = vrot.lane.b32.xlu0 %v2085, 32
    %v2088 = vpop.permute.xlu0 %2087
    %v2090 = vadd.f32 %v2080, %v2088
    %v2091 = vtanh.pop %v2090
    %2093 = vrot.lane.b32.xlu0 %v2091, 32
    %v2094 = vpop.permute.xlu0 %2093
    %v2096 = vmul.f32 %v2078, %v2094
    %v2098 = vunpack.c.l.s4 1966171168
    %v2099 = vunpack.c.0.s8 %v2098
    %v2100 = vlaneseq
    %v2101 = vshrl.u32 %v2100, 7
    %v2102 = vsub.s32 %v2099, %v2101
    %v2103 = vrot.slane %v517, %v2102
    %v2104 = vcombine.high %v2103, %v2103
    %v2106 = vunpack.c.l.s4 1966171168
    %v2107 = vunpack.c.0.s8 %v2106
    %v2108 = vlaneseq
    %v2109 = vshrl.u32 %v2108, 7
    %v2110 = vsub.s32 %v2107, %v2109
    %v2111 = vrot.slane %v2103, %v2110
    %v2113 = vunpack.c.l.s4 1966171168
    %v2114 = vunpack.c.0.s8 %v2113
    %v2115 = vlaneseq
    %v2116 = vshrl.u32 %v2115, 7
    %v2117 = vsub.s32 %v2114, %v2116
    %v2118 = vrot.slane %v2104, %v2117
    %v2122 = vunpack.c.l.s4 1966171168
    %v2123 = vunpack.c.0.s8 %v2122
    %v2124 = vlaneseq
    %v2125 = vshrl.u32 %v2124, 7
    %v2126 = vsub.s32 %v2123, %v2125
    %v2127 = vrot.slane %v760, %v2126
    %v2128 = vcombine.high %v2127, %v2127
    %v2130 = vunpack.c.l.s4 1966171168
    %v2131 = vunpack.c.0.s8 %v2130
    %v2132 = vlaneseq
    %v2133 = vshrl.u32 %v2132, 7
    %v2134 = vsub.s32 %v2131, %v2133
    %v2135 = vrot.slane %v2127, %v2134
    %v2137 = vunpack.c.l.s4 1966171168
    %v2138 = vunpack.c.0.s8 %v2137
    %v2139 = vlaneseq
    %v2140 = vshrl.u32 %v2139, 7
    %v2141 = vsub.s32 %v2138, %v2140
    %v2142 = vrot.slane %v2128, %v2141
    %v2144 = vunpack.c.l.s4 1966171168
    %v2145 = vunpack.c.0.s8 %v2144
    %v2146 = vlaneseq
    %v2147 = vshrl.u32 %v2146, 7
    %v2148 = vsub.s32 %v2145, %v2147
    %v2149 = vrot.slane %v1004, %v2148
    %v2150 = vcombine.high %v2149, %v2149
    %v2152 = vunpack.c.l.s4 1966171168
    %v2153 = vunpack.c.0.s8 %v2152
    %v2154 = vlaneseq
    %v2155 = vshrl.u32 %v2154, 7
    %v2156 = vsub.s32 %v2153, %v2155
    %v2157 = vrot.slane %v2149, %v2156
    %v2159 = vunpack.c.l.s4 1966171168
    %v2160 = vunpack.c.0.s8 %v2159
    %v2161 = vlaneseq
    %v2162 = vshrl.u32 %v2161, 7
    %v2163 = vsub.s32 %v2160, %v2162
    %v2164 = vrot.slane %v2150, %v2163
    %v2166 = vunpack.c.l.s4 1966171168
    %v2167 = vunpack.c.0.s8 %v2166
    %v2168 = vlaneseq
    %v2169 = vshrl.u32 %v2168, 7
    %v2170 = vsub.s32 %v2167, %v2169
    %v2171 = vrot.slane %v1248, %v2170
    %v2172 = vcombine.high %v2171, %v2171
    %v2174 = vunpack.c.l.s4 1966171168
    %v2175 = vunpack.c.0.s8 %v2174
    %v2176 = vlaneseq
    %v2177 = vshrl.u32 %v2176, 7
    %v2178 = vsub.s32 %v2175, %v2177
    %v2179 = vrot.slane %v2171, %v2178
    %v2181 = vunpack.c.l.s4 1966171168
    %v2182 = vunpack.c.0.s8 %v2181
    %v2183 = vlaneseq
    %v2184 = vshrl.u32 %v2183, 7
    %v2185 = vsub.s32 %v2182, %v2184
    %v2186 = vrot.slane %v2172, %v2185
    %v2188 = vunpack.c.l.s4 1966171168
    %v2189 = vunpack.c.0.s8 %v2188
    %v2190 = vlaneseq
    %v2191 = vshrl.u32 %v2190, 7
    %v2192 = vsub.s32 %v2189, %v2191
    %v2193 = vrot.slane %v1492, %v2192
    %v2194 = vcombine.high %v2193, %v2193
    %v2196 = vunpack.c.l.s4 1966171168
    %v2197 = vunpack.c.0.s8 %v2196
    %v2198 = vlaneseq
    %v2199 = vshrl.u32 %v2198, 7
    %v2200 = vsub.s32 %v2197, %v2199
    %v2201 = vrot.slane %v2193, %v2200
    %v2203 = vunpack.c.l.s4 1966171168
    %v2204 = vunpack.c.0.s8 %v2203
    %v2205 = vlaneseq
    %v2206 = vshrl.u32 %v2205, 7
    %v2207 = vsub.s32 %v2204, %v2206
    %v2208 = vrot.slane %v2194, %v2207
    %v2210 = vunpack.c.l.s4 1966171168
    %v2211 = vunpack.c.0.s8 %v2210
    %v2212 = vlaneseq
    %v2213 = vshrl.u32 %v2212, 7
    %v2214 = vsub.s32 %v2211, %v2213
    %v2215 = vrot.slane %v1736, %v2214
    %v2216 = vcombine.high %v2215, %v2215
    %v2218 = vunpack.c.l.s4 1966171168
    %v2219 = vunpack.c.0.s8 %v2218
    %v2220 = vlaneseq
    %v2221 = vshrl.u32 %v2220, 7
    %v2222 = vsub.s32 %v2219, %v2221
    %v2223 = vrot.slane %v2215, %v2222
    %v2225 = vunpack.c.l.s4 1966171168
    %v2226 = vunpack.c.0.s8 %v2225
    %v2227 = vlaneseq
    %v2228 = vshrl.u32 %v2227, 7
    %v2229 = vsub.s32 %v2226, %v2228
    %v2230 = vrot.slane %v2216, %v2229
    %v2232 = vunpack.c.l.s4 1966171168
    %v2233 = vunpack.c.0.s8 %v2232
    %v2234 = vlaneseq
    %v2235 = vshrl.u32 %v2234, 7
    %v2236 = vsub.s32 %v2233, %v2235
    %v2237 = vrot.slane %v1980, %v2236
    %v2238 = vcombine.high %v2237, %v2237
    %v2240 = vunpack.c.l.s4 1966171168
    %v2241 = vunpack.c.0.s8 %v2240
    %v2242 = vlaneseq
    %v2243 = vshrl.u32 %v2242, 7
    %v2244 = vsub.s32 %v2241, %v2243
    %v2245 = vrot.slane %v2237, %v2244
    %v2247 = vunpack.c.l.s4 1966171168
    %v2248 = vunpack.c.0.s8 %v2247
    %v2249 = vlaneseq
    %v2250 = vshrl.u32 %v2249, 7
    %v2251 = vsub.s32 %v2248, %v2250
    %v2252 = vrot.slane %v2238, %v2251
    %v2255 = vunpack.c.l.s4 1966171168
    %v2256 = vunpack.c.0.s8 %v2255
    %v2257 = vlaneseq
    %v2258 = vshrl.u32 %v2257, 7
    %v2259 = vsub.s32 %v2256, %v2258
    %v2260 = vrot.slane %v2096, %v2259
    %v2261 = vcombine.high %v2260, %v2260
    %v2263 = vunpack.c.l.s4 1966171168
    %v2264 = vunpack.c.0.s8 %v2263
    %v2265 = vlaneseq
    %v2266 = vshrl.u32 %v2265, 7
    %v2267 = vsub.s32 %v2264, %v2266
    %v2268 = vrot.slane %v2260, %v2267
    %v2270 = vunpack.c.l.s4 1966171168
    %v2271 = vunpack.c.0.s8 %v2270
    %v2272 = vlaneseq
    %v2273 = vshrl.u32 %v2272, 7
    %v2274 = vsub.s32 %v2271, %v2273
    %v2275 = vrot.slane %v2261, %v2274
    %v2276 = vlaneseq
    %v2277 = vshrl.u32 %v2276, 7
    %v2278 = vsub.s32 0, %v2277
    %v2279 = vrot.slane %v2135, %v2278
    %v2280 = vlaneseq
    %v2281 = vshrl.u32 %v2280, 7
    %v2282 = vsub.s32 0, %v2281
    %v2283 = vrot.slane %v2142, %v2282
    %v2286 = vlaneseq
    %v2287 = vshrl.u32 %v2286, 7
    %v2288 = vsub.s32 0, %v2287
    %v2289 = vrot.slane %v2157, %v2288
    %v2290 = vlaneseq
    %v2291 = vshrl.u32 %v2290, 7
    %v2292 = vsub.s32 0, %v2291
    %v2293 = vrot.slane %v2164, %v2292
    %v2296 = vlaneseq
    %v2297 = vshrl.u32 %v2296, 7
    %v2298 = vsub.s32 0, %v2297
    %v2299 = vrot.slane %v2179, %v2298
    %v2300 = vlaneseq
    %v2301 = vshrl.u32 %v2300, 7
    %v2302 = vsub.s32 0, %v2301
    %v2303 = vrot.slane %v2186, %v2302
    %v2306 = vlaneseq
    %v2307 = vshrl.u32 %v2306, 7
    %v2308 = vsub.s32 0, %v2307
    %v2309 = vrot.slane %v2201, %v2308
    %v2310 = vlaneseq
    %v2311 = vshrl.u32 %v2310, 7
    %v2312 = vsub.s32 0, %v2311
    %v2313 = vrot.slane %v2208, %v2312
    %v2316 = vlaneseq
    %v2317 = vshrl.u32 %v2316, 7
    %v2318 = vsub.s32 0, %v2317
    %v2319 = vrot.slane %v2223, %v2318
    %v2320 = vlaneseq
    %v2321 = vshrl.u32 %v2320, 7
    %v2322 = vsub.s32 0, %v2321
    %v2323 = vrot.slane %v2230, %v2322
    %v2326 = vlaneseq
    %v2327 = vshrl.u32 %v2326, 7
    %v2328 = vsub.s32 0, %v2327
    %v2329 = vrot.slane %v2245, %v2328
    %v2330 = vlaneseq
    %v2331 = vshrl.u32 %v2330, 7
    %v2332 = vsub.s32 0, %v2331
    %v2333 = vrot.slane %v2252, %v2332
    %v2336 = vlaneseq
    %v2337 = vshrl.u32 %v2336, 7
    %v2338 = vsub.s32 0, %v2337
    %v2339 = vrot.slane %v2268, %v2338
    %v2340 = vlaneseq
    %v2341 = vshrl.u32 %v2340, 7
    %v2342 = vsub.s32 0, %v2341
    %v2343 = vrot.slane %v2275, %v2342
    %v2346 = vsel %vm1999, %v2111, %v2279
    %v2347 = vsel %vm1999, %v2118, %v2283
    %vm2348 = vcmask 1041408
    %v2349 = vsel %vm2348, %v2346, %v2289
    %v2350 = vsel %vm2348, %v2347, %v2293
    %vm2351 = vcmask 1042432
    %v2352 = vsel %vm2351, %v2349, %v2299
    %v2353 = vsel %vm2351, %v2350, %v2303
    %v2354 = vsel %vm76, %v2352, %v2309
    %v2355 = vsel %vm76, %v2353, %v2313
    %vm2356 = vcmask 1044480
    %v2357 = vsel %vm2356, %v2354, %v2319
    %v2358 = vsel %vm2356, %v2355, %v2323
    %vm2359 = vcmask 1045504
    %v2360 = vsel %vm2359, %v2357, %v2329
    %v2361 = vsel %vm2359, %v2358, %v2333
    %vm2362 = vcmask 1046528
    %v2363 = vsel %vm2362, %v2360, %v2339
    %v2364 = vsel %vm2362, %v2361, %v2343
    %2365 = vrot.lane.b32.xlu0 %v2096, 64
    %v2366 = vpop.permute.xlu0 %2365
    %v2367 = vsel %vm155, %v2366, 0
    %2369 = vmatprep.subr.mxu0 0.0
    %2370 = vmatpush1.msra.mxu0 0.0
    %2371 = vmatprep.subr.mxu0 0.0
    %2372 = vmatpush1.msra.mxu0 0.0
    %2373 = vmatprep.subr.mxu0 0.0
    %2374 = vmatpush1.msra.mxu0 0.0
    %2375 = vmatprep.subr.mxu0 0.0
    %2376 = vmatpush1.msra.mxu0 0.0
    %2377 = vmatprep.subr.mxu0 0.0
    %2378 = vmatpush1.msra.mxu0 0.0
    %2379 = vmatprep.subr.mxu0 0.0
    %2380 = vmatpush1.msra.mxu0 0.0
    %2381 = vmatprep.subr.mxu0 0.0
    %2382 = vmatpush1.msra.mxu0 0.0
    %2383 = vmatprep.subr.mxu0 0.0
    %2384 = vmatpush1.msra.mxu0 0.0
    %2385 = vmatprep.subr.mxu0 0.0
    %2386 = vmatpush1.msra.mxu0 0.0
    %2387 = vmatprep.subr.mxu0 0.0
    %2388 = vmatpush1.msra.mxu0 0.0
    %2389 = vmatprep.subr.mxu0 0.0
    %2390 = vmatpush1.msra.mxu0 0.0
    %2391 = vmatprep.subr.mxu0 0.0
    %2392 = vmatpush1.msra.mxu0 0.0
    %2393 = vmatprep.subr.mxu0 0.0
    %2394 = vmatpush1.msra.mxu0 %v54
    %2395 = vmatprep.subr.mxu0 0.0
    %2396 = vmatpush1.msra.mxu0 %v53
    %2397 = vmatprep.subr.mxu0 0.0
    %2398 = vmatpush1.msra.mxu0 %v52
    %2399 = vmatprep.subr.mxu0 0.0
    %2400 = vmatpush1.msra.mxu0 %v51
    %2401 = vmatprep.subr.mxu0 0.0
    %2402 = vmatpush2.msra.mxu0 0.0
    %2403 = vmatprep.subr.mxu0 0.0
    %2404 = vmatpush2.msra.mxu0 0.0
    %2405 = vmatprep.subr.mxu0 0.0
    %2406 = vmatpush2.msra.mxu0 0.0
    %2407 = vmatprep.subr.mxu0 0.0
    %2408 = vmatpush2.msra.mxu0 0.0
    %2409 = vmatprep.subr.mxu0 0.0
    %2410 = vmatpush2.msra.mxu0 0.0
    %2411 = vmatprep.subr.mxu0 0.0
    %2412 = vmatpush2.msra.mxu0 0.0
    %2413 = vmatprep.subr.mxu0 0.0
    %2414 = vmatpush2.msra.mxu0 0.0
    %2415 = vmatprep.subr.mxu0 0.0
    %2416 = vmatpush2.msra.mxu0 0.0
    %2417 = vmatprep.subr.mxu0 0.0
    %2418 = vmatpush2.msra.mxu0 0.0
    %2419 = vmatprep.subr.mxu0 0.0
    %2420 = vmatpush2.msra.mxu0 0.0
    %2421 = vmatprep.subr.mxu0 0.0
    %2422 = vmatpush2.msra.mxu0 0.0
    %2423 = vmatprep.subr.mxu0 0.0
    %2424 = vmatpush2.msra.mxu0 0.0
    %2425 = vmatprep.subr.mxu0 0.0
    %2426 = vmatpush2.msra.mxu0 0.0
    %2427 = vmatprep.subr.mxu0 0.0
    %2428 = vmatpush2.msra.mxu0 0.0
    %2429 = vmatprep.subr.mxu0 0.0
    %2430 = vmatpush2.msra.mxu0 0.0
    %2431 = vmatprep.subr.mxu0 0.0
    %2432 = vmatpush2.msra.mxu0 0.0
    %2433 = vmatprep.mubr.f32.mxu0 0.0
    %2434 = vmatmul.mubr.f32.gmra.mxu0 %v2367
    %v2435 = vpop.f32.mrf.mxu0
    %v2436 = vadd.f32 0.0, %v2435
    %v2437 = vpop.f32.mrf.mxu0
    %2438 = vdwg.mxu0
    %v2439 = vlaneseq
    %v2440 = vshrl.u32 %v2439, 7
    %v2441 = vsub.s32 0, %v2440
    %v2442 = vrot.slane %v2436, %v2441
    %2444 = vbcast.lane.b32.xlu0 %v2442, 256
    %v2445 = vpop.permute.xlu0 %2444
    %v2446 = vlaneseq
    %v2447 = vshrl.u32 %v2446, 7
    %v2448 = vsub.s32 1, %v2447
    %v2449 = vrot.slane %v2436, %v2448
    %2451 = vbcast.lane.b32.xlu0 %v2449, 256
    %v2452 = vpop.permute.xlu0 %2451
    %v2453 = vmul.f32 %v2363, %v2445
    %v2454 = vmul.f32 %v2364, %v2452
    %vm2455 = vcmask 785920
    %v2456 = vsel %vm2455, %v2453, 0.0
    %v2457 = vrot.slane %v2456, 4
    %v2458 = vadd.f32 %v2456, %v2457
    %v2459 = vrot.slane %v2458, 2
    %v2460 = vadd.f32 %v2458, %v2459
    %v2461 = vrot.slane %v2460, 1
    %v2462 = vadd.f32 %v2460, %v2461
    %v2463 = vsel %vm2455, %v2454, 0.0
    %v2464 = vrot.slane %v2463, 4
    %v2465 = vadd.f32 %v2463, %v2464
    %v2466 = vrot.slane %v2465, 2
    %v2467 = vadd.f32 %v2465, %v2466
    %v2468 = vrot.slane %v2467, 1
    %v2469 = vadd.f32 %v2467, %v2468
    %v2470 = vmul.f32 %v2462, 0.5
    %v2471 = vmul.f32 %v2469, 0.5
    %v2472 = vtanh.pop %v2470
    %v2473 = vtanh.pop %v2471
    %v2474 = vmul.f32 %v2472, 0.5
    %v2475 = vmul.f32 %v2473, 0.5
    %v2476 = vadd.f32 %v2474, 0.5
    %v2477 = vadd.f32 %v2475, 0.5
    %v2478 = vmul.f32 %v2363, %v2476
    %v2479 = vmul.f32 %v2364, %v2477
    %2482 = vrot.lane.b32.xlu0 %v2478, 64
    %v2483 = vpop.permute.xlu0 %2482
    %2484 = vrot.lane.b32.xlu0 %v2479, 64
    %v2485 = vpop.permute.xlu0 %2484
    %v2488 = vsel %vm155, %v2483, 0.0
    %2489 = vadd.xlane.f32.xlu0 %v2488
    %v2490 = vpop.xlane.xlu0 %2489
    %v2491 = vsel %vm155, %v2485, 0.0
    %2492 = vadd.xlane.f32.xlu0 %v2491
    %v2493 = vpop.xlane.xlu0 %2492
    %2494 = vmatprep.subr.mxu0 0.0
    %2495 = vmatpush1.msra.mxu0 0.0
    %2496 = vmatprep.subr.mxu0 0.0
    %2497 = vmatpush1.msra.mxu0 0.0
    %2498 = vmatprep.subr.mxu0 0.0
    %2499 = vmatpush1.msra.mxu0 0.0
    %2500 = vmatprep.subr.mxu0 0.0
    %2501 = vmatpush1.msra.mxu0 0.0
    %2502 = vmatprep.subr.mxu0 0.0
    %2503 = vmatpush1.msra.mxu0 0.0
    %2504 = vmatprep.subr.mxu0 0.0
    %2505 = vmatpush1.msra.mxu0 0.0
    %2506 = vmatprep.subr.mxu0 0.0
    %2507 = vmatpush1.msra.mxu0 0.0
    %2508 = vmatprep.subr.mxu0 0.0
    %2509 = vmatpush1.msra.mxu0 0.0
    %2510 = vmatprep.subr.mxu0 0.0
    %2511 = vmatpush1.msra.mxu0 0.0
    %2512 = vmatprep.subr.mxu0 0.0
    %2513 = vmatpush1.msra.mxu0 0.0
    %2514 = vmatprep.subr.mxu0 0.0
    %2515 = vmatpush1.msra.mxu0 0.0
    %2516 = vmatprep.subr.mxu0 0.0
    %2517 = vmatpush1.msra.mxu0 0.0
    %2518 = vmatprep.subr.mxu0 0.0
    %2519 = vmatpush1.msra.mxu0 %v59
    %2520 = vmatprep.subr.mxu0 0.0
    %2521 = vmatpush1.msra.mxu0 %v58
    %2522 = vmatprep.subr.mxu0 0.0
    %2523 = vmatpush1.msra.mxu0 %v57
    %2524 = vmatprep.subr.mxu0 0.0
    %2525 = vmatpush1.msra.mxu0 %v56
    %2526 = vmatprep.subr.mxu0 0.0
    %2527 = vmatpush2.msra.mxu0 0.0
    %2528 = vmatprep.subr.mxu0 0.0
    %2529 = vmatpush2.msra.mxu0 0.0
    %2530 = vmatprep.subr.mxu0 0.0
    %2531 = vmatpush2.msra.mxu0 0.0
    %2532 = vmatprep.subr.mxu0 0.0
    %2533 = vmatpush2.msra.mxu0 0.0
    %2534 = vmatprep.subr.mxu0 0.0
    %2535 = vmatpush2.msra.mxu0 0.0
    %2536 = vmatprep.subr.mxu0 0.0
    %2537 = vmatpush2.msra.mxu0 0.0
    %2538 = vmatprep.subr.mxu0 0.0
    %2539 = vmatpush2.msra.mxu0 0.0
    %2540 = vmatprep.subr.mxu0 0.0
    %2541 = vmatpush2.msra.mxu0 0.0
    %2542 = vmatprep.subr.mxu0 0.0
    %2543 = vmatpush2.msra.mxu0 0.0
    %2544 = vmatprep.subr.mxu0 0.0
    %2545 = vmatpush2.msra.mxu0 0.0
    %2546 = vmatprep.subr.mxu0 0.0
    %2547 = vmatpush2.msra.mxu0 0.0
    %2548 = vmatprep.subr.mxu0 0.0
    %2549 = vmatpush2.msra.mxu0 0.0
    %2550 = vmatprep.subr.mxu0 0.0
    %2551 = vmatpush2.msra.mxu0 0.0
    %2552 = vmatprep.subr.mxu0 0.0
    %2553 = vmatpush2.msra.mxu0 0.0
    %2554 = vmatprep.subr.mxu0 0.0
    %2555 = vmatpush2.msra.mxu0 0.0
    %2556 = vmatprep.subr.mxu0 0.0
    %2557 = vmatpush2.msra.mxu0 0.0
    %2558 = vmatprep.mubr.f32.mxu0 0.0
    %2559 = vmatmul.mubr.f32.gmra.mxu0 %v2367
    %v2560 = vpop.f32.mrf.mxu0
    %v2561 = vadd.f32 0.0, %v2560
    %v2562 = vpop.f32.mrf.mxu0
    %2563 = vdwg.mxu0
    %v2566 = vlaneseq
    %v2567 = vand.u32 %v2566, 127
    %v2568 = vlaneseq
    %v2569 = vshrl.u32 %v2568, 7
    %v2570 = vsub.s32 %v2567, %v2569
    %v2571 = vrot.slane %v2490, %v2570
    %v2572 = vlaneseq
    %v2573 = vshrl.u32 %v2572, 7
    %v2574 = vsub.s32 %v2567, %v2573
    %v2575 = vrot.slane %v2493, %v2574
    %v2576 = vsel %vm282, %v2575, %v2571
    %vm2577 = vcmask 64512
    %v2578 = vsel %vm2577, %v2576, 0
    %2580 = vmatprep.subr.mxu0 0.0
    %2581 = vmatpush1.msra.mxu0 0.0
    %2582 = vmatprep.subr.mxu0 0.0
    %2583 = vmatpush1.msra.mxu0 0.0
    %2584 = vmatprep.subr.mxu0 0.0
    %2585 = vmatpush1.msra.mxu0 0.0
    %2586 = vmatprep.subr.mxu0 0.0
    %2587 = vmatpush1.msra.mxu0 0.0
    %2588 = vmatprep.subr.mxu0 0.0
    %2589 = vmatpush1.msra.mxu0 0.0
    %2590 = vmatprep.subr.mxu0 0.0
    %2591 = vmatpush1.msra.mxu0 0.0
    %2592 = vmatprep.subr.mxu0 0.0
    %2593 = vmatpush1.msra.mxu0 0.0
    %2594 = vmatprep.subr.mxu0 0.0
    %2595 = vmatpush1.msra.mxu0 0.0
    %2596 = vmatprep.subr.mxu0 0.0
    %2597 = vmatpush1.msra.mxu0 0.0
    %2598 = vmatprep.subr.mxu0 0.0
    %2599 = vmatpush1.msra.mxu0 0.0
    %2600 = vmatprep.subr.mxu0 0.0
    %2601 = vmatpush1.msra.mxu0 0.0
    %2602 = vmatprep.subr.mxu0 0.0
    %2603 = vmatpush1.msra.mxu0 0.0
    %2604 = vmatprep.subr.mxu0 0.0
    %2605 = vmatpush1.msra.mxu0 0.0
    %2606 = vmatprep.subr.mxu0 0.0
    %2607 = vmatpush1.msra.mxu0 0.0
    %2608 = vmatprep.subr.mxu0 0.0
    %2609 = vmatpush1.msra.mxu0 0.0
    %2610 = vmatprep.subr.mxu0 0.0
    %2611 = vmatpush1.msra.mxu0 %v55
    %2612 = vmatprep.subr.mxu0 0.0
    %2613 = vmatpush2.msra.mxu0 0.0
    %2614 = vmatprep.subr.mxu0 0.0
    %2615 = vmatpush2.msra.mxu0 0.0
    %2616 = vmatprep.subr.mxu0 0.0
    %2617 = vmatpush2.msra.mxu0 0.0
    %2618 = vmatprep.subr.mxu0 0.0
    %2619 = vmatpush2.msra.mxu0 0.0
    %2620 = vmatprep.subr.mxu0 0.0
    %2621 = vmatpush2.msra.mxu0 0.0
    %2622 = vmatprep.subr.mxu0 0.0
    %2623 = vmatpush2.msra.mxu0 0.0
    %2624 = vmatprep.subr.mxu0 0.0
    %2625 = vmatpush2.msra.mxu0 0.0
    %2626 = vmatprep.subr.mxu0 0.0
    %2627 = vmatpush2.msra.mxu0 0.0
    %2628 = vmatprep.subr.mxu0 0.0
    %2629 = vmatpush2.msra.mxu0 0.0
    %2630 = vmatprep.subr.mxu0 0.0
    %2631 = vmatpush2.msra.mxu0 0.0
    %2632 = vmatprep.subr.mxu0 0.0
    %2633 = vmatpush2.msra.mxu0 0.0
    %2634 = vmatprep.subr.mxu0 0.0
    %2635 = vmatpush2.msra.mxu0 0.0
    %2636 = vmatprep.subr.mxu0 0.0
    %2637 = vmatpush2.msra.mxu0 0.0
    %2638 = vmatprep.subr.mxu0 0.0
    %2639 = vmatpush2.msra.mxu0 0.0
    %2640 = vmatprep.subr.mxu0 0.0
    %2641 = vmatpush2.msra.mxu0 0.0
    %2642 = vmatprep.subr.mxu0 0.0
    %2643 = vmatpush2.msra.mxu0 0.0
    %2644 = vmatprep.mubr.f32.mxu0 0.0
    %2645 = vmatmul.mubr.f32.gmra.mxu0 %v2578
    %v2646 = vpop.f32.mrf.mxu0
    %v2647 = vadd.f32 %v2561, %v2646
    %v2648 = vpop.f32.mrf.mxu0
    %2649 = vdwg.mxu0
    %v2651 = vlaneseq
    %v2652 = vshrl.u32 %v2651, 7
    %v2653 = vsub.s32 0, %v2652
    %v2654 = vrot.slane %v60, %v2653
    %v2656 = vadd.f32 %v2647, %v2654
    %vm2657 = vcmask 25600
    %2658 = vst.msk [vmem:[#allocation2] sm:$0x3] %vm2657, %v2656
    // Predicated region
    $region42: #{tpu_custom_call.1} parent=1 // pred_check
      _
    $region43: #{tpu_custom_call.1} parent=1 // pred_check_branch
      %2660 = sbr.rel (0) target = $region45
    $region44: #{tpu_custom_call.1} parent=1 // pred_region
      %s2662 = ssub.s32 32, 32
      %2663 = vsyncadd [#allocation3], %s2662
      %s2665 = sshll.u32 [#allocation2], 4
      %s2666 = int_to_ptr.vmem [resolvable:$true] %s2665
      %2668 = dma.vmem_to_hbm [thread:$0]  %s2666, 32, %s10, [#allocation3]
    $region45: #{tpu_custom_call.1} parent=1 // pred_fallthru
      _
    // Predicated region
    $region46: #{tpu_custom_call.1} parent=1 // pred_check
      _
    $region47: #{tpu_custom_call.1} parent=1 // pred_check_branch
      %2670 = sbr.rel (0) target = $region49
    $region48: #{tpu_custom_call.1} parent=1 // pred_region
      %2671 = dma.done [#allocation3], 32
    $region49: #{tpu_custom_call.1} parent=1 // pred_fallthru
      _
    %2672 = vsyncpa [#allocation3], 1

</llo_original>
